<compile_context>
chip_gen: v5e
topology: v5e:2x2
jax: 0.10.0
libtpu: 0.0.40
codegen_flags: <defaults>
</compile_context>

<pallas_src>
import math
import numpy as np
import jax
import jax.numpy as jnp
from jax.experimental import pallas as pl
from jax.experimental.pallas import tpu as pltpu

# ---- model hyperparameters (PyTorch module defaults) ----
NINP = 64            # d_model
NHEAD = 2
NHID = 64            # feedforward hidden dim
NLAYERS = 4
HEAD_DIM = NINP // NHEAD
LN_EPS = 1e-5
PACKED = 2 * NINP    # lane-packed width: the two attention positions side by side

# ---- problem sizes for the demo ----
B = 2                # src batch  -> attention "sequence" axis (batch_first=False)
S = 16               # src spatial/seq axis -> attention "batch" axis


def transformer_kernel(x_ref, pe_ref, head_mask_ref, ln_mask_ref,
                       wqkv_ref, bqkv_ref, wo_ref, bo_ref,
                       ln1w_ref, ln1b_ref,
                       w1_ref, b1_ref, w2_ref, b2_ref,
                       ln2w_ref, ln2b_ref,
                       out_ref):
    """Whole 4-layer encoder; activations packed as (S, 2*D) = (16, 128)."""

    def layernorm(y, layer, w_ref, b_ref):
        # Per-64-lane-half LayerNorm via block-mask matmuls (mask pre-scaled by 1/D).
        # Independent sum / sum-of-squares reductions; var = E[x^2] - mean^2 (all f32).
        mean = jnp.dot(y, ln_mask_ref[...], preferred_element_type=jnp.float32)
        ex2 = jnp.dot(y * y, ln_mask_ref[...], preferred_element_type=jnp.float32)
        var = ex2 - mean * mean
        return ((y - mean) * jax.lax.rsqrt(var + LN_EPS) * w_ref[layer:layer + 1, :]
                + b_ref[layer:layer + 1, :])

    # positional encoding (lane-duplicated in the wrapper); dropout = identity (eval mode)
    x = x_ref[...] + pe_ref[...]                                        # (S, 2D) f32

    for l in range(NLAYERS):
        # Fused QKV projection (bf16 operands, f32 accumulation); softmax scale folded into q.
        qkv = (jnp.dot(x.astype(jnp.bfloat16), wqkv_ref[l],
                       preferred_element_type=jnp.float32)
               + bqkv_ref[l:l + 1, :])                                  # (S, 3*2D)
        q = qkv[:, 0:PACKED]
        k = qkv[:, PACKED:2 * PACKED]
        v = qkv[:, 2 * PACKED:3 * PACKED]

        # Swap the two attention positions (the two 64-lane halves) with an XLU lane roll.
        k_sw = pltpu.roll(k, shift=NINP, axis=1)
        v_sw = pltpu.roll(v, shift=NINP, axis=1)

        # Per-(position, head) score difference, broadcast across each head's 32 lanes by the
        # ones-block matmul:  s_diff = s_same - s_other.
        s_diff = jnp.dot((q * (k - k_sw)).astype(jnp.bfloat16), head_mask_ref[...],
                         preferred_element_type=jnp.float32)
        # softmax over the 2 keys == sigmoid(-s_diff); tanh form is overflow-safe (EUP).
        p_other = 0.5 - 0.5 * jnp.tanh(0.5 * s_diff)
        attn = v + p_other * (v_sw - v)

        attn = (jnp.dot(attn.astype(jnp.bfloat16), wo_ref[l],
                        preferred_element_type=jnp.float32) + bo_ref[l:l + 1, :])
        x = layernorm(x + attn, l, ln1w_ref, ln1b_ref)

        h1 = jnp.maximum(jnp.dot(x.astype(jnp.bfloat16), w1_ref[l],
                                 preferred_element_type=jnp.float32)
                         + b1_ref[l:l + 1, :], 0.0)
        ff = (jnp.dot(h1.astype(jnp.bfloat16), w2_ref[l],
                      preferred_element_type=jnp.float32) + b2_ref[l:l + 1, :])
        x = layernorm(x + ff, l, ln2w_ref, ln2b_ref)

    out_ref[...] = jnp.maximum(x, 0.0)                                   # .clamp(min=0)


def positional_encoding(seq_len, d_model):
    position = np.arange(seq_len, dtype=np.float32)[:, None]
    div_term = np.exp(np.arange(0, d_model, 2, dtype=np.float32) * (-math.log(10000.0) / d_model))
    pe = np.zeros((seq_len, d_model), dtype=np.float32)
    pe[:, 0::2] = np.sin(position * div_term)
    pe[:, 1::2] = np.cos(position * div_term)
    return pe


def init_params(key):
    ks = jax.random.split(key, 8)

    def nrm(k, shape, scale):
        return (scale * jax.random.normal(k, shape)).astype(jnp.float32)

    return dict(
        ipw=nrm(ks[0], (NLAYERS, 3 * NINP, NINP), 1.0 / math.sqrt(NINP)),   # in_proj_weight
        ipb=nrm(ks[1], (NLAYERS, 3 * NINP), 0.02),                          # in_proj_bias
        opw=nrm(ks[2], (NLAYERS, NINP, NINP), 1.0 / math.sqrt(NINP)),       # out_proj.weight
        opb=nrm(ks[3], (NLAYERS, NINP), 0.02),                              # out_proj.bias
        ln1w=jnp.ones((NLAYERS, NINP), jnp.float32),
        ln1b=jnp.zeros((NLAYERS, NINP), jnp.float32),
        w1=nrm(ks[4], (NLAYERS, NHID, NINP), 1.0 / math.sqrt(NINP)),        # linear1.weight
        b1=nrm(ks[5], (NLAYERS, NHID), 0.02),
        w2=nrm(ks[6], (NLAYERS, NINP, NHID), 1.0 / math.sqrt(NHID)),        # linear2.weight
        b2=nrm(ks[7], (NLAYERS, NINP), 0.02),
        ln2w=jnp.ones((NLAYERS, NINP), jnp.float32),
        ln2b=jnp.zeros((NLAYERS, NINP), jnp.float32),
    )


def prepare_params(params):
    """One-time (outside the per-call hot path) packing of parameters into the lane-dense
    (2*D = 128)-wide layout: block-diagonal bf16 weights, lane-duplicated f32 biases / LN
    params, plus the per-head and per-position LayerNorm block masks."""
    scale = 1.0 / math.sqrt(HEAD_DIM)
    eye2 = jnp.eye(2, dtype=jnp.float32)

    def blkdiag(w):                                    # w: (L, out, in) torch layout
        wt = jnp.transpose(w, (0, 2, 1))               # (L, in, out)
        L, i, o = wt.shape
        blk = jnp.einsum('pq,lio->lpiqo', eye2, wt).reshape(L, 2 * i, 2 * o)
        return blk.astype(jnp.bfloat16)                # (L, 2*in, 2*out) block-diagonal

    def dup(b):                                        # (L, w) -> (L, 2w): [b, b]
        return jnp.concatenate([b, b], axis=-1).astype(jnp.float32)

    wq = params['ipw'][:, 0:NINP, :] * scale           # fold 1/sqrt(head_dim) into q
    wk = params['ipw'][:, NINP:2 * NINP, :]
    wv = params['ipw'][:, 2 * NINP:3 * NINP, :]
    bq = params['ipb'][:, 0:NINP] * scale
    bk = params['ipb'][:, NINP:2 * NINP]
    bv = params['ipb'][:, 2 * NINP:3 * NINP]

    lane = np.arange(PACKED)
    head_mask = jnp.asarray((lane[:, None] // HEAD_DIM) == (lane[None, :] // HEAD_DIM),
                            dtype=jnp.bfloat16)                         # (128,128) per-(b,head)
    ln_mask = jnp.asarray(((lane[:, None] // NINP) == (lane[None, :] // NINP)) / NINP,
                          dtype=jnp.float32)                            # (128,128), pre-scaled 1/D

    return dict(
        head_mask=head_mask, ln_mask=ln_mask,
        wqkv=jnp.concatenate([blkdiag(wq), blkdiag(wk), blkdiag(wv)], axis=-1),   # (L,128,384)
        bqkv=jnp.concatenate([dup(bq), dup(bk), dup(bv)], axis=-1),               # (L,384)
        wo=blkdiag(params['opw']), bo=dup(params['opb']),
        ln1w=dup(params['ln1w']), ln1b=dup(params['ln1b']),
        w1=blkdiag(params['w1']), b1=dup(params['b1']),
        w2=blkdiag(params['w2']), b2=dup(params['b2']),
        ln2w=dup(params['ln2w']), ln2b=dup(params['ln2b']),
    )


@jax.jit
def transformer_conv_model_forward(src, prep):
    # src: (B, C=NINP, S)  float32
    Bv, Cv, Sv = src.shape
    assert Cv == NINP
    assert Bv == 2   # 2-key softmax specialization: attention sequence length must be 2

    # Lane-dense packing: row s, lanes [b*D:(b+1)*D] = src[b, :, s].
    x = jnp.transpose(src, (2, 0, 1)).reshape(Sv, Bv * NINP).astype(jnp.float32)

    # Positional encoding depends only on s; duplicate across the two lane halves (trace-time const).
    pe = positional_encoding(Sv, NINP)
    pe_packed = jnp.asarray(np.concatenate([pe, pe], axis=-1))          # (S, 2D)

    inputs = (x, pe_packed, prep['head_mask'], prep['ln_mask'],
              prep['wqkv'], prep['bqkv'], prep['wo'], prep['bo'],
              prep['ln1w'], prep['ln1b'],
              prep['w1'], prep['b1'], prep['w2'], prep['b2'],
              prep['ln2w'], prep['ln2b'])

    out_packed = pl.pallas_call(
        transformer_kernel,
        out_shape=jax.ShapeDtypeStruct((Sv, PACKED), jnp.float32),
        in_specs=[pl.BlockSpec(memory_space=pltpu.MemorySpace.VMEM)] * len(inputs),
        out_specs=pl.BlockSpec(memory_space=pltpu.MemorySpace.VMEM),
        cost_estimate=pl.CostEstimate(flops=23_000_000, transcendentals=25_000,
                                      bytes_accessed=950_000),
    )(*inputs)

    # (S, 2D) -> (B, S, D), matching the PyTorch output layout.
    return jnp.transpose(out_packed.reshape(Sv, Bv, NINP), (1, 0, 2))


def _layernorm_ref(x, w, b):
    mean = jnp.mean(x, axis=-1, keepdims=True)
    xc = x - mean
    var = jnp.mean(xc * xc, axis=-1, keepdims=True)
    return xc * jax.lax.rsqrt(var + LN_EPS) * w + b


def reference_forward(src, params):
    """Pure-JAX all-f32 reference mirroring the PyTorch forward (eval mode, exact softmax)."""
    x = jnp.transpose(src, (0, 2, 1)).astype(jnp.float32)               # (B, S, D)
    pe = jnp.asarray(positional_encoding(src.shape[2], NINP))
    x = x + pe[None, :, :]
    # transformer (batch_first=False) treats x as (seq=B, batch=S, embed=D)
    x = jnp.transpose(x, (1, 0, 2))                                     # (S, B, D)
    n, l, d = x.shape
    x = x.reshape(n * l, d)
    scale = 1.0 / math.sqrt(HEAD_DIM)
    for layer in range(NLAYERS):
        ipw = params['ipw'][layer]; ipb = params['ipb'][layer]
        qkv = x @ ipw.T + ipb
        q = qkv[:, 0:d] * scale
        k = qkv[:, d:2 * d]
        v = qkv[:, 2 * d:3 * d]
        heads = []
        for h in range(NHEAD):
            sl = slice(h * HEAD_DIM, (h + 1) * HEAD_DIM)
            qh = q[:, sl].reshape(n, l, HEAD_DIM)
            kh = k[:, sl].reshape(n, l, HEAD_DIM)
            vh = v[:, sl].reshape(n, l, HEAD_DIM)
            s = jnp.einsum('nld,nmd->nlm', qh, kh)
            p = jax.nn.softmax(s, axis=-1)
            heads.append(jnp.einsum('nlm,nmd->nld', p, vh).reshape(n * l, HEAD_DIM))
        attn = jnp.concatenate(heads, axis=-1) @ params['opw'][layer].T + params['opb'][layer]
        x = _layernorm_ref(x + attn, params['ln1w'][layer], params['ln1b'][layer])
        h1 = jnp.maximum(x @ params['w1'][layer].T + params['b1'][layer], 0.0)
        ff = h1 @ params['w2'][layer].T + params['b2'][layer]
        x = _layernorm_ref(x + ff, params['ln2w'][layer], params['ln2b'][layer])
    x = jnp.maximum(x, 0.0)
    return jnp.transpose(x.reshape(n, l, d), (1, 0, 2))                 # (B, S, D)


if __name__ == "__main__":
    key = jax.random.PRNGKey(0)
    k_src, k_par = jax.random.split(key)
    src = jax.random.normal(k_src, (B, NINP, S), dtype=jnp.float32)     # (B, C, S)
    params = init_params(k_par)

    # One-time parameter packing, kept out of the jitted per-call hot path.
    prep = jax.block_until_ready(prepare_params(params))

    out = transformer_conv_model_forward(src, prep)
    out = jax.block_until_ready(out)

    ref = reference_forward(src, params)
    assert out.shape == (B, S, NINP), out.shape
    assert jnp.all(out >= 0.0)
    # The kernel feeds the MXU bf16 operands (with f32 accumulation) per the perf review, while
    # the reference is all-f32; across 4 post-norm layers that costs a few percent of drift, so
    # the tolerance is looser than a pure-f32 comparison. Structural/layout bugs would show up
    # as O(1) errors and still trip this check.
    max_err = float(jnp.max(jnp.abs(out - ref)))
    assert jnp.allclose(out, ref, atol=1.5e-1, rtol=1.5e-1), max_err

    print("KERNEL_OK")
</pallas_src>

<mosaic_0001>
module attributes {stable_mosaic.version = 11 : i64} {
  func.func @transformer_kernel(%arg0: memref<16x128xf32, #tpu.memory_space<vmem>>, %arg1: memref<16x128xf32, #tpu.memory_space<vmem>>, %arg2: memref<128x128xbf16, #tpu.memory_space<vmem>>, %arg3: memref<128x128xf32, #tpu.memory_space<vmem>>, %arg4: memref<4x128x384xbf16, #tpu.memory_space<vmem>>, %arg5: memref<4x384xf32, #tpu.memory_space<vmem>>, %arg6: memref<4x128x128xbf16, #tpu.memory_space<vmem>>, %arg7: memref<4x128xf32, #tpu.memory_space<vmem>>, %arg8: memref<4x128xf32, #tpu.memory_space<vmem>>, %arg9: memref<4x128xf32, #tpu.memory_space<vmem>>, %arg10: memref<4x128x128xbf16, #tpu.memory_space<vmem>>, %arg11: memref<4x128xf32, #tpu.memory_space<vmem>>, %arg12: memref<4x128x128xbf16, #tpu.memory_space<vmem>>, %arg13: memref<4x128xf32, #tpu.memory_space<vmem>>, %arg14: memref<4x128xf32, #tpu.memory_space<vmem>>, %arg15: memref<4x128xf32, #tpu.memory_space<vmem>>, %arg16: memref<16x128xf32, #tpu.memory_space<vmem>>) attributes {dimension_semantics = [], scalar_prefetch = 0 : i64, scratch_operands = 0 : i64, tpu.core_type = #tpu.core_type<tc>} {
    %c0 = arith.constant 0 : index
    %c0_0 = arith.constant 0 : index
    %0 = vector.load %arg0[%c0, %c0_0] : memref<16x128xf32, #tpu.memory_space<vmem>>, vector<16x128xf32>
    %c0_1 = arith.constant 0 : index
    %c0_2 = arith.constant 0 : index
    %1 = vector.load %arg1[%c0_1, %c0_2] : memref<16x128xf32, #tpu.memory_space<vmem>>, vector<16x128xf32>
    %2 = arith.addf %0, %1 : vector<16x128xf32>
    %3 = arith.truncf %2 : vector<16x128xf32> to vector<16x128xbf16>
    %c0_3 = arith.constant 0 : index
    %c0_4 = arith.constant 0 : index
    %c0_5 = arith.constant 0 : index
    %4 = vector.load %arg4[%c0_3, %c0_4, %c0_5] : memref<4x128x384xbf16, #tpu.memory_space<vmem>>, vector<1x128x384xbf16>
    %5 = vector.shape_cast %4 : vector<1x128x384xbf16> to vector<128x384xbf16>
    %cst = arith.constant dense<0.000000e+00> : vector<16x384xf32>
    %6 = tpu.matmul %3, %5, %cst {dimension_numbers = #tpu.dot_dimension_numbers<[1], [0], [0], [1], [0, 0, 1, 1], [], []>} : vector<16x128xbf16>, vector<128x384xbf16>, vector<16x384xf32> -> vector<16x384xf32>
    %c0_6 = arith.constant 0 : index
    %c0_7 = arith.constant 0 : index
    %7 = vector.load %arg5[%c0_6, %c0_7] : memref<4x384xf32, #tpu.memory_space<vmem>>, vector<1x384xf32>
    %8 = vector.broadcast %7 : vector<1x384xf32> to vector<16x384xf32>
    %9 = arith.addf %6, %8 : vector<16x384xf32>
    %10 = vector.extract_strided_slice %9 {offsets = [0, 0], sizes = [16, 128], strides = [1, 1]} : vector<16x384xf32> to vector<16x128xf32>
    %11 = vector.extract_strided_slice %9 {offsets = [0, 128], sizes = [16, 128], strides = [1, 1]} : vector<16x384xf32> to vector<16x128xf32>
    %12 = vector.extract_strided_slice %9 {offsets = [0, 256], sizes = [16, 128], strides = [1, 1]} : vector<16x384xf32> to vector<16x128xf32>
    %c64_i32 = arith.constant 64 : i32
    %13 = tpu.dynamic_rotate %11 by %c64_i32 dim 1 : vector<16x128xf32>, i32 -> vector<16x128xf32>
    %c64_i32_8 = arith.constant 64 : i32
    %14 = tpu.dynamic_rotate %12 by %c64_i32_8 dim 1 : vector<16x128xf32>, i32 -> vector<16x128xf32>
    %15 = arith.subf %11, %13 : vector<16x128xf32>
    %16 = arith.mulf %10, %15 : vector<16x128xf32>
    %17 = arith.truncf %16 : vector<16x128xf32> to vector<16x128xbf16>
    %c0_9 = arith.constant 0 : index
    %c0_10 = arith.constant 0 : index
    %18 = vector.load %arg2[%c0_9, %c0_10] : memref<128x128xbf16, #tpu.memory_space<vmem>>, vector<128x128xbf16>
    %cst_11 = arith.constant dense<0.000000e+00> : vector<16x128xf32>
    %19 = tpu.matmul %17, %18, %cst_11 {dimension_numbers = #tpu.dot_dimension_numbers<[1], [0], [0], [1], [0, 0, 1, 1], [], []>} : vector<16x128xbf16>, vector<128x128xbf16>, vector<16x128xf32> -> vector<16x128xf32>
    %cst_12 = arith.constant 5.000000e-01 : f32
    %20 = vector.broadcast %cst_12 : f32 to vector<16x128xf32>
    %21 = arith.mulf %20, %19 : vector<16x128xf32>
    %22 = math.tanh %21 : vector<16x128xf32>
    %cst_13 = arith.constant 5.000000e-01 : f32
    %23 = vector.broadcast %cst_13 : f32 to vector<16x128xf32>
    %24 = arith.mulf %23, %22 : vector<16x128xf32>
    %cst_14 = arith.constant 5.000000e-01 : f32
    %25 = vector.broadcast %cst_14 : f32 to vector<16x128xf32>
    %26 = arith.subf %25, %24 : vector<16x128xf32>
    %27 = arith.subf %14, %12 : vector<16x128xf32>
    %28 = arith.mulf %26, %27 : vector<16x128xf32>
    %29 = arith.addf %12, %28 : vector<16x128xf32>
    %30 = arith.truncf %29 : vector<16x128xf32> to vector<16x128xbf16>
    %c0_15 = arith.constant 0 : index
    %c0_16 = arith.constant 0 : index
    %c0_17 = arith.constant 0 : index
    %31 = vector.load %arg6[%c0_15, %c0_16, %c0_17] : memref<4x128x128xbf16, #tpu.memory_space<vmem>>, vector<1x128x128xbf16>
    %32 = vector.shape_cast %31 : vector<1x128x128xbf16> to vector<128x128xbf16>
    %cst_18 = arith.constant dense<0.000000e+00> : vector<16x128xf32>
    %33 = tpu.matmul %30, %32, %cst_18 {dimension_numbers = #tpu.dot_dimension_numbers<[1], [0], [0], [1], [0, 0, 1, 1], [], []>} : vector<16x128xbf16>, vector<128x128xbf16>, vector<16x128xf32> -> vector<16x128xf32>
    %c0_19 = arith.constant 0 : index
    %c0_20 = arith.constant 0 : index
    %34 = vector.load %arg7[%c0_19, %c0_20] : memref<4x128xf32, #tpu.memory_space<vmem>>, vector<1x128xf32>
    %35 = vector.broadcast %34 : vector<1x128xf32> to vector<16x128xf32>
    %36 = arith.addf %33, %35 : vector<16x128xf32>
    %37 = arith.addf %2, %36 : vector<16x128xf32>
    %c0_21 = arith.constant 0 : index
    %c0_22 = arith.constant 0 : index
    %38 = vector.load %arg3[%c0_21, %c0_22] : memref<128x128xf32, #tpu.memory_space<vmem>>, vector<128x128xf32>
    %cst_23 = arith.constant dense<0.000000e+00> : vector<16x128xf32>
    %39 = tpu.matmul %37, %38, %cst_23 {dimension_numbers = #tpu.dot_dimension_numbers<[1], [0], [0], [1], [0, 0, 1, 1], [], []>} : vector<16x128xf32>, vector<128x128xf32>, vector<16x128xf32> -> vector<16x128xf32>
    %40 = arith.mulf %37, %37 : vector<16x128xf32>
    %c0_24 = arith.constant 0 : index
    %c0_25 = arith.constant 0 : index
    %41 = vector.load %arg3[%c0_24, %c0_25] : memref<128x128xf32, #tpu.memory_space<vmem>>, vector<128x128xf32>
    %cst_26 = arith.constant dense<0.000000e+00> : vector<16x128xf32>
    %42 = tpu.matmul %40, %41, %cst_26 {dimension_numbers = #tpu.dot_dimension_numbers<[1], [0], [0], [1], [0, 0, 1, 1], [], []>} : vector<16x128xf32>, vector<128x128xf32>, vector<16x128xf32> -> vector<16x128xf32>
    %43 = arith.mulf %39, %39 : vector<16x128xf32>
    %44 = arith.subf %42, %43 : vector<16x128xf32>
    %45 = arith.subf %37, %39 : vector<16x128xf32>
    %cst_27 = arith.constant 9.99999974E-6 : f32
    %46 = vector.broadcast %cst_27 : f32 to vector<16x128xf32>
    %47 = arith.addf %44, %46 : vector<16x128xf32>
    %48 = math.rsqrt %47 : vector<16x128xf32>
    %49 = arith.mulf %45, %48 : vector<16x128xf32>
    %c0_28 = arith.constant 0 : index
    %c0_29 = arith.constant 0 : index
    %50 = vector.load %arg8[%c0_28, %c0_29] : memref<4x128xf32, #tpu.memory_space<vmem>>, vector<1x128xf32>
    %51 = vector.broadcast %50 : vector<1x128xf32> to vector<16x128xf32>
    %52 = arith.mulf %49, %51 : vector<16x128xf32>
    %c0_30 = arith.constant 0 : index
    %c0_31 = arith.constant 0 : index
    %53 = vector.load %arg9[%c0_30, %c0_31] : memref<4x128xf32, #tpu.memory_space<vmem>>, vector<1x128xf32>
    %54 = vector.broadcast %53 : vector<1x128xf32> to vector<16x128xf32>
    %55 = arith.addf %52, %54 : vector<16x128xf32>
    %56 = arith.truncf %55 : vector<16x128xf32> to vector<16x128xbf16>
    %c0_32 = arith.constant 0 : index
    %c0_33 = arith.constant 0 : index
    %c0_34 = arith.constant 0 : index
    %57 = vector.load %arg10[%c0_32, %c0_33, %c0_34] : memref<4x128x128xbf16, #tpu.memory_space<vmem>>, vector<1x128x128xbf16>
    %58 = vector.shape_cast %57 : vector<1x128x128xbf16> to vector<128x128xbf16>
    %cst_35 = arith.constant dense<0.000000e+00> : vector<16x128xf32>
    %59 = tpu.matmul %56, %58, %cst_35 {dimension_numbers = #tpu.dot_dimension_numbers<[1], [0], [0], [1], [0, 0, 1, 1], [], []>} : vector<16x128xbf16>, vector<128x128xbf16>, vector<16x128xf32> -> vector<16x128xf32>
    %c0_36 = arith.constant 0 : index
    %c0_37 = arith.constant 0 : index
    %60 = vector.load %arg11[%c0_36, %c0_37] : memref<4x128xf32, #tpu.memory_space<vmem>>, vector<1x128xf32>
    %61 = vector.broadcast %60 : vector<1x128xf32> to vector<16x128xf32>
    %62 = arith.addf %59, %61 : vector<16x128xf32>
    %cst_38 = arith.constant 0.000000e+00 : f32
    %63 = vector.broadcast %cst_38 : f32 to vector<16x128xf32>
    %64 = arith.maximumf %62, %63 : vector<16x128xf32>
    %65 = arith.truncf %64 : vector<16x128xf32> to vector<16x128xbf16>
    %c0_39 = arith.constant 0 : index
    %c0_40 = arith.constant 0 : index
    %c0_41 = arith.constant 0 : index
    %66 = vector.load %arg12[%c0_39, %c0_40, %c0_41] : memref<4x128x128xbf16, #tpu.memory_space<vmem>>, vector<1x128x128xbf16>
    %67 = vector.shape_cast %66 : vector<1x128x128xbf16> to vector<128x128xbf16>
    %cst_42 = arith.constant dense<0.000000e+00> : vector<16x128xf32>
    %68 = tpu.matmul %65, %67, %cst_42 {dimension_numbers = #tpu.dot_dimension_numbers<[1], [0], [0], [1], [0, 0, 1, 1], [], []>} : vector<16x128xbf16>, vector<128x128xbf16>, vector<16x128xf32> -> vector<16x128xf32>
    %c0_43 = arith.constant 0 : index
    %c0_44 = arith.constant 0 : index
    %69 = vector.load %arg13[%c0_43, %c0_44] : memref<4x128xf32, #tpu.memory_space<vmem>>, vector<1x128xf32>
    %70 = vector.broadcast %69 : vector<1x128xf32> to vector<16x128xf32>
    %71 = arith.addf %68, %70 : vector<16x128xf32>
    %72 = arith.addf %55, %71 : vector<16x128xf32>
    %c0_45 = arith.constant 0 : index
    %c0_46 = arith.constant 0 : index
    %73 = vector.load %arg3[%c0_45, %c0_46] : memref<128x128xf32, #tpu.memory_space<vmem>>, vector<128x128xf32>
    %cst_47 = arith.constant dense<0.000000e+00> : vector<16x128xf32>
    %74 = tpu.matmul %72, %73, %cst_47 {dimension_numbers = #tpu.dot_dimension_numbers<[1], [0], [0], [1], [0, 0, 1, 1], [], []>} : vector<16x128xf32>, vector<128x128xf32>, vector<16x128xf32> -> vector<16x128xf32>
    %75 = arith.mulf %72, %72 : vector<16x128xf32>
    %c0_48 = arith.constant 0 : index
    %c0_49 = arith.constant 0 : index
    %76 = vector.load %arg3[%c0_48, %c0_49] : memref<128x128xf32, #tpu.memory_space<vmem>>, vector<128x128xf32>
    %cst_50 = arith.constant dense<0.000000e+00> : vector<16x128xf32>
    %77 = tpu.matmul %75, %76, %cst_50 {dimension_numbers = #tpu.dot_dimension_numbers<[1], [0], [0], [1], [0, 0, 1, 1], [], []>} : vector<16x128xf32>, vector<128x128xf32>, vector<16x128xf32> -> vector<16x128xf32>
    %78 = arith.mulf %74, %74 : vector<16x128xf32>
    %79 = arith.subf %77, %78 : vector<16x128xf32>
    %80 = arith.subf %72, %74 : vector<16x128xf32>
    %cst_51 = arith.constant 9.99999974E-6 : f32
    %81 = vector.broadcast %cst_51 : f32 to vector<16x128xf32>
    %82 = arith.addf %79, %81 : vector<16x128xf32>
    %83 = math.rsqrt %82 : vector<16x128xf32>
    %84 = arith.mulf %80, %83 : vector<16x128xf32>
    %c0_52 = arith.constant 0 : index
    %c0_53 = arith.constant 0 : index
    %85 = vector.load %arg14[%c0_52, %c0_53] : memref<4x128xf32, #tpu.memory_space<vmem>>, vector<1x128xf32>
    %86 = vector.broadcast %85 : vector<1x128xf32> to vector<16x128xf32>
    %87 = arith.mulf %84, %86 : vector<16x128xf32>
    %c0_54 = arith.constant 0 : index
    %c0_55 = arith.constant 0 : index
    %88 = vector.load %arg15[%c0_54, %c0_55] : memref<4x128xf32, #tpu.memory_space<vmem>>, vector<1x128xf32>
    %89 = vector.broadcast %88 : vector<1x128xf32> to vector<16x128xf32>
    %90 = arith.addf %87, %89 : vector<16x128xf32>
    %91 = arith.truncf %90 : vector<16x128xf32> to vector<16x128xbf16>
    %c1 = arith.constant 1 : index
    %c0_56 = arith.constant 0 : index
    %c0_57 = arith.constant 0 : index
    %92 = vector.load %arg4[%c1, %c0_56, %c0_57] : memref<4x128x384xbf16, #tpu.memory_space<vmem>>, vector<1x128x384xbf16>
    %93 = vector.shape_cast %92 : vector<1x128x384xbf16> to vector<128x384xbf16>
    %cst_58 = arith.constant dense<0.000000e+00> : vector<16x384xf32>
    %94 = tpu.matmul %91, %93, %cst_58 {dimension_numbers = #tpu.dot_dimension_numbers<[1], [0], [0], [1], [0, 0, 1, 1], [], []>} : vector<16x128xbf16>, vector<128x384xbf16>, vector<16x384xf32> -> vector<16x384xf32>
    %c1_59 = arith.constant 1 : index
    %c0_60 = arith.constant 0 : index
    %95 = vector.load %arg5[%c1_59, %c0_60] : memref<4x384xf32, #tpu.memory_space<vmem>>, vector<1x384xf32>
    %96 = vector.broadcast %95 : vector<1x384xf32> to vector<16x384xf32>
    %97 = arith.addf %94, %96 : vector<16x384xf32>
    %98 = vector.extract_strided_slice %97 {offsets = [0, 0], sizes = [16, 128], strides = [1, 1]} : vector<16x384xf32> to vector<16x128xf32>
    %99 = vector.extract_strided_slice %97 {offsets = [0, 128], sizes = [16, 128], strides = [1, 1]} : vector<16x384xf32> to vector<16x128xf32>
    %100 = vector.extract_strided_slice %97 {offsets = [0, 256], sizes = [16, 128], strides = [1, 1]} : vector<16x384xf32> to vector<16x128xf32>
    %c64_i32_61 = arith.constant 64 : i32
    %101 = tpu.dynamic_rotate %99 by %c64_i32_61 dim 1 : vector<16x128xf32>, i32 -> vector<16x128xf32>
    %c64_i32_62 = arith.constant 64 : i32
    %102 = tpu.dynamic_rotate %100 by %c64_i32_62 dim 1 : vector<16x128xf32>, i32 -> vector<16x128xf32>
    %103 = arith.subf %99, %101 : vector<16x128xf32>
    %104 = arith.mulf %98, %103 : vector<16x128xf32>
    %105 = arith.truncf %104 : vector<16x128xf32> to vector<16x128xbf16>
    %c0_63 = arith.constant 0 : index
    %c0_64 = arith.constant 0 : index
    %106 = vector.load %arg2[%c0_63, %c0_64] : memref<128x128xbf16, #tpu.memory_space<vmem>>, vector<128x128xbf16>
    %cst_65 = arith.constant dense<0.000000e+00> : vector<16x128xf32>
    %107 = tpu.matmul %105, %106, %cst_65 {dimension_numbers = #tpu.dot_dimension_numbers<[1], [0], [0], [1], [0, 0, 1, 1], [], []>} : vector<16x128xbf16>, vector<128x128xbf16>, vector<16x128xf32> -> vector<16x128xf32>
    %cst_66 = arith.constant 5.000000e-01 : f32
    %108 = vector.broadcast %cst_66 : f32 to vector<16x128xf32>
    %109 = arith.mulf %108, %107 : vector<16x128xf32>
    %110 = math.tanh %109 : vector<16x128xf32>
    %cst_67 = arith.constant 5.000000e-01 : f32
    %111 = vector.broadcast %cst_67 : f32 to vector<16x128xf32>
    %112 = arith.mulf %111, %110 : vector<16x128xf32>
    %cst_68 = arith.constant 5.000000e-01 : f32
    %113 = vector.broadcast %cst_68 : f32 to vector<16x128xf32>
    %114 = arith.subf %113, %112 : vector<16x128xf32>
    %115 = arith.subf %102, %100 : vector<16x128xf32>
    %116 = arith.mulf %114, %115 : vector<16x128xf32>
    %117 = arith.addf %100, %116 : vector<16x128xf32>
    %118 = arith.truncf %117 : vector<16x128xf32> to vector<16x128xbf16>
    %c1_69 = arith.constant 1 : index
    %c0_70 = arith.constant 0 : index
    %c0_71 = arith.constant 0 : index
    %119 = vector.load %arg6[%c1_69, %c0_70, %c0_71] : memref<4x128x128xbf16, #tpu.memory_space<vmem>>, vector<1x128x128xbf16>
    %120 = vector.shape_cast %119 : vector<1x128x128xbf16> to vector<128x128xbf16>
    %cst_72 = arith.constant dense<0.000000e+00> : vector<16x128xf32>
    %121 = tpu.matmul %118, %120, %cst_72 {dimension_numbers = #tpu.dot_dimension_numbers<[1], [0], [0], [1], [0, 0, 1, 1], [], []>} : vector<16x128xbf16>, vector<128x128xbf16>, vector<16x128xf32> -> vector<16x128xf32>
    %c1_73 = arith.constant 1 : index
    %c0_74 = arith.constant 0 : index
    %122 = vector.load %arg7[%c1_73, %c0_74] : memref<4x128xf32, #tpu.memory_space<vmem>>, vector<1x128xf32>
    %123 = vector.broadcast %122 : vector<1x128xf32> to vector<16x128xf32>
    %124 = arith.addf %121, %123 : vector<16x128xf32>
    %125 = arith.addf %90, %124 : vector<16x128xf32>
    %c0_75 = arith.constant 0 : index
    %c0_76 = arith.constant 0 : index
    %126 = vector.load %arg3[%c0_75, %c0_76] : memref<128x128xf32, #tpu.memory_space<vmem>>, vector<128x128xf32>
    %cst_77 = arith.constant dense<0.000000e+00> : vector<16x128xf32>
    %127 = tpu.matmul %125, %126, %cst_77 {dimension_numbers = #tpu.dot_dimension_numbers<[1], [0], [0], [1], [0, 0, 1, 1], [], []>} : vector<16x128xf32>, vector<128x128xf32>, vector<16x128xf32> -> vector<16x128xf32>
    %128 = arith.mulf %125, %125 : vector<16x128xf32>
    %c0_78 = arith.constant 0 : index
    %c0_79 = arith.constant 0 : index
    %129 = vector.load %arg3[%c0_78, %c0_79] : memref<128x128xf32, #tpu.memory_space<vmem>>, vector<128x128xf32>
    %cst_80 = arith.constant dense<0.000000e+00> : vector<16x128xf32>
    %130 = tpu.matmul %128, %129, %cst_80 {dimension_numbers = #tpu.dot_dimension_numbers<[1], [0], [0], [1], [0, 0, 1, 1], [], []>} : vector<16x128xf32>, vector<128x128xf32>, vector<16x128xf32> -> vector<16x128xf32>
    %131 = arith.mulf %127, %127 : vector<16x128xf32>
    %132 = arith.subf %130, %131 : vector<16x128xf32>
    %133 = arith.subf %125, %127 : vector<16x128xf32>
    %cst_81 = arith.constant 9.99999974E-6 : f32
    %134 = vector.broadcast %cst_81 : f32 to vector<16x128xf32>
    %135 = arith.addf %132, %134 : vector<16x128xf32>
    %136 = math.rsqrt %135 : vector<16x128xf32>
    %137 = arith.mulf %133, %136 : vector<16x128xf32>
    %c1_82 = arith.constant 1 : index
    %c0_83 = arith.constant 0 : index
    %138 = vector.load %arg8[%c1_82, %c0_83] : memref<4x128xf32, #tpu.memory_space<vmem>>, vector<1x128xf32>
    %139 = vector.broadcast %138 : vector<1x128xf32> to vector<16x128xf32>
    %140 = arith.mulf %137, %139 : vector<16x128xf32>
    %c1_84 = arith.constant 1 : index
    %c0_85 = arith.constant 0 : index
    %141 = vector.load %arg9[%c1_84, %c0_85] : memref<4x128xf32, #tpu.memory_space<vmem>>, vector<1x128xf32>
    %142 = vector.broadcast %141 : vector<1x128xf32> to vector<16x128xf32>
    %143 = arith.addf %140, %142 : vector<16x128xf32>
    %144 = arith.truncf %143 : vector<16x128xf32> to vector<16x128xbf16>
    %c1_86 = arith.constant 1 : index
    %c0_87 = arith.constant 0 : index
    %c0_88 = arith.constant 0 : index
    %145 = vector.load %arg10[%c1_86, %c0_87, %c0_88] : memref<4x128x128xbf16, #tpu.memory_space<vmem>>, vector<1x128x128xbf16>
    %146 = vector.shape_cast %145 : vector<1x128x128xbf16> to vector<128x128xbf16>
    %cst_89 = arith.constant dense<0.000000e+00> : vector<16x128xf32>
    %147 = tpu.matmul %144, %146, %cst_89 {dimension_numbers = #tpu.dot_dimension_numbers<[1], [0], [0], [1], [0, 0, 1, 1], [], []>} : vector<16x128xbf16>, vector<128x128xbf16>, vector<16x128xf32> -> vector<16x128xf32>
    %c1_90 = arith.constant 1 : index
    %c0_91 = arith.constant 0 : index
    %148 = vector.load %arg11[%c1_90, %c0_91] : memref<4x128xf32, #tpu.memory_space<vmem>>, vector<1x128xf32>
    %149 = vector.broadcast %148 : vector<1x128xf32> to vector<16x128xf32>
    %150 = arith.addf %147, %149 : vector<16x128xf32>
    %cst_92 = arith.constant 0.000000e+00 : f32
    %151 = vector.broadcast %cst_92 : f32 to vector<16x128xf32>
    %152 = arith.maximumf %150, %151 : vector<16x128xf32>
    %153 = arith.truncf %152 : vector<16x128xf32> to vector<16x128xbf16>
    %c1_93 = arith.constant 1 : index
    %c0_94 = arith.constant 0 : index
    %c0_95 = arith.constant 0 : index
    %154 = vector.load %arg12[%c1_93, %c0_94, %c0_95] : memref<4x128x128xbf16, #tpu.memory_space<vmem>>, vector<1x128x128xbf16>
    %155 = vector.shape_cast %154 : vector<1x128x128xbf16> to vector<128x128xbf16>
    %cst_96 = arith.constant dense<0.000000e+00> : vector<16x128xf32>
    %156 = tpu.matmul %153, %155, %cst_96 {dimension_numbers = #tpu.dot_dimension_numbers<[1], [0], [0], [1], [0, 0, 1, 1], [], []>} : vector<16x128xbf16>, vector<128x128xbf16>, vector<16x128xf32> -> vector<16x128xf32>
    %c1_97 = arith.constant 1 : index
    %c0_98 = arith.constant 0 : index
    %157 = vector.load %arg13[%c1_97, %c0_98] : memref<4x128xf32, #tpu.memory_space<vmem>>, vector<1x128xf32>
    %158 = vector.broadcast %157 : vector<1x128xf32> to vector<16x128xf32>
    %159 = arith.addf %156, %158 : vector<16x128xf32>
    %160 = arith.addf %143, %159 : vector<16x128xf32>
    %c0_99 = arith.constant 0 : index
    %c0_100 = arith.constant 0 : index
    %161 = vector.load %arg3[%c0_99, %c0_100] : memref<128x128xf32, #tpu.memory_space<vmem>>, vector<128x128xf32>
    %cst_101 = arith.constant dense<0.000000e+00> : vector<16x128xf32>
    %162 = tpu.matmul %160, %161, %cst_101 {dimension_numbers = #tpu.dot_dimension_numbers<[1], [0], [0], [1], [0, 0, 1, 1], [], []>} : vector<16x128xf32>, vector<128x128xf32>, vector<16x128xf32> -> vector<16x128xf32>
    %163 = arith.mulf %160, %160 : vector<16x128xf32>
    %c0_102 = arith.constant 0 : index
    %c0_103 = arith.constant 0 : index
    %164 = vector.load %arg3[%c0_102, %c0_103] : memref<128x128xf32, #tpu.memory_space<vmem>>, vector<128x128xf32>
    %cst_104 = arith.constant dense<0.000000e+00> : vector<16x128xf32>
    %165 = tpu.matmul %163, %164, %cst_104 {dimension_numbers = #tpu.dot_dimension_numbers<[1], [0], [0], [1], [0, 0, 1, 1], [], []>} : vector<16x128xf32>, vector<128x128xf32>, vector<16x128xf32> -> vector<16x128xf32>
    %166 = arith.mulf %162, %162 : vector<16x128xf32>
    %167 = arith.subf %165, %166 : vector<16x128xf32>
    %168 = arith.subf %160, %162 : vector<16x128xf32>
    %cst_105 = arith.constant 9.99999974E-6 : f32
    %169 = vector.broadcast %cst_105 : f32 to vector<16x128xf32>
    %170 = arith.addf %167, %169 : vector<16x128xf32>
    %171 = math.rsqrt %170 : vector<16x128xf32>
    %172 = arith.mulf %168, %171 : vector<16x128xf32>
    %c1_106 = arith.constant 1 : index
    %c0_107 = arith.constant 0 : index
    %173 = vector.load %arg14[%c1_106, %c0_107] : memref<4x128xf32, #tpu.memory_space<vmem>>, vector<1x128xf32>
    %174 = vector.broadcast %173 : vector<1x128xf32> to vector<16x128xf32>
    %175 = arith.mulf %172, %174 : vector<16x128xf32>
    %c1_108 = arith.constant 1 : index
    %c0_109 = arith.constant 0 : index
    %176 = vector.load %arg15[%c1_108, %c0_109] : memref<4x128xf32, #tpu.memory_space<vmem>>, vector<1x128xf32>
    %177 = vector.broadcast %176 : vector<1x128xf32> to vector<16x128xf32>
    %178 = arith.addf %175, %177 : vector<16x128xf32>
    %179 = arith.truncf %178 : vector<16x128xf32> to vector<16x128xbf16>
    %c2 = arith.constant 2 : index
    %c0_110 = arith.constant 0 : index
    %c0_111 = arith.constant 0 : index
    %180 = vector.load %arg4[%c2, %c0_110, %c0_111] : memref<4x128x384xbf16, #tpu.memory_space<vmem>>, vector<1x128x384xbf16>
    %181 = vector.shape_cast %180 : vector<1x128x384xbf16> to vector<128x384xbf16>
    %cst_112 = arith.constant dense<0.000000e+00> : vector<16x384xf32>
    %182 = tpu.matmul %179, %181, %cst_112 {dimension_numbers = #tpu.dot_dimension_numbers<[1], [0], [0], [1], [0, 0, 1, 1], [], []>} : vector<16x128xbf16>, vector<128x384xbf16>, vector<16x384xf32> -> vector<16x384xf32>
    %c2_113 = arith.constant 2 : index
    %c0_114 = arith.constant 0 : index
    %183 = vector.load %arg5[%c2_113, %c0_114] : memref<4x384xf32, #tpu.memory_space<vmem>>, vector<1x384xf32>
    %184 = vector.broadcast %183 : vector<1x384xf32> to vector<16x384xf32>
    %185 = arith.addf %182, %184 : vector<16x384xf32>
    %186 = vector.extract_strided_slice %185 {offsets = [0, 0], sizes = [16, 128], strides = [1, 1]} : vector<16x384xf32> to vector<16x128xf32>
    %187 = vector.extract_strided_slice %185 {offsets = [0, 128], sizes = [16, 128], strides = [1, 1]} : vector<16x384xf32> to vector<16x128xf32>
    %188 = vector.extract_strided_slice %185 {offsets = [0, 256], sizes = [16, 128], strides = [1, 1]} : vector<16x384xf32> to vector<16x128xf32>
    %c64_i32_115 = arith.constant 64 : i32
    %189 = tpu.dynamic_rotate %187 by %c64_i32_115 dim 1 : vector<16x128xf32>, i32 -> vector<16x128xf32>
    %c64_i32_116 = arith.constant 64 : i32
    %190 = tpu.dynamic_rotate %188 by %c64_i32_116 dim 1 : vector<16x128xf32>, i32 -> vector<16x128xf32>
    %191 = arith.subf %187, %189 : vector<16x128xf32>
    %192 = arith.mulf %186, %191 : vector<16x128xf32>
    %193 = arith.truncf %192 : vector<16x128xf32> to vector<16x128xbf16>
    %c0_117 = arith.constant 0 : index
    %c0_118 = arith.constant 0 : index
    %194 = vector.load %arg2[%c0_117, %c0_118] : memref<128x128xbf16, #tpu.memory_space<vmem>>, vector<128x128xbf16>
    %cst_119 = arith.constant dense<0.000000e+00> : vector<16x128xf32>
    %195 = tpu.matmul %193, %194, %cst_119 {dimension_numbers = #tpu.dot_dimension_numbers<[1], [0], [0], [1], [0, 0, 1, 1], [], []>} : vector<16x128xbf16>, vector<128x128xbf16>, vector<16x128xf32> -> vector<16x128xf32>
    %cst_120 = arith.constant 5.000000e-01 : f32
    %196 = vector.broadcast %cst_120 : f32 to vector<16x128xf32>
    %197 = arith.mulf %196, %195 : vector<16x128xf32>
    %198 = math.tanh %197 : vector<16x128xf32>
    %cst_121 = arith.constant 5.000000e-01 : f32
    %199 = vector.broadcast %cst_121 : f32 to vector<16x128xf32>
    %200 = arith.mulf %199, %198 : vector<16x128xf32>
    %cst_122 = arith.constant 5.000000e-01 : f32
    %201 = vector.broadcast %cst_122 : f32 to vector<16x128xf32>
    %202 = arith.subf %201, %200 : vector<16x128xf32>
    %203 = arith.subf %190, %188 : vector<16x128xf32>
    %204 = arith.mulf %202, %203 : vector<16x128xf32>
    %205 = arith.addf %188, %204 : vector<16x128xf32>
    %206 = arith.truncf %205 : vector<16x128xf32> to vector<16x128xbf16>
    %c2_123 = arith.constant 2 : index
    %c0_124 = arith.constant 0 : index
    %c0_125 = arith.constant 0 : index
    %207 = vector.load %arg6[%c2_123, %c0_124, %c0_125] : memref<4x128x128xbf16, #tpu.memory_space<vmem>>, vector<1x128x128xbf16>
    %208 = vector.shape_cast %207 : vector<1x128x128xbf16> to vector<128x128xbf16>
    %cst_126 = arith.constant dense<0.000000e+00> : vector<16x128xf32>
    %209 = tpu.matmul %206, %208, %cst_126 {dimension_numbers = #tpu.dot_dimension_numbers<[1], [0], [0], [1], [0, 0, 1, 1], [], []>} : vector<16x128xbf16>, vector<128x128xbf16>, vector<16x128xf32> -> vector<16x128xf32>
    %c2_127 = arith.constant 2 : index
    %c0_128 = arith.constant 0 : index
    %210 = vector.load %arg7[%c2_127, %c0_128] : memref<4x128xf32, #tpu.memory_space<vmem>>, vector<1x128xf32>
    %211 = vector.broadcast %210 : vector<1x128xf32> to vector<16x128xf32>
    %212 = arith.addf %209, %211 : vector<16x128xf32>
    %213 = arith.addf %178, %212 : vector<16x128xf32>
    %c0_129 = arith.constant 0 : index
    %c0_130 = arith.constant 0 : index
    %214 = vector.load %arg3[%c0_129, %c0_130] : memref<128x128xf32, #tpu.memory_space<vmem>>, vector<128x128xf32>
    %cst_131 = arith.constant dense<0.000000e+00> : vector<16x128xf32>
    %215 = tpu.matmul %213, %214, %cst_131 {dimension_numbers = #tpu.dot_dimension_numbers<[1], [0], [0], [1], [0, 0, 1, 1], [], []>} : vector<16x128xf32>, vector<128x128xf32>, vector<16x128xf32> -> vector<16x128xf32>
    %216 = arith.mulf %213, %213 : vector<16x128xf32>
    %c0_132 = arith.constant 0 : index
    %c0_133 = arith.constant 0 : index
    %217 = vector.load %arg3[%c0_132, %c0_133] : memref<128x128xf32, #tpu.memory_space<vmem>>, vector<128x128xf32>
    %cst_134 = arith.constant dense<0.000000e+00> : vector<16x128xf32>
    %218 = tpu.matmul %216, %217, %cst_134 {dimension_numbers = #tpu.dot_dimension_numbers<[1], [0], [0], [1], [0, 0, 1, 1], [], []>} : vector<16x128xf32>, vector<128x128xf32>, vector<16x128xf32> -> vector<16x128xf32>
    %219 = arith.mulf %215, %215 : vector<16x128xf32>
    %220 = arith.subf %218, %219 : vector<16x128xf32>
    %221 = arith.subf %213, %215 : vector<16x128xf32>
    %cst_135 = arith.constant 9.99999974E-6 : f32
    %222 = vector.broadcast %cst_135 : f32 to vector<16x128xf32>
    %223 = arith.addf %220, %222 : vector<16x128xf32>
    %224 = math.rsqrt %223 : vector<16x128xf32>
    %225 = arith.mulf %221, %224 : vector<16x128xf32>
    %c2_136 = arith.constant 2 : index
    %c0_137 = arith.constant 0 : index
    %226 = vector.load %arg8[%c2_136, %c0_137] : memref<4x128xf32, #tpu.memory_space<vmem>>, vector<1x128xf32>
    %227 = vector.broadcast %226 : vector<1x128xf32> to vector<16x128xf32>
    %228 = arith.mulf %225, %227 : vector<16x128xf32>
    %c2_138 = arith.constant 2 : index
    %c0_139 = arith.constant 0 : index
    %229 = vector.load %arg9[%c2_138, %c0_139] : memref<4x128xf32, #tpu.memory_space<vmem>>, vector<1x128xf32>
    %230 = vector.broadcast %229 : vector<1x128xf32> to vector<16x128xf32>
    %231 = arith.addf %228, %230 : vector<16x128xf32>
    %232 = arith.truncf %231 : vector<16x128xf32> to vector<16x128xbf16>
    %c2_140 = arith.constant 2 : index
    %c0_141 = arith.constant 0 : index
    %c0_142 = arith.constant 0 : index
    %233 = vector.load %arg10[%c2_140, %c0_141, %c0_142] : memref<4x128x128xbf16, #tpu.memory_space<vmem>>, vector<1x128x128xbf16>
    %234 = vector.shape_cast %233 : vector<1x128x128xbf16> to vector<128x128xbf16>
    %cst_143 = arith.constant dense<0.000000e+00> : vector<16x128xf32>
    %235 = tpu.matmul %232, %234, %cst_143 {dimension_numbers = #tpu.dot_dimension_numbers<[1], [0], [0], [1], [0, 0, 1, 1], [], []>} : vector<16x128xbf16>, vector<128x128xbf16>, vector<16x128xf32> -> vector<16x128xf32>
    %c2_144 = arith.constant 2 : index
    %c0_145 = arith.constant 0 : index
    %236 = vector.load %arg11[%c2_144, %c0_145] : memref<4x128xf32, #tpu.memory_space<vmem>>, vector<1x128xf32>
    %237 = vector.broadcast %236 : vector<1x128xf32> to vector<16x128xf32>
    %238 = arith.addf %235, %237 : vector<16x128xf32>
    %cst_146 = arith.constant 0.000000e+00 : f32
    %239 = vector.broadcast %cst_146 : f32 to vector<16x128xf32>
    %240 = arith.maximumf %238, %239 : vector<16x128xf32>
    %241 = arith.truncf %240 : vector<16x128xf32> to vector<16x128xbf16>
    %c2_147 = arith.constant 2 : index
    %c0_148 = arith.constant 0 : index
    %c0_149 = arith.constant 0 : index
    %242 = vector.load %arg12[%c2_147, %c0_148, %c0_149] : memref<4x128x128xbf16, #tpu.memory_space<vmem>>, vector<1x128x128xbf16>
    %243 = vector.shape_cast %242 : vector<1x128x128xbf16> to vector<128x128xbf16>
    %cst_150 = arith.constant dense<0.000000e+00> : vector<16x128xf32>
    %244 = tpu.matmul %241, %243, %cst_150 {dimension_numbers = #tpu.dot_dimension_numbers<[1], [0], [0], [1], [0, 0, 1, 1], [], []>} : vector<16x128xbf16>, vector<128x128xbf16>, vector<16x128xf32> -> vector<16x128xf32>
    %c2_151 = arith.constant 2 : index
    %c0_152 = arith.constant 0 : index
    %245 = vector.load %arg13[%c2_151, %c0_152] : memref<4x128xf32, #tpu.memory_space<vmem>>, vector<1x128xf32>
    %246 = vector.broadcast %245 : vector<1x128xf32> to vector<16x128xf32>
    %247 = arith.addf %244, %246 : vector<16x128xf32>
    %248 = arith.addf %231, %247 : vector<16x128xf32>
    %c0_153 = arith.constant 0 : index
    %c0_154 = arith.constant 0 : index
    %249 = vector.load %arg3[%c0_153, %c0_154] : memref<128x128xf32, #tpu.memory_space<vmem>>, vector<128x128xf32>
    %cst_155 = arith.constant dense<0.000000e+00> : vector<16x128xf32>
    %250 = tpu.matmul %248, %249, %cst_155 {dimension_numbers = #tpu.dot_dimension_numbers<[1], [0], [0], [1], [0, 0, 1, 1], [], []>} : vector<16x128xf32>, vector<128x128xf32>, vector<16x128xf32> -> vector<16x128xf32>
    %251 = arith.mulf %248, %248 : vector<16x128xf32>
    %c0_156 = arith.constant 0 : index
    %c0_157 = arith.constant 0 : index
    %252 = vector.load %arg3[%c0_156, %c0_157] : memref<128x128xf32, #tpu.memory_space<vmem>>, vector<128x128xf32>
    %cst_158 = arith.constant dense<0.000000e+00> : vector<16x128xf32>
    %253 = tpu.matmul %251, %252, %cst_158 {dimension_numbers = #tpu.dot_dimension_numbers<[1], [0], [0], [1], [0, 0, 1, 1], [], []>} : vector<16x128xf32>, vector<128x128xf32>, vector<16x128xf32> -> vector<16x128xf32>
    %254 = arith.mulf %250, %250 : vector<16x128xf32>
    %255 = arith.subf %253, %254 : vector<16x128xf32>
    %256 = arith.subf %248, %250 : vector<16x128xf32>
    %cst_159 = arith.constant 9.99999974E-6 : f32
    %257 = vector.broadcast %cst_159 : f32 to vector<16x128xf32>
    %258 = arith.addf %255, %257 : vector<16x128xf32>
    %259 = math.rsqrt %258 : vector<16x128xf32>
    %260 = arith.mulf %256, %259 : vector<16x128xf32>
    %c2_160 = arith.constant 2 : index
    %c0_161 = arith.constant 0 : index
    %261 = vector.load %arg14[%c2_160, %c0_161] : memref<4x128xf32, #tpu.memory_space<vmem>>, vector<1x128xf32>
    %262 = vector.broadcast %261 : vector<1x128xf32> to vector<16x128xf32>
    %263 = arith.mulf %260, %262 : vector<16x128xf32>
    %c2_162 = arith.constant 2 : index
    %c0_163 = arith.constant 0 : index
    %264 = vector.load %arg15[%c2_162, %c0_163] : memref<4x128xf32, #tpu.memory_space<vmem>>, vector<1x128xf32>
    %265 = vector.broadcast %264 : vector<1x128xf32> to vector<16x128xf32>
    %266 = arith.addf %263, %265 : vector<16x128xf32>
    %267 = arith.truncf %266 : vector<16x128xf32> to vector<16x128xbf16>
    %c3 = arith.constant 3 : index
    %c0_164 = arith.constant 0 : index
    %c0_165 = arith.constant 0 : index
    %268 = vector.load %arg4[%c3, %c0_164, %c0_165] : memref<4x128x384xbf16, #tpu.memory_space<vmem>>, vector<1x128x384xbf16>
    %269 = vector.shape_cast %268 : vector<1x128x384xbf16> to vector<128x384xbf16>
    %cst_166 = arith.constant dense<0.000000e+00> : vector<16x384xf32>
    %270 = tpu.matmul %267, %269, %cst_166 {dimension_numbers = #tpu.dot_dimension_numbers<[1], [0], [0], [1], [0, 0, 1, 1], [], []>} : vector<16x128xbf16>, vector<128x384xbf16>, vector<16x384xf32> -> vector<16x384xf32>
    %c3_167 = arith.constant 3 : index
    %c0_168 = arith.constant 0 : index
    %271 = vector.load %arg5[%c3_167, %c0_168] : memref<4x384xf32, #tpu.memory_space<vmem>>, vector<1x384xf32>
    %272 = vector.broadcast %271 : vector<1x384xf32> to vector<16x384xf32>
    %273 = arith.addf %270, %272 : vector<16x384xf32>
    %274 = vector.extract_strided_slice %273 {offsets = [0, 0], sizes = [16, 128], strides = [1, 1]} : vector<16x384xf32> to vector<16x128xf32>
    %275 = vector.extract_strided_slice %273 {offsets = [0, 128], sizes = [16, 128], strides = [1, 1]} : vector<16x384xf32> to vector<16x128xf32>
    %276 = vector.extract_strided_slice %273 {offsets = [0, 256], sizes = [16, 128], strides = [1, 1]} : vector<16x384xf32> to vector<16x128xf32>
    %c64_i32_169 = arith.constant 64 : i32
    %277 = tpu.dynamic_rotate %275 by %c64_i32_169 dim 1 : vector<16x128xf32>, i32 -> vector<16x128xf32>
    %c64_i32_170 = arith.constant 64 : i32
    %278 = tpu.dynamic_rotate %276 by %c64_i32_170 dim 1 : vector<16x128xf32>, i32 -> vector<16x128xf32>
    %279 = arith.subf %275, %277 : vector<16x128xf32>
    %280 = arith.mulf %274, %279 : vector<16x128xf32>
    %281 = arith.truncf %280 : vector<16x128xf32> to vector<16x128xbf16>
    %c0_171 = arith.constant 0 : index
    %c0_172 = arith.constant 0 : index
    %282 = vector.load %arg2[%c0_171, %c0_172] : memref<128x128xbf16, #tpu.memory_space<vmem>>, vector<128x128xbf16>
    %cst_173 = arith.constant dense<0.000000e+00> : vector<16x128xf32>
    %283 = tpu.matmul %281, %282, %cst_173 {dimension_numbers = #tpu.dot_dimension_numbers<[1], [0], [0], [1], [0, 0, 1, 1], [], []>} : vector<16x128xbf16>, vector<128x128xbf16>, vector<16x128xf32> -> vector<16x128xf32>
    %cst_174 = arith.constant 5.000000e-01 : f32
    %284 = vector.broadcast %cst_174 : f32 to vector<16x128xf32>
    %285 = arith.mulf %284, %283 : vector<16x128xf32>
    %286 = math.tanh %285 : vector<16x128xf32>
    %cst_175 = arith.constant 5.000000e-01 : f32
    %287 = vector.broadcast %cst_175 : f32 to vector<16x128xf32>
    %288 = arith.mulf %287, %286 : vector<16x128xf32>
    %cst_176 = arith.constant 5.000000e-01 : f32
    %289 = vector.broadcast %cst_176 : f32 to vector<16x128xf32>
    %290 = arith.subf %289, %288 : vector<16x128xf32>
    %291 = arith.subf %278, %276 : vector<16x128xf32>
    %292 = arith.mulf %290, %291 : vector<16x128xf32>
    %293 = arith.addf %276, %292 : vector<16x128xf32>
    %294 = arith.truncf %293 : vector<16x128xf32> to vector<16x128xbf16>
    %c3_177 = arith.constant 3 : index
    %c0_178 = arith.constant 0 : index
    %c0_179 = arith.constant 0 : index
    %295 = vector.load %arg6[%c3_177, %c0_178, %c0_179] : memref<4x128x128xbf16, #tpu.memory_space<vmem>>, vector<1x128x128xbf16>
    %296 = vector.shape_cast %295 : vector<1x128x128xbf16> to vector<128x128xbf16>
    %cst_180 = arith.constant dense<0.000000e+00> : vector<16x128xf32>
    %297 = tpu.matmul %294, %296, %cst_180 {dimension_numbers = #tpu.dot_dimension_numbers<[1], [0], [0], [1], [0, 0, 1, 1], [], []>} : vector<16x128xbf16>, vector<128x128xbf16>, vector<16x128xf32> -> vector<16x128xf32>
    %c3_181 = arith.constant 3 : index
    %c0_182 = arith.constant 0 : index
    %298 = vector.load %arg7[%c3_181, %c0_182] : memref<4x128xf32, #tpu.memory_space<vmem>>, vector<1x128xf32>
    %299 = vector.broadcast %298 : vector<1x128xf32> to vector<16x128xf32>
    %300 = arith.addf %297, %299 : vector<16x128xf32>
    %301 = arith.addf %266, %300 : vector<16x128xf32>
    %c0_183 = arith.constant 0 : index
    %c0_184 = arith.constant 0 : index
    %302 = vector.load %arg3[%c0_183, %c0_184] : memref<128x128xf32, #tpu.memory_space<vmem>>, vector<128x128xf32>
    %cst_185 = arith.constant dense<0.000000e+00> : vector<16x128xf32>
    %303 = tpu.matmul %301, %302, %cst_185 {dimension_numbers = #tpu.dot_dimension_numbers<[1], [0], [0], [1], [0, 0, 1, 1], [], []>} : vector<16x128xf32>, vector<128x128xf32>, vector<16x128xf32> -> vector<16x128xf32>
    %304 = arith.mulf %301, %301 : vector<16x128xf32>
    %c0_186 = arith.constant 0 : index
    %c0_187 = arith.constant 0 : index
    %305 = vector.load %arg3[%c0_186, %c0_187] : memref<128x128xf32, #tpu.memory_space<vmem>>, vector<128x128xf32>
    %cst_188 = arith.constant dense<0.000000e+00> : vector<16x128xf32>
    %306 = tpu.matmul %304, %305, %cst_188 {dimension_numbers = #tpu.dot_dimension_numbers<[1], [0], [0], [1], [0, 0, 1, 1], [], []>} : vector<16x128xf32>, vector<128x128xf32>, vector<16x128xf32> -> vector<16x128xf32>
    %307 = arith.mulf %303, %303 : vector<16x128xf32>
    %308 = arith.subf %306, %307 : vector<16x128xf32>
    %309 = arith.subf %301, %303 : vector<16x128xf32>
    %cst_189 = arith.constant 9.99999974E-6 : f32
    %310 = vector.broadcast %cst_189 : f32 to vector<16x128xf32>
    %311 = arith.addf %308, %310 : vector<16x128xf32>
    %312 = math.rsqrt %311 : vector<16x128xf32>
    %313 = arith.mulf %309, %312 : vector<16x128xf32>
    %c3_190 = arith.constant 3 : index
    %c0_191 = arith.constant 0 : index
    %314 = vector.load %arg8[%c3_190, %c0_191] : memref<4x128xf32, #tpu.memory_space<vmem>>, vector<1x128xf32>
    %315 = vector.broadcast %314 : vector<1x128xf32> to vector<16x128xf32>
    %316 = arith.mulf %313, %315 : vector<16x128xf32>
    %c3_192 = arith.constant 3 : index
    %c0_193 = arith.constant 0 : index
    %317 = vector.load %arg9[%c3_192, %c0_193] : memref<4x128xf32, #tpu.memory_space<vmem>>, vector<1x128xf32>
    %318 = vector.broadcast %317 : vector<1x128xf32> to vector<16x128xf32>
    %319 = arith.addf %316, %318 : vector<16x128xf32>
    %320 = arith.truncf %319 : vector<16x128xf32> to vector<16x128xbf16>
    %c3_194 = arith.constant 3 : index
    %c0_195 = arith.constant 0 : index
    %c0_196 = arith.constant 0 : index
    %321 = vector.load %arg10[%c3_194, %c0_195, %c0_196] : memref<4x128x128xbf16, #tpu.memory_space<vmem>>, vector<1x128x128xbf16>
    %322 = vector.shape_cast %321 : vector<1x128x128xbf16> to vector<128x128xbf16>
    %cst_197 = arith.constant dense<0.000000e+00> : vector<16x128xf32>
    %323 = tpu.matmul %320, %322, %cst_197 {dimension_numbers = #tpu.dot_dimension_numbers<[1], [0], [0], [1], [0, 0, 1, 1], [], []>} : vector<16x128xbf16>, vector<128x128xbf16>, vector<16x128xf32> -> vector<16x128xf32>
    %c3_198 = arith.constant 3 : index
    %c0_199 = arith.constant 0 : index
    %324 = vector.load %arg11[%c3_198, %c0_199] : memref<4x128xf32, #tpu.memory_space<vmem>>, vector<1x128xf32>
    %325 = vector.broadcast %324 : vector<1x128xf32> to vector<16x128xf32>
    %326 = arith.addf %323, %325 : vector<16x128xf32>
    %cst_200 = arith.constant 0.000000e+00 : f32
    %327 = vector.broadcast %cst_200 : f32 to vector<16x128xf32>
    %328 = arith.maximumf %326, %327 : vector<16x128xf32>
    %329 = arith.truncf %328 : vector<16x128xf32> to vector<16x128xbf16>
    %c3_201 = arith.constant 3 : index
    %c0_202 = arith.constant 0 : index
    %c0_203 = arith.constant 0 : index
    %330 = vector.load %arg12[%c3_201, %c0_202, %c0_203] : memref<4x128x128xbf16, #tpu.memory_space<vmem>>, vector<1x128x128xbf16>
    %331 = vector.shape_cast %330 : vector<1x128x128xbf16> to vector<128x128xbf16>
    %cst_204 = arith.constant dense<0.000000e+00> : vector<16x128xf32>
    %332 = tpu.matmul %329, %331, %cst_204 {dimension_numbers = #tpu.dot_dimension_numbers<[1], [0], [0], [1], [0, 0, 1, 1], [], []>} : vector<16x128xbf16>, vector<128x128xbf16>, vector<16x128xf32> -> vector<16x128xf32>
    %c3_205 = arith.constant 3 : index
    %c0_206 = arith.constant 0 : index
    %333 = vector.load %arg13[%c3_205, %c0_206] : memref<4x128xf32, #tpu.memory_space<vmem>>, vector<1x128xf32>
    %334 = vector.broadcast %333 : vector<1x128xf32> to vector<16x128xf32>
    %335 = arith.addf %332, %334 : vector<16x128xf32>
    %336 = arith.addf %319, %335 : vector<16x128xf32>
    %c0_207 = arith.constant 0 : index
    %c0_208 = arith.constant 0 : index
    %337 = vector.load %arg3[%c0_207, %c0_208] : memref<128x128xf32, #tpu.memory_space<vmem>>, vector<128x128xf32>
    %cst_209 = arith.constant dense<0.000000e+00> : vector<16x128xf32>
    %338 = tpu.matmul %336, %337, %cst_209 {dimension_numbers = #tpu.dot_dimension_numbers<[1], [0], [0], [1], [0, 0, 1, 1], [], []>} : vector<16x128xf32>, vector<128x128xf32>, vector<16x128xf32> -> vector<16x128xf32>
    %339 = arith.mulf %336, %336 : vector<16x128xf32>
    %c0_210 = arith.constant 0 : index
    %c0_211 = arith.constant 0 : index
    %340 = vector.load %arg3[%c0_210, %c0_211] : memref<128x128xf32, #tpu.memory_space<vmem>>, vector<128x128xf32>
    %cst_212 = arith.constant dense<0.000000e+00> : vector<16x128xf32>
    %341 = tpu.matmul %339, %340, %cst_212 {dimension_numbers = #tpu.dot_dimension_numbers<[1], [0], [0], [1], [0, 0, 1, 1], [], []>} : vector<16x128xf32>, vector<128x128xf32>, vector<16x128xf32> -> vector<16x128xf32>
    %342 = arith.mulf %338, %338 : vector<16x128xf32>
    %343 = arith.subf %341, %342 : vector<16x128xf32>
    %344 = arith.subf %336, %338 : vector<16x128xf32>
    %cst_213 = arith.constant 9.99999974E-6 : f32
    %345 = vector.broadcast %cst_213 : f32 to vector<16x128xf32>
    %346 = arith.addf %343, %345 : vector<16x128xf32>
    %347 = math.rsqrt %346 : vector<16x128xf32>
    %348 = arith.mulf %344, %347 : vector<16x128xf32>
    %c3_214 = arith.constant 3 : index
    %c0_215 = arith.constant 0 : index
    %349 = vector.load %arg14[%c3_214, %c0_215] : memref<4x128xf32, #tpu.memory_space<vmem>>, vector<1x128xf32>
    %350 = vector.broadcast %349 : vector<1x128xf32> to vector<16x128xf32>
    %351 = arith.mulf %348, %350 : vector<16x128xf32>
    %c3_216 = arith.constant 3 : index
    %c0_217 = arith.constant 0 : index
    %352 = vector.load %arg15[%c3_216, %c0_217] : memref<4x128xf32, #tpu.memory_space<vmem>>, vector<1x128xf32>
    %353 = vector.broadcast %352 : vector<1x128xf32> to vector<16x128xf32>
    %354 = arith.addf %351, %353 : vector<16x128xf32>
    %cst_218 = arith.constant 0.000000e+00 : f32
    %355 = vector.broadcast %cst_218 : f32 to vector<16x128xf32>
    %356 = arith.maximumf %354, %355 : vector<16x128xf32>
    %c0_219 = arith.constant 0 : index
    %c0_220 = arith.constant 0 : index
    %357 = vector.load %arg16[%c0_219, %c0_220] : memref<16x128xf32, #tpu.memory_space<vmem>>, vector<16x128xf32>
    tpu.vector_store %arg16[%c0_219, %c0_220], %356 {strides = array<i32>} : memref<16x128xf32, #tpu.memory_space<vmem>>, vector<16x128xf32>,
    return
  }
}

</mosaic_0001>

<llo_original>
// kernel: transformer_conv_model_forward.1
$region0: #{transformer_conv_model_forward.1}
  #allocation0 [shape = 'u32[]', space=smem, size = 0x4, offset = 0x4, fixed_abs, tag = 'smem constant byte address 0x4 - core index']
  #allocation1 [shape = 'u32[72,128]{1,0:T(1,128)}', space=vmem, size = 0x9000, scoped, tag = 'internal scratch']
  %s0 = inlined_call_operand.vmem [shape: f32[16,128], index: 0, kind: input, shape index: {}]
  %s1 = inlined_call_operand.vmem [shape: f32[16,128], index: 1, kind: input, shape index: {}]
  %s2 = inlined_call_operand.vmem [shape: bf16[128,128], index: 2, kind: input, shape index: {}]
  %s3 = inlined_call_operand.hbm [shape: f32[128,128], index: 3, kind: input, shape index: {}]
  %s4 = inlined_call_operand.hbm [shape: bf16[4,128,384], index: 4, kind: input, shape index: {}]
  %s5 = inlined_call_operand.vmem [shape: f32[4,384], index: 5, kind: input, shape index: {}]
  %s6 = inlined_call_operand.hbm [shape: bf16[4,128,128], index: 6, kind: input, shape index: {}]
  %s7 = inlined_call_operand.vmem [shape: f32[4,128], index: 7, kind: input, shape index: {}]
  %s8 = inlined_call_operand.vmem [shape: f32[4,128], index: 8, kind: input, shape index: {}]
  %s9 = inlined_call_operand.vmem [shape: f32[4,128], index: 9, kind: input, shape index: {}]
  %s10 = inlined_call_operand.hbm [shape: bf16[4,128,128], index: 10, kind: input, shape index: {}]
  %s11 = inlined_call_operand.vmem [shape: f32[4,128], index: 11, kind: input, shape index: {}]
  %s12 = inlined_call_operand.hbm [shape: bf16[4,128,128], index: 12, kind: input, shape index: {}]
  %s13 = inlined_call_operand.vmem [shape: f32[4,128], index: 13, kind: input, shape index: {}]
  %s14 = inlined_call_operand.vmem [shape: f32[4,128], index: 14, kind: input, shape index: {}]
  %s15 = inlined_call_operand.hbm [shape: f32[4,128], index: 15, kind: input, shape index: {}]
  %s16 = inlined_call_operand.vmem [shape: f32[16,128], index: 16, kind: output, shape index: {}]
  %s17 = sld [smem:[#allocation0]]
  $region98: #{transformer_conv_model_forward.1} parent=0
    _
  %s19 = ssub.s32 1, %s17
  %s20 = scalar_select 0, %s19, %s17
  $region1: #{transformer_conv_model_forward.1} parent=0
    #allocation2 [shape = 'u8[65536]{0}', space=vmem, size = 0x10000, scoped, tag = 'input window, operand 3, single buffered']
    #allocation3 [shape = 's32[1]{0}', space=sflag, size = 0x4, scoped, tag = 'scoped memory for transformer_conv_model_forward.1']
    #allocation4 [shape = 'u8[393216]{0}', space=vmem, size = 0x60000, scoped, tag = 'input window, operand 4, single buffered']
    #allocation5 [shape = 's32[1]{0}', space=sflag, size = 0x4, scoped, tag = 'scoped memory for transformer_conv_model_forward.1']
    #allocation6 [shape = 'u8[131072]{0}', space=vmem, size = 0x20000, scoped, tag = 'input window, operand 6, single buffered']
    #allocation7 [shape = 'u8[131072]{0}', space=vmem, size = 0x20000, scoped, tag = 'input window, operand 10, single buffered']
    #allocation8 [shape = 's32[1]{0}', space=sflag, size = 0x4, scoped, tag = 'scoped memory for transformer_conv_model_forward.1']
    #allocation9 [shape = 'u8[131072]{0}', space=vmem, size = 0x20000, scoped, tag = 'input window, operand 12, single buffered']
    #allocation10 [shape = 'u8[2048]{0}', space=vmem, size = 0x800, scoped, tag = 'input window, operand 15, single buffered']
    #allocation11 [shape = 's32[1]{0}', space=sflag, size = 0x4, scoped, tag = 'scoped memory for transformer_conv_model_forward.1']
    %21 = vsyncpa [#allocation3], 0
    %22 = vsyncpa [#allocation5], 0
    %23 = vsyncpa [#allocation8], 0
    %24 = vsyncpa [#allocation11], 0
    // Predicated region
    $region2: #{transformer_conv_model_forward.1} parent=1 // pred_check
      _
    $region3: #{transformer_conv_model_forward.1} parent=1 // pred_check_branch
      %26 = sbr.rel (0) target = $region5
    $region4: #{transformer_conv_model_forward.1} parent=1 // pred_region
      _
    $region5: #{transformer_conv_model_forward.1} parent=1 // pred_fallthru
      _
    // Predicated region
    $region6: #{transformer_conv_model_forward.1} parent=1 // pred_check
      _
    $region7: #{transformer_conv_model_forward.1} parent=1 // pred_check_branch
      %28 = sbr.rel (0) target = $region9
    $region8: #{transformer_conv_model_forward.1} parent=1 // pred_region
      _
    $region9: #{transformer_conv_model_forward.1} parent=1 // pred_fallthru
      _
    // Predicated region
    $region10: #{transformer_conv_model_forward.1} parent=1 // pred_check
      _
    $region11: #{transformer_conv_model_forward.1} parent=1 // pred_check_branch
      %30 = sbr.rel (0) target = $region13
    $region12: #{transformer_conv_model_forward.1} parent=1 // pred_region
      _
    $region13: #{transformer_conv_model_forward.1} parent=1 // pred_fallthru
      _
    // Predicated region
    $region14: #{transformer_conv_model_forward.1} parent=1 // pred_check
      _
    $region15: #{transformer_conv_model_forward.1} parent=1 // pred_check_branch
      %32 = sbr.rel (0) target = $region17
    $region16: #{transformer_conv_model_forward.1} parent=1 // pred_region
      %34 = vsyncadd [#allocation3], 0
      %s35 = sshll.u32 %s3, 4
      %s36 = int_to_ptr.hbm [resolvable:$true] %s35
      %s37 = sshll.u32 [#allocation2], 4
      %s38 = int_to_ptr.vmem [resolvable:$true] %s37
      %43 = dma.hbm_to_vmem [thread:$0]  %s36, 2048, %s38, [#allocation3], 128, 128, 8
    $region17: #{transformer_conv_model_forward.1} parent=1 // pred_fallthru
      _
    // Predicated region
    $region18: #{transformer_conv_model_forward.1} parent=1 // pred_check
      _
    $region19: #{transformer_conv_model_forward.1} parent=1 // pred_check_branch
      %45 = sbr.rel (0) target = $region21
    $region20: #{transformer_conv_model_forward.1} parent=1 // pred_region
      %47 = vsyncadd [#allocation5], 0
      %s48 = sshll.u32 %s4, 4
      %s49 = int_to_ptr.hbm [resolvable:$true] %s48
      %s50 = sshll.u32 [#allocation4], 4
      %s51 = int_to_ptr.vmem [resolvable:$true] %s50
      %56 = dma.hbm_to_vmem [thread:$0]  %s49, 12288, %s51, [#allocation5], 192, 192, 12
    $region21: #{transformer_conv_model_forward.1} parent=1 // pred_fallthru
      _
    // Predicated region
    $region22: #{transformer_conv_model_forward.1} parent=1 // pred_check
      _
    $region23: #{transformer_conv_model_forward.1} parent=1 // pred_check_branch
      %58 = sbr.rel (0) target = $region25
    $region24: #{transformer_conv_model_forward.1} parent=1 // pred_region
      _
    $region25: #{transformer_conv_model_forward.1} parent=1 // pred_fallthru
      _
    // Predicated region
    $region26: #{transformer_conv_model_forward.1} parent=1 // pred_check
      _
    $region27: #{transformer_conv_model_forward.1} parent=1 // pred_check_branch
      %60 = sbr.rel (0) target = $region29
    $region28: #{transformer_conv_model_forward.1} parent=1 // pred_region
      %62 = vsyncadd [#allocation5], 0
      %s63 = sshll.u32 %s6, 4
      %s64 = int_to_ptr.hbm [resolvable:$true] %s63
      %s65 = sshll.u32 [#allocation6], 4
      %s66 = int_to_ptr.vmem [resolvable:$true] %s65
      %71 = dma.hbm_to_vmem [thread:$0]  %s64, 4096, %s66, [#allocation5], 64, 64, 4
    $region29: #{transformer_conv_model_forward.1} parent=1 // pred_fallthru
      _
    // Predicated region
    $region30: #{transformer_conv_model_forward.1} parent=1 // pred_check
      _
    $region31: #{transformer_conv_model_forward.1} parent=1 // pred_check_branch
      %73 = sbr.rel (0) target = $region33
    $region32: #{transformer_conv_model_forward.1} parent=1 // pred_region
      _
    $region33: #{transformer_conv_model_forward.1} parent=1 // pred_fallthru
      _
    // Predicated region
    $region34: #{transformer_conv_model_forward.1} parent=1 // pred_check
      _
    $region35: #{transformer_conv_model_forward.1} parent=1 // pred_check_branch
      %75 = sbr.rel (0) target = $region37
    $region36: #{transformer_conv_model_forward.1} parent=1 // pred_region
      _
    $region37: #{transformer_conv_model_forward.1} parent=1 // pred_fallthru
      _
    // Predicated region
    $region38: #{transformer_conv_model_forward.1} parent=1 // pred_check
      _
    $region39: #{transformer_conv_model_forward.1} parent=1 // pred_check_branch
      %77 = sbr.rel (0) target = $region41
    $region40: #{transformer_conv_model_forward.1} parent=1 // pred_region
      _
    $region41: #{transformer_conv_model_forward.1} parent=1 // pred_fallthru
      _
    // Predicated region
    $region42: #{transformer_conv_model_forward.1} parent=1 // pred_check
      _
    $region43: #{transformer_conv_model_forward.1} parent=1 // pred_check_branch
      %79 = sbr.rel (0) target = $region45
    $region44: #{transformer_conv_model_forward.1} parent=1 // pred_region
      %81 = vsyncadd [#allocation8], 0
      %s82 = sshll.u32 %s10, 4
      %s83 = int_to_ptr.hbm [resolvable:$true] %s82
      %s84 = sshll.u32 [#allocation7], 4
      %s85 = int_to_ptr.vmem [resolvable:$true] %s84
      %90 = dma.hbm_to_vmem [thread:$0]  %s83, 4096, %s85, [#allocation8], 64, 64, 4
    $region45: #{transformer_conv_model_forward.1} parent=1 // pred_fallthru
      _
    // Predicated region
    $region46: #{transformer_conv_model_forward.1} parent=1 // pred_check
      _
    $region47: #{transformer_conv_model_forward.1} parent=1 // pred_check_branch
      %92 = sbr.rel (0) target = $region49
    $region48: #{transformer_conv_model_forward.1} parent=1 // pred_region
      _
    $region49: #{transformer_conv_model_forward.1} parent=1 // pred_fallthru
      _
    // Predicated region
    $region50: #{transformer_conv_model_forward.1} parent=1 // pred_check
      _
    $region51: #{transformer_conv_model_forward.1} parent=1 // pred_check_branch
      %94 = sbr.rel (0) target = $region53
    $region52: #{transformer_conv_model_forward.1} parent=1 // pred_region
      %96 = vsyncadd [#allocation8], 0
      %s97 = sshll.u32 %s12, 4
      %s98 = int_to_ptr.hbm [resolvable:$true] %s97
      %s99 = sshll.u32 [#allocation9], 4
      %s100 = int_to_ptr.vmem [resolvable:$true] %s99
      %105 = dma.hbm_to_vmem [thread:$0]  %s98, 4096, %s100, [#allocation8], 64, 64, 4
    $region53: #{transformer_conv_model_forward.1} parent=1 // pred_fallthru
      _
    // Predicated region
    $region54: #{transformer_conv_model_forward.1} parent=1 // pred_check
      _
    $region55: #{transformer_conv_model_forward.1} parent=1 // pred_check_branch
      %107 = sbr.rel (0) target = $region57
    $region56: #{transformer_conv_model_forward.1} parent=1 // pred_region
      _
    $region57: #{transformer_conv_model_forward.1} parent=1 // pred_fallthru
      _
    // Predicated region
    $region58: #{transformer_conv_model_forward.1} parent=1 // pred_check
      _
    $region59: #{transformer_conv_model_forward.1} parent=1 // pred_check_branch
      %109 = sbr.rel (0) target = $region61
    $region60: #{transformer_conv_model_forward.1} parent=1 // pred_region
      _
    $region61: #{transformer_conv_model_forward.1} parent=1 // pred_fallthru
      _
    // Predicated region
    $region62: #{transformer_conv_model_forward.1} parent=1 // pred_check
      _
    $region63: #{transformer_conv_model_forward.1} parent=1 // pred_check_branch
      %111 = sbr.rel (0) target = $region65
    $region64: #{transformer_conv_model_forward.1} parent=1 // pred_region
      %113 = vsyncadd [#allocation11], 0
      %s115 = sshll.u32 %s15, 4
      %s116 = int_to_ptr.hbm [resolvable:$true] %s115
      %s117 = sshll.u32 [#allocation10], 4
      %s118 = int_to_ptr.vmem [resolvable:$true] %s117
      %120 = dma.hbm_to_vmem [thread:$0]  %s116, 64, %s118, [#allocation11]
    $region65: #{transformer_conv_model_forward.1} parent=1 // pred_fallthru
      _
    // Predicated region
    $region66: #{transformer_conv_model_forward.1} parent=1 // pred_check
      _
    $region67: #{transformer_conv_model_forward.1} parent=1 // pred_check_branch
      %122 = sbr.rel (0) target = $region69
    $region68: #{transformer_conv_model_forward.1} parent=1 // pred_region
      %124 = dma.done [#allocation3], 2048
    $region69: #{transformer_conv_model_forward.1} parent=1 // pred_fallthru
      _
    // Predicated region
    $region70: #{transformer_conv_model_forward.1} parent=1 // pred_check
      _
    $region71: #{transformer_conv_model_forward.1} parent=1 // pred_check_branch
      %126 = sbr.rel (0) target = $region73
    $region72: #{transformer_conv_model_forward.1} parent=1 // pred_region
      %128 = dma.done [#allocation5], 12288
    $region73: #{transformer_conv_model_forward.1} parent=1 // pred_fallthru
      _
    // Predicated region
    $region74: #{transformer_conv_model_forward.1} parent=1 // pred_check
      _
    $region75: #{transformer_conv_model_forward.1} parent=1 // pred_check_branch
      %130 = sbr.rel (0) target = $region77
    $region76: #{transformer_conv_model_forward.1} parent=1 // pred_region
      %132 = dma.done [#allocation5], 4096
    $region77: #{transformer_conv_model_forward.1} parent=1 // pred_fallthru
      _
    // Predicated region
    $region78: #{transformer_conv_model_forward.1} parent=1 // pred_check
      _
    $region79: #{transformer_conv_model_forward.1} parent=1 // pred_check_branch
      %134 = sbr.rel (0) target = $region81
    $region80: #{transformer_conv_model_forward.1} parent=1 // pred_region
      %136 = dma.done [#allocation8], 4096
    $region81: #{transformer_conv_model_forward.1} parent=1 // pred_fallthru
      _
    // Predicated region
    $region82: #{transformer_conv_model_forward.1} parent=1 // pred_check
      _
    $region83: #{transformer_conv_model_forward.1} parent=1 // pred_check_branch
      %138 = sbr.rel (0) target = $region85
    $region84: #{transformer_conv_model_forward.1} parent=1 // pred_region
      %140 = dma.done [#allocation8], 4096
    $region85: #{transformer_conv_model_forward.1} parent=1 // pred_fallthru
      _
    // Predicated region
    $region86: #{transformer_conv_model_forward.1} parent=1 // pred_check
      _
    $region87: #{transformer_conv_model_forward.1} parent=1 // pred_check_branch
      %142 = sbr.rel (0) target = $region89
    $region88: #{transformer_conv_model_forward.1} parent=1 // pred_region
      %144 = dma.done [#allocation11], 64
    $region89: #{transformer_conv_model_forward.1} parent=1 // pred_fallthru
      _
    %v145 = vld [vmem:[%s0] sm:$0xff]
    %v146 = vld [vmem:[%s0 + $0x8] sm:$0xff]
    %v147 = vld [vmem:[%s1] sm:$0xff]
    %v148 = vld [vmem:[%s1 + $0x8] sm:$0xff]
    %v149 = vadd.f32 %v145, %v147
    %v150 = vadd.f32 %v146, %v148
    %v151 = vpack.c.bf16 %v150, %v149
    %v152 = vld [vmem:[#allocation4] sm:$0xff]
    %v153 = vld [vmem:[#allocation4 + $0x8] sm:$0xf]
    %v154 = vld [vmem:[#allocation4 + $0xc] sm:$0xff]
    %v155 = vld [vmem:[#allocation4 + $0x14] sm:$0xf]
    %v156 = vld [vmem:[#allocation4 + $0x18] sm:$0xff]
    %v157 = vld [vmem:[#allocation4 + $0x20] sm:$0xf]
    %v158 = vld [vmem:[#allocation4 + $0x24] sm:$0xff]
    %v159 = vld [vmem:[#allocation4 + $0x2c] sm:$0xf]
    %v160 = vld [vmem:[#allocation4 + $0x30] sm:$0xff]
    %v161 = vld [vmem:[#allocation4 + $0x38] sm:$0xf]
    %v162 = vld [vmem:[#allocation4 + $0x3c] sm:$0xff]
    %v163 = vld [vmem:[#allocation4 + $0x44] sm:$0xf]
    %v164 = vld [vmem:[#allocation4 + $0x48] sm:$0xff]
    %v165 = vld [vmem:[#allocation4 + $0x50] sm:$0xf]
    %v166 = vld [vmem:[#allocation4 + $0x54] sm:$0xff]
    %v167 = vld [vmem:[#allocation4 + $0x5c] sm:$0xf]
    %v168 = vld [vmem:[#allocation4 + $0x60] sm:$0xff]
    %v169 = vld [vmem:[#allocation4 + $0x68] sm:$0xf]
    %v170 = vld [vmem:[#allocation4 + $0x6c] sm:$0xff]
    %v171 = vld [vmem:[#allocation4 + $0x74] sm:$0xf]
    %v172 = vld [vmem:[#allocation4 + $0x78] sm:$0xff]
    %v173 = vld [vmem:[#allocation4 + $0x80] sm:$0xf]
    %v174 = vld [vmem:[#allocation4 + $0x84] sm:$0xff]
    %v175 = vld [vmem:[#allocation4 + $0x8c] sm:$0xf]
    %v176 = vld [vmem:[#allocation4 + $0x90] sm:$0xff]
    %v177 = vld [vmem:[#allocation4 + $0x98] sm:$0xf]
    %v178 = vld [vmem:[#allocation4 + $0x9c] sm:$0xff]
    %v179 = vld [vmem:[#allocation4 + $0xa4] sm:$0xf]
    %v180 = vld [vmem:[#allocation4 + $0xa8] sm:$0xff]
    %v181 = vld [vmem:[#allocation4 + $0xb0] sm:$0xf]
    %v182 = vld [vmem:[#allocation4 + $0xb4] sm:$0xff]
    %v183 = vld [vmem:[#allocation4 + $0xbc] sm:$0xf]
    %v184 = vld [vmem:[%s5] ss:$4 sm:$0x7]
    %v186 = vperm.slane %v184, 0
    %v187 = vperm.slane %v184, 1
    %v188 = vperm.slane %v184, 2
    %v224 = vunpack.c.l.b16 %v152
    %v225 = vunpack.c.h.b16 %v152
    %v226 = vunpack.c.l.b16 %v153
    %v227 = vunpack.c.l.b16 %v154
    %v228 = vunpack.c.h.b16 %v154
    %v229 = vunpack.c.l.b16 %v155
    %v230 = vunpack.c.l.b16 %v156
    %v231 = vunpack.c.h.b16 %v156
    %v232 = vunpack.c.l.b16 %v157
    %v233 = vunpack.c.l.b16 %v158
    %v234 = vunpack.c.h.b16 %v158
    %v235 = vunpack.c.l.b16 %v159
    %v236 = vunpack.c.l.b16 %v160
    %v237 = vunpack.c.h.b16 %v160
    %v238 = vunpack.c.l.b16 %v161
    %v239 = vunpack.c.l.b16 %v162
    %v240 = vunpack.c.h.b16 %v162
    %v241 = vunpack.c.l.b16 %v163
    %v242 = vunpack.c.l.b16 %v164
    %v243 = vunpack.c.h.b16 %v164
    %v244 = vunpack.c.l.b16 %v165
    %v245 = vunpack.c.l.b16 %v166
    %v246 = vunpack.c.h.b16 %v166
    %v247 = vunpack.c.l.b16 %v167
    %v248 = vunpack.c.l.b16 %v168
    %v249 = vunpack.c.h.b16 %v168
    %v250 = vunpack.c.l.b16 %v169
    %v251 = vunpack.c.l.b16 %v170
    %v252 = vunpack.c.h.b16 %v170
    %v253 = vunpack.c.l.b16 %v171
    %v254 = vunpack.c.l.b16 %v172
    %v255 = vunpack.c.h.b16 %v172
    %v256 = vunpack.c.l.b16 %v173
    %v257 = vunpack.c.l.b16 %v174
    %v258 = vunpack.c.h.b16 %v174
    %v259 = vunpack.c.l.b16 %v175
    %v260 = vunpack.c.l.b16 %v176
    %v261 = vunpack.c.h.b16 %v176
    %v262 = vunpack.c.l.b16 %v177
    %v263 = vunpack.c.l.b16 %v178
    %v264 = vunpack.c.h.b16 %v178
    %v265 = vunpack.c.l.b16 %v179
    %v266 = vunpack.c.l.b16 %v180
    %v267 = vunpack.c.h.b16 %v180
    %v268 = vunpack.c.l.b16 %v181
    %v269 = vunpack.c.l.b16 %v182
    %v270 = vunpack.c.h.b16 %v182
    %v271 = vunpack.c.l.b16 %v183
    %v272 = vpack.c.b16 %v227, %v224
    %v273 = vpack.c.b16 %v228, %v225
    %v274 = vpack.c.b16 %v229, %v226
    %v275 = vpack.c.b16 %v233, %v230
    %v276 = vpack.c.b16 %v234, %v231
    %v277 = vpack.c.b16 %v235, %v232
    %v278 = vpack.c.b16 %v239, %v236
    %v279 = vpack.c.b16 %v240, %v237
    %v280 = vpack.c.b16 %v241, %v238
    %v281 = vpack.c.b16 %v245, %v242
    %v282 = vpack.c.b16 %v246, %v243
    %v283 = vpack.c.b16 %v247, %v244
    %v284 = vpack.c.b16 %v251, %v248
    %v285 = vpack.c.b16 %v252, %v249
    %v286 = vpack.c.b16 %v253, %v250
    %v287 = vpack.c.b16 %v257, %v254
    %v288 = vpack.c.b16 %v258, %v255
    %v289 = vpack.c.b16 %v259, %v256
    %v290 = vpack.c.b16 %v263, %v260
    %v291 = vpack.c.b16 %v264, %v261
    %v292 = vpack.c.b16 %v265, %v262
    %v293 = vpack.c.b16 %v269, %v266
    %v294 = vpack.c.b16 %v270, %v267
    %v295 = vpack.c.b16 %v271, %v268
    %320 = vmatpush.bf16.msra.mxu0 %v293
    %321 = vmatpush.bf16.msra.mxu0 %v290
    %322 = vmatpush.bf16.msra.mxu0 %v287
    %323 = vmatpush.bf16.msra.mxu0 %v284
    %324 = vmatpush.bf16.msra.mxu0 %v281
    %325 = vmatpush.bf16.msra.mxu0 %v278
    %326 = vmatpush.bf16.msra.mxu0 %v275
    %327 = vmatpush.bf16.msra.mxu0 %v272
    %328 = vmatmul.bf16.gmra.mxu0 %v151
    %v329 = vpop.f32.mrf.mxu0
    %v330 = vadd.f32 %v186, %v329
    %v331 = vpop.f32.mrf.mxu0
    %v332 = vadd.f32 %v186, %v331
    %333 = vdwg.mxu0
    %334 = vmatpush.bf16.msra.mxu0 %v294
    %335 = vmatpush.bf16.msra.mxu0 %v291
    %336 = vmatpush.bf16.msra.mxu0 %v288
    %337 = vmatpush.bf16.msra.mxu0 %v285
    %338 = vmatpush.bf16.msra.mxu0 %v282
    %339 = vmatpush.bf16.msra.mxu0 %v279
    %340 = vmatpush.bf16.msra.mxu0 %v276
    %341 = vmatpush.bf16.msra.mxu0 %v273
    %342 = vmatmul.bf16.gmra.mxu0 %v151
    %v343 = vpop.f32.mrf.mxu0
    %v344 = vadd.f32 %v187, %v343
    %v345 = vpop.f32.mrf.mxu0
    %v346 = vadd.f32 %v187, %v345
    %347 = vdwg.mxu0
    %348 = vmatpush.bf16.msra.mxu0 %v295
    %349 = vmatpush.bf16.msra.mxu0 %v292
    %350 = vmatpush.bf16.msra.mxu0 %v289
    %351 = vmatpush.bf16.msra.mxu0 %v286
    %352 = vmatpush.bf16.msra.mxu0 %v283
    %353 = vmatpush.bf16.msra.mxu0 %v280
    %354 = vmatpush.bf16.msra.mxu0 %v277
    %355 = vmatpush.bf16.msra.mxu0 %v274
    %356 = vmatmul.bf16.gmra.mxu0 %v151
    %v357 = vpop.f32.mrf.mxu0
    %v358 = vadd.f32 %v188, %v357
    %v359 = vpop.f32.mrf.mxu0
    %v360 = vadd.f32 %v188, %v359
    %361 = vdwg.mxu0
    %362 = vrot.lane.b32.xlu0 %v344, 64
    %v363 = vpop.permute.xlu0 %362
    %364 = vrot.lane.b32.xlu0 %v346, 64
    %v365 = vpop.permute.xlu0 %364
    %366 = vrot.lane.b32.xlu0 %v358, 64
    %v367 = vpop.permute.xlu0 %366
    %368 = vrot.lane.b32.xlu0 %v360, 64
    %v369 = vpop.permute.xlu0 %368
    %v370 = vsub.f32 %v344, %v363
    %v371 = vsub.f32 %v346, %v365
    %v372 = vmul.f32 %v330, %v370
    %v373 = vmul.f32 %v332, %v371
    %v374 = vpack.c.bf16 %v373, %v372
    %v375 = vld [vmem:[%s2] sm:$0xf]
    %v376 = vld [vmem:[%s2 + $0x4] sm:$0xf]
    %v377 = vld [vmem:[%s2 + $0x8] sm:$0xf]
    %v378 = vld [vmem:[%s2 + $0xc] sm:$0xf]
    %v379 = vld [vmem:[%s2 + $0x10] sm:$0xf]
    %v380 = vld [vmem:[%s2 + $0x14] sm:$0xf]
    %v381 = vld [vmem:[%s2 + $0x18] sm:$0xf]
    %v382 = vld [vmem:[%s2 + $0x1c] sm:$0xf]
    %v383 = vld [vmem:[%s2 + $0x20] sm:$0xf]
    %v384 = vld [vmem:[%s2 + $0x24] sm:$0xf]
    %v385 = vld [vmem:[%s2 + $0x28] sm:$0xf]
    %v386 = vld [vmem:[%s2 + $0x2c] sm:$0xf]
    %v387 = vld [vmem:[%s2 + $0x30] sm:$0xf]
    %v388 = vld [vmem:[%s2 + $0x34] sm:$0xf]
    %v389 = vld [vmem:[%s2 + $0x38] sm:$0xf]
    %v390 = vld [vmem:[%s2 + $0x3c] sm:$0xf]
    %v407 = vunpack.c.l.b16 %v375
    %v408 = vunpack.c.l.b16 %v376
    %v409 = vunpack.c.l.b16 %v377
    %v410 = vunpack.c.l.b16 %v378
    %v411 = vunpack.c.l.b16 %v379
    %v412 = vunpack.c.l.b16 %v380
    %v413 = vunpack.c.l.b16 %v381
    %v414 = vunpack.c.l.b16 %v382
    %v415 = vunpack.c.l.b16 %v383
    %v416 = vunpack.c.l.b16 %v384
    %v417 = vunpack.c.l.b16 %v385
    %v418 = vunpack.c.l.b16 %v386
    %v419 = vunpack.c.l.b16 %v387
    %v420 = vunpack.c.l.b16 %v388
    %v421 = vunpack.c.l.b16 %v389
    %v422 = vunpack.c.l.b16 %v390
    %v423 = vpack.c.b16 %v408, %v407
    %v424 = vpack.c.b16 %v410, %v409
    %v425 = vpack.c.b16 %v412, %v411
    %v426 = vpack.c.b16 %v414, %v413
    %v427 = vpack.c.b16 %v416, %v415
    %v428 = vpack.c.b16 %v418, %v417
    %v429 = vpack.c.b16 %v420, %v419
    %v430 = vpack.c.b16 %v422, %v421
    %439 = vmatpush.bf16.msra.mxu0 %v430
    %440 = vmatpush.bf16.msra.mxu0 %v429
    %441 = vmatpush.bf16.msra.mxu0 %v428
    %442 = vmatpush.bf16.msra.mxu0 %v427
    %443 = vmatpush.bf16.msra.mxu0 %v426
    %444 = vmatpush.bf16.msra.mxu0 %v425
    %445 = vmatpush.bf16.msra.mxu0 %v424
    %446 = vmatpush.bf16.msra.mxu0 %v423
    %447 = vmatmul.bf16.gmra.mxu0 %v374
    %v448 = vpop.f32.mrf.mxu0
    %v449 = vadd.f32 0.0, %v448
    %v450 = vpop.f32.mrf.mxu0
    %v451 = vadd.f32 0.0, %v450
    %452 = vdwg.mxu0
    %v453 = vmul.f32 %v449, 0.5
    %v454 = vmul.f32 %v451, 0.5
    %v455 = vtanh.pop %v453
    %v456 = vtanh.pop %v454
    %v457 = vmul.f32 %v455, 0.5
    %v458 = vmul.f32 %v456, 0.5
    %v459 = vsub.f32 0.5, %v457
    %v460 = vsub.f32 0.5, %v458
    %v461 = vsub.f32 %v367, %v358
    %v462 = vsub.f32 %v369, %v360
    %v463 = vmul.f32 %v459, %v461
    %v464 = vmul.f32 %v460, %v462
    %v465 = vadd.f32 %v358, %v463
    %v466 = vadd.f32 %v360, %v464
    %v467 = vpack.c.bf16 %v466, %v465
    %v468 = vld [vmem:[#allocation6] sm:$0xf]
    %v469 = vld [vmem:[#allocation6 + $0x4] sm:$0xf]
    %v470 = vld [vmem:[#allocation6 + $0x8] sm:$0xf]
    %v471 = vld [vmem:[#allocation6 + $0xc] sm:$0xf]
    %v472 = vld [vmem:[#allocation6 + $0x10] sm:$0xf]
    %v473 = vld [vmem:[#allocation6 + $0x14] sm:$0xf]
    %v474 = vld [vmem:[#allocation6 + $0x18] sm:$0xf]
    %v475 = vld [vmem:[#allocation6 + $0x1c] sm:$0xf]
    %v476 = vld [vmem:[#allocation6 + $0x20] sm:$0xf]
    %v477 = vld [vmem:[#allocation6 + $0x24] sm:$0xf]
    %v478 = vld [vmem:[#allocation6 + $0x28] sm:$0xf]
    %v479 = vld [vmem:[#allocation6 + $0x2c] sm:$0xf]
    %v480 = vld [vmem:[#allocation6 + $0x30] sm:$0xf]
    %v481 = vld [vmem:[#allocation6 + $0x34] sm:$0xf]
    %v482 = vld [vmem:[#allocation6 + $0x38] sm:$0xf]
    %v483 = vld [vmem:[#allocation6 + $0x3c] sm:$0xf]
    %v484 = vld [vmem:[%s7] sm:$0x1]
    %v485 = vperm.slane %v484, 0
    %v502 = vunpack.c.l.b16 %v468
    %v503 = vunpack.c.l.b16 %v469
    %v504 = vunpack.c.l.b16 %v470
    %v505 = vunpack.c.l.b16 %v471
    %v506 = vunpack.c.l.b16 %v472
    %v507 = vunpack.c.l.b16 %v473
    %v508 = vunpack.c.l.b16 %v474
    %v509 = vunpack.c.l.b16 %v475
    %v510 = vunpack.c.l.b16 %v476
    %v511 = vunpack.c.l.b16 %v477
    %v512 = vunpack.c.l.b16 %v478
    %v513 = vunpack.c.l.b16 %v479
    %v514 = vunpack.c.l.b16 %v480
    %v515 = vunpack.c.l.b16 %v481
    %v516 = vunpack.c.l.b16 %v482
    %v517 = vunpack.c.l.b16 %v483
    %v518 = vpack.c.b16 %v503, %v502
    %v519 = vpack.c.b16 %v505, %v504
    %v520 = vpack.c.b16 %v507, %v506
    %v521 = vpack.c.b16 %v509, %v508
    %v522 = vpack.c.b16 %v511, %v510
    %v523 = vpack.c.b16 %v513, %v512
    %v524 = vpack.c.b16 %v515, %v514
    %v525 = vpack.c.b16 %v517, %v516
    %534 = vmatpush.bf16.msra.mxu0 %v525
    %535 = vmatpush.bf16.msra.mxu0 %v524
    %536 = vmatpush.bf16.msra.mxu0 %v523
    %537 = vmatpush.bf16.msra.mxu0 %v522
    %538 = vmatpush.bf16.msra.mxu0 %v521
    %539 = vmatpush.bf16.msra.mxu0 %v520
    %540 = vmatpush.bf16.msra.mxu0 %v519
    %541 = vmatpush.bf16.msra.mxu0 %v518
    %542 = vmatmul.bf16.gmra.mxu0 %v467
    %v543 = vpop.f32.mrf.mxu0
    %v544 = vadd.f32 %v485, %v543
    %v545 = vpop.f32.mrf.mxu0
    %v546 = vadd.f32 %v485, %v545
    %547 = vdwg.mxu0
    %v548 = vadd.f32 %v149, %v544
    %v549 = vadd.f32 %v150, %v546
    %v550 = vld [vmem:[#allocation2] sm:$0xff]
    %v551 = vld [vmem:[#allocation2 + $0x8] sm:$0xff]
    %v552 = vld [vmem:[#allocation2 + $0x10] sm:$0xff]
    %v553 = vld [vmem:[#allocation2 + $0x18] sm:$0xff]
    %v554 = vld [vmem:[#allocation2 + $0x20] sm:$0xff]
    %v555 = vld [vmem:[#allocation2 + $0x28] sm:$0xff]
    %v556 = vld [vmem:[#allocation2 + $0x30] sm:$0xff]
    %v557 = vld [vmem:[#allocation2 + $0x38] sm:$0xff]
    %v558 = vld [vmem:[#allocation2 + $0x40] sm:$0xff]
    %v559 = vld [vmem:[#allocation2 + $0x48] sm:$0xff]
    %v560 = vld [vmem:[#allocation2 + $0x50] sm:$0xff]
    %v561 = vld [vmem:[#allocation2 + $0x58] sm:$0xff]
    %v562 = vld [vmem:[#allocation2 + $0x60] sm:$0xff]
    %v563 = vld [vmem:[#allocation2 + $0x68] sm:$0xff]
    %v564 = vld [vmem:[#allocation2 + $0x70] sm:$0xff]
    %v565 = vld [vmem:[#allocation2 + $0x78] sm:$0xff]
    %566 = vmatpush.msra.mxu0 %v565
    %567 = vmatpush.msra.mxu0 %v564
    %568 = vmatpush.msra.mxu0 %v563
    %569 = vmatpush.msra.mxu0 %v562
    %570 = vmatpush.msra.mxu0 %v561
    %571 = vmatpush.msra.mxu0 %v560
    %572 = vmatpush.msra.mxu0 %v559
    %573 = vmatpush.msra.mxu0 %v558
    %574 = vmatpush.msra.mxu0 %v557
    %575 = vmatpush.msra.mxu0 %v556
    %576 = vmatpush.msra.mxu0 %v555
    %577 = vmatpush.msra.mxu0 %v554
    %578 = vmatpush.msra.mxu0 %v553
    %579 = vmatpush.msra.mxu0 %v552
    %580 = vmatpush.msra.mxu0 %v551
    %581 = vmatpush.msra.mxu0 %v550
    %582 = vmatmul.f32.gmra.mxu0 %v548
    %v583 = vpop.f32.mrf.mxu0
    %v584 = vadd.f32 0.0, %v583
    %585 = vmatmul.f32.gmra.mxu0 %v549
    %v586 = vpop.f32.mrf.mxu0
    %v587 = vadd.f32 0.0, %v586
    %588 = vdwg.mxu0
    %v589 = vmul.f32 %v548, %v548
    %v590 = vmul.f32 %v549, %v549
    %591 = vmatpush.msra.mxu0 %v565
    %592 = vmatpush.msra.mxu0 %v564
    %593 = vmatpush.msra.mxu0 %v563
    %594 = vmatpush.msra.mxu0 %v562
    %595 = vmatpush.msra.mxu0 %v561
    %596 = vmatpush.msra.mxu0 %v560
    %597 = vmatpush.msra.mxu0 %v559
    %598 = vmatpush.msra.mxu0 %v558
    %599 = vmatpush.msra.mxu0 %v557
    %600 = vmatpush.msra.mxu0 %v556
    %601 = vmatpush.msra.mxu0 %v555
    %602 = vmatpush.msra.mxu0 %v554
    %603 = vmatpush.msra.mxu0 %v553
    %604 = vmatpush.msra.mxu0 %v552
    %605 = vmatpush.msra.mxu0 %v551
    %606 = vmatpush.msra.mxu0 %v550
    %607 = vmatmul.f32.gmra.mxu0 %v589
    %v608 = vpop.f32.mrf.mxu0
    %v609 = vadd.f32 0.0, %v608
    %610 = vmatmul.f32.gmra.mxu0 %v590
    %v611 = vpop.f32.mrf.mxu0
    %v612 = vadd.f32 0.0, %v611
    %613 = vdwg.mxu0
    %v614 = vmul.f32 %v584, %v584
    %v615 = vmul.f32 %v587, %v587
    %v616 = vsub.f32 %v609, %v614
    %v617 = vsub.f32 %v612, %v615
    %v618 = vsub.f32 %v548, %v584
    %v619 = vsub.f32 %v549, %v587
    %v620 = vadd.f32 %v616, 1e-05
    %v621 = vadd.f32 %v617, 1e-05
    %v622 = vrsqrt.pop %v620
    %v623 = vmul.f32 %v622, %v620
    %v624 = vmul.f32 %v623, %v622
    %v625 = vmul.f32 0.5, %v624
    %v626 = vsub.f32 1.5, %v625
    %v627 = vmul.f32 %v622, %v626
    %vm628 = vweird.f32 %v620
    %vm629 = vweird.f32 %v622
    %vm630 = vmor %vm628, %vm629
    %v631 = vsel %vm630, %v622, %v627
    %v632 = vrsqrt.pop %v621
    %v633 = vmul.f32 %v632, %v621
    %v634 = vmul.f32 %v633, %v632
    %v635 = vmul.f32 0.5, %v634
    %v636 = vsub.f32 1.5, %v635
    %v637 = vmul.f32 %v632, %v636
    %vm638 = vweird.f32 %v621
    %vm639 = vweird.f32 %v632
    %vm640 = vmor %vm638, %vm639
    %v641 = vsel %vm640, %v632, %v637
    %v642 = vmul.f32 %v618, %v631
    %v643 = vmul.f32 %v619, %v641
    %v644 = vld [vmem:[%s8] sm:$0x1]
    %v645 = vperm.slane %v644, 0
    %v646 = vmul.f32 %v642, %v645
    %v647 = vmul.f32 %v643, %v645
    %v648 = vld [vmem:[%s9] sm:$0x1]
    %v649 = vperm.slane %v648, 0
    %v650 = vadd.f32 %v646, %v649
    %v651 = vadd.f32 %v647, %v649
    %v652 = vpack.c.bf16 %v651, %v650
    %v653 = vld [vmem:[#allocation7] sm:$0xf]
    %v654 = vld [vmem:[#allocation7 + $0x4] sm:$0xf]
    %v655 = vld [vmem:[#allocation7 + $0x8] sm:$0xf]
    %v656 = vld [vmem:[#allocation7 + $0xc] sm:$0xf]
    %v657 = vld [vmem:[#allocation7 + $0x10] sm:$0xf]
    %v658 = vld [vmem:[#allocation7 + $0x14] sm:$0xf]
    %v659 = vld [vmem:[#allocation7 + $0x18] sm:$0xf]
    %v660 = vld [vmem:[#allocation7 + $0x1c] sm:$0xf]
    %v661 = vld [vmem:[#allocation7 + $0x20] sm:$0xf]
    %v662 = vld [vmem:[#allocation7 + $0x24] sm:$0xf]
    %v663 = vld [vmem:[#allocation7 + $0x28] sm:$0xf]
    %v664 = vld [vmem:[#allocation7 + $0x2c] sm:$0xf]
    %v665 = vld [vmem:[#allocation7 + $0x30] sm:$0xf]
    %v666 = vld [vmem:[#allocation7 + $0x34] sm:$0xf]
    %v667 = vld [vmem:[#allocation7 + $0x38] sm:$0xf]
    %v668 = vld [vmem:[#allocation7 + $0x3c] sm:$0xf]
    %v669 = vld [vmem:[%s11] sm:$0x1]
    %v670 = vperm.slane %v669, 0
    %v687 = vunpack.c.l.b16 %v653
    %v688 = vunpack.c.l.b16 %v654
    %v689 = vunpack.c.l.b16 %v655
    %v690 = vunpack.c.l.b16 %v656
    %v691 = vunpack.c.l.b16 %v657
    %v692 = vunpack.c.l.b16 %v658
    %v693 = vunpack.c.l.b16 %v659
    %v694 = vunpack.c.l.b16 %v660
    %v695 = vunpack.c.l.b16 %v661
    %v696 = vunpack.c.l.b16 %v662
    %v697 = vunpack.c.l.b16 %v663
    %v698 = vunpack.c.l.b16 %v664
    %v699 = vunpack.c.l.b16 %v665
    %v700 = vunpack.c.l.b16 %v666
    %v701 = vunpack.c.l.b16 %v667
    %v702 = vunpack.c.l.b16 %v668
    %v703 = vpack.c.b16 %v688, %v687
    %v704 = vpack.c.b16 %v690, %v689
    %v705 = vpack.c.b16 %v692, %v691
    %v706 = vpack.c.b16 %v694, %v693
    %v707 = vpack.c.b16 %v696, %v695
    %v708 = vpack.c.b16 %v698, %v697
    %v709 = vpack.c.b16 %v700, %v699
    %v710 = vpack.c.b16 %v702, %v701
    %719 = vmatpush.bf16.msra.mxu0 %v710
    %720 = vmatpush.bf16.msra.mxu0 %v709
    %721 = vmatpush.bf16.msra.mxu0 %v708
    %722 = vmatpush.bf16.msra.mxu0 %v707
    %723 = vmatpush.bf16.msra.mxu0 %v706
    %724 = vmatpush.bf16.msra.mxu0 %v705
    %725 = vmatpush.bf16.msra.mxu0 %v704
    %726 = vmatpush.bf16.msra.mxu0 %v703
    %727 = vmatmul.bf16.gmra.mxu0 %v652
    %v728 = vpop.f32.mrf.mxu0
    %v729 = vadd.f32 %v670, %v728
    %v730 = vpop.f32.mrf.mxu0
    %v731 = vadd.f32 %v670, %v730
    %732 = vdwg.mxu0
    %v733 = vmax.f32 %v729, 0.0
    %v734 = vmax.f32 %v731, 0.0
    %v735 = vpack.c.bf16 %v734, %v733
    %v736 = vld [vmem:[#allocation9] sm:$0xf]
    %v737 = vld [vmem:[#allocation9 + $0x4] sm:$0xf]
    %v738 = vld [vmem:[#allocation9 + $0x8] sm:$0xf]
    %v739 = vld [vmem:[#allocation9 + $0xc] sm:$0xf]
    %v740 = vld [vmem:[#allocation9 + $0x10] sm:$0xf]
    %v741 = vld [vmem:[#allocation9 + $0x14] sm:$0xf]
    %v742 = vld [vmem:[#allocation9 + $0x18] sm:$0xf]
    %v743 = vld [vmem:[#allocation9 + $0x1c] sm:$0xf]
    %v744 = vld [vmem:[#allocation9 + $0x20] sm:$0xf]
    %v745 = vld [vmem:[#allocation9 + $0x24] sm:$0xf]
    %v746 = vld [vmem:[#allocation9 + $0x28] sm:$0xf]
    %v747 = vld [vmem:[#allocation9 + $0x2c] sm:$0xf]
    %v748 = vld [vmem:[#allocation9 + $0x30] sm:$0xf]
    %v749 = vld [vmem:[#allocation9 + $0x34] sm:$0xf]
    %v750 = vld [vmem:[#allocation9 + $0x38] sm:$0xf]
    %v751 = vld [vmem:[#allocation9 + $0x3c] sm:$0xf]
    %v752 = vld [vmem:[%s13] sm:$0x1]
    %v753 = vperm.slane %v752, 0
    %v770 = vunpack.c.l.b16 %v736
    %v771 = vunpack.c.l.b16 %v737
    %v772 = vunpack.c.l.b16 %v738
    %v773 = vunpack.c.l.b16 %v739
    %v774 = vunpack.c.l.b16 %v740
    %v775 = vunpack.c.l.b16 %v741
    %v776 = vunpack.c.l.b16 %v742
    %v777 = vunpack.c.l.b16 %v743
    %v778 = vunpack.c.l.b16 %v744
    %v779 = vunpack.c.l.b16 %v745
    %v780 = vunpack.c.l.b16 %v746
    %v781 = vunpack.c.l.b16 %v747
    %v782 = vunpack.c.l.b16 %v748
    %v783 = vunpack.c.l.b16 %v749
    %v784 = vunpack.c.l.b16 %v750
    %v785 = vunpack.c.l.b16 %v751
    %v786 = vpack.c.b16 %v771, %v770
    %v787 = vpack.c.b16 %v773, %v772
    %v788 = vpack.c.b16 %v775, %v774
    %v789 = vpack.c.b16 %v777, %v776
    %v790 = vpack.c.b16 %v779, %v778
    %v791 = vpack.c.b16 %v781, %v780
    %v792 = vpack.c.b16 %v783, %v782
    %v793 = vpack.c.b16 %v785, %v784
    %802 = vmatpush.bf16.msra.mxu0 %v793
    %803 = vmatpush.bf16.msra.mxu0 %v792
    %804 = vmatpush.bf16.msra.mxu0 %v791
    %805 = vmatpush.bf16.msra.mxu0 %v790
    %806 = vmatpush.bf16.msra.mxu0 %v789
    %807 = vmatpush.bf16.msra.mxu0 %v788
    %808 = vmatpush.bf16.msra.mxu0 %v787
    %809 = vmatpush.bf16.msra.mxu0 %v786
    %810 = vmatmul.bf16.gmra.mxu0 %v735
    %v811 = vpop.f32.mrf.mxu0
    %v812 = vadd.f32 %v753, %v811
    %v813 = vpop.f32.mrf.mxu0
    %v814 = vadd.f32 %v753, %v813
    %815 = vdwg.mxu0
    %v816 = vadd.f32 %v650, %v812
    %v817 = vadd.f32 %v651, %v814
    %818 = vmatpush.msra.mxu0 %v565
    %819 = vmatpush.msra.mxu0 %v564
    %820 = vmatpush.msra.mxu0 %v563
    %821 = vmatpush.msra.mxu0 %v562
    %822 = vmatpush.msra.mxu0 %v561
    %823 = vmatpush.msra.mxu0 %v560
    %824 = vmatpush.msra.mxu0 %v559
    %825 = vmatpush.msra.mxu0 %v558
    %826 = vmatpush.msra.mxu0 %v557
    %827 = vmatpush.msra.mxu0 %v556
    %828 = vmatpush.msra.mxu0 %v555
    %829 = vmatpush.msra.mxu0 %v554
    %830 = vmatpush.msra.mxu0 %v553
    %831 = vmatpush.msra.mxu0 %v552
    %832 = vmatpush.msra.mxu0 %v551
    %833 = vmatpush.msra.mxu0 %v550
    %834 = vmatmul.f32.gmra.mxu0 %v816
    %v835 = vpop.f32.mrf.mxu0
    %v836 = vadd.f32 0.0, %v835
    %837 = vmatmul.f32.gmra.mxu0 %v817
    %v838 = vpop.f32.mrf.mxu0
    %v839 = vadd.f32 0.0, %v838
    %840 = vdwg.mxu0
    %v841 = vmul.f32 %v816, %v816
    %v842 = vmul.f32 %v817, %v817
    %843 = vmatpush.msra.mxu0 %v565
    %844 = vmatpush.msra.mxu0 %v564
    %845 = vmatpush.msra.mxu0 %v563
    %846 = vmatpush.msra.mxu0 %v562
    %847 = vmatpush.msra.mxu0 %v561
    %848 = vmatpush.msra.mxu0 %v560
    %849 = vmatpush.msra.mxu0 %v559
    %850 = vmatpush.msra.mxu0 %v558
    %851 = vmatpush.msra.mxu0 %v557
    %852 = vmatpush.msra.mxu0 %v556
    %853 = vmatpush.msra.mxu0 %v555
    %854 = vmatpush.msra.mxu0 %v554
    %855 = vmatpush.msra.mxu0 %v553
    %856 = vmatpush.msra.mxu0 %v552
    %857 = vmatpush.msra.mxu0 %v551
    %858 = vmatpush.msra.mxu0 %v550
    %859 = vmatmul.f32.gmra.mxu0 %v841
    %v860 = vpop.f32.mrf.mxu0
    %v861 = vadd.f32 0.0, %v860
    %862 = vmatmul.f32.gmra.mxu0 %v842
    %v863 = vpop.f32.mrf.mxu0
    %v864 = vadd.f32 0.0, %v863
    %865 = vdwg.mxu0
    %v866 = vmul.f32 %v836, %v836
    %v867 = vmul.f32 %v839, %v839
    %v868 = vsub.f32 %v861, %v866
    %v869 = vsub.f32 %v864, %v867
    %v870 = vsub.f32 %v816, %v836
    %v871 = vsub.f32 %v817, %v839
    %v872 = vadd.f32 %v868, 1e-05
    %v873 = vadd.f32 %v869, 1e-05
    %v874 = vrsqrt.pop %v872
    %v875 = vmul.f32 %v874, %v872
    %v876 = vmul.f32 %v875, %v874
    %v877 = vmul.f32 0.5, %v876
    %v878 = vsub.f32 1.5, %v877
    %v879 = vmul.f32 %v874, %v878
    %vm880 = vweird.f32 %v872
    %vm881 = vweird.f32 %v874
    %vm882 = vmor %vm880, %vm881
    %v883 = vsel %vm882, %v874, %v879
    %v884 = vrsqrt.pop %v873
    %v885 = vmul.f32 %v884, %v873
    %v886 = vmul.f32 %v885, %v884
    %v887 = vmul.f32 0.5, %v886
    %v888 = vsub.f32 1.5, %v887
    %v889 = vmul.f32 %v884, %v888
    %vm890 = vweird.f32 %v873
    %vm891 = vweird.f32 %v884
    %vm892 = vmor %vm890, %vm891
    %v893 = vsel %vm892, %v884, %v889
    %v894 = vmul.f32 %v870, %v883
    %v895 = vmul.f32 %v871, %v893
    %v896 = vld [vmem:[%s14] sm:$0x1]
    %v897 = vperm.slane %v896, 0
    %v898 = vmul.f32 %v894, %v897
    %v899 = vmul.f32 %v895, %v897
    %v900 = vld [vmem:[#allocation10] sm:$0x1]
    %v901 = vperm.slane %v900, 0
    %v902 = vadd.f32 %v898, %v901
    %v903 = vadd.f32 %v899, %v901
    %v904 = vpack.c.bf16 %v903, %v902
    %s905 = scalar_lea.vmem [#allocation4], 192
    %v906 = vld [vmem:[%s905] sm:$0xff]
    %v907 = vld [vmem:[%s905 + $0x8] sm:$0xf]
    %v908 = vld [vmem:[%s905 + $0xc] sm:$0xff]
    %v909 = vld [vmem:[%s905 + $0x14] sm:$0xf]
    %v910 = vld [vmem:[%s905 + $0x18] sm:$0xff]
    %v911 = vld [vmem:[%s905 + $0x20] sm:$0xf]
    %v912 = vld [vmem:[%s905 + $0x24] sm:$0xff]
    %v913 = vld [vmem:[%s905 + $0x2c] sm:$0xf]
    %v914 = vld [vmem:[%s905 + $0x30] sm:$0xff]
    %v915 = vld [vmem:[%s905 + $0x38] sm:$0xf]
    %v916 = vld [vmem:[%s905 + $0x3c] sm:$0xff]
    %v917 = vld [vmem:[%s905 + $0x44] sm:$0xf]
    %v918 = vld [vmem:[%s905 + $0x48] sm:$0xff]
    %v919 = vld [vmem:[%s905 + $0x50] sm:$0xf]
    %v920 = vld [vmem:[%s905 + $0x54] sm:$0xff]
    %v921 = vld [vmem:[%s905 + $0x5c] sm:$0xf]
    %v922 = vld [vmem:[%s905 + $0x60] sm:$0xff]
    %v923 = vld [vmem:[%s905 + $0x68] sm:$0xf]
    %v924 = vld [vmem:[%s905 + $0x6c] sm:$0xff]
    %v925 = vld [vmem:[%s905 + $0x74] sm:$0xf]
    %v926 = vld [vmem:[%s905 + $0x78] sm:$0xff]
    %v927 = vld [vmem:[%s905 + $0x80] sm:$0xf]
    %v928 = vld [vmem:[%s905 + $0x84] sm:$0xff]
    %v929 = vld [vmem:[%s905 + $0x8c] sm:$0xf]
    %v930 = vld [vmem:[%s905 + $0x90] sm:$0xff]
    %v931 = vld [vmem:[%s905 + $0x98] sm:$0xf]
    %v932 = vld [vmem:[%s905 + $0x9c] sm:$0xff]
    %v933 = vld [vmem:[%s905 + $0xa4] sm:$0xf]
    %v934 = vld [vmem:[%s905 + $0xa8] sm:$0xff]
    %v935 = vld [vmem:[%s905 + $0xb0] sm:$0xf]
    %v936 = vld [vmem:[%s905 + $0xb4] sm:$0xff]
    %v937 = vld [vmem:[%s905 + $0xbc] sm:$0xf]
    %s938 = scalar_lea.vmem %s5, 1
    %v939 = vld [vmem:[%s938] ss:$4 sm:$0x7]
    %v941 = vperm.slane %v939, 0
    %v942 = vperm.slane %v939, 1
    %v943 = vperm.slane %v939, 2
    %v979 = vunpack.c.l.b16 %v906
    %v980 = vunpack.c.h.b16 %v906
    %v981 = vunpack.c.l.b16 %v907
    %v982 = vunpack.c.l.b16 %v908
    %v983 = vunpack.c.h.b16 %v908
    %v984 = vunpack.c.l.b16 %v909
    %v985 = vunpack.c.l.b16 %v910
    %v986 = vunpack.c.h.b16 %v910
    %v987 = vunpack.c.l.b16 %v911
    %v988 = vunpack.c.l.b16 %v912
    %v989 = vunpack.c.h.b16 %v912
    %v990 = vunpack.c.l.b16 %v913
    %v991 = vunpack.c.l.b16 %v914
    %v992 = vunpack.c.h.b16 %v914
    %v993 = vunpack.c.l.b16 %v915
    %v994 = vunpack.c.l.b16 %v916
    %v995 = vunpack.c.h.b16 %v916
    %v996 = vunpack.c.l.b16 %v917
    %v997 = vunpack.c.l.b16 %v918
    %v998 = vunpack.c.h.b16 %v918
    %v999 = vunpack.c.l.b16 %v919
    %v1000 = vunpack.c.l.b16 %v920
    %v1001 = vunpack.c.h.b16 %v920
    %v1002 = vunpack.c.l.b16 %v921
    %v1003 = vunpack.c.l.b16 %v922
    %v1004 = vunpack.c.h.b16 %v922
    %v1005 = vunpack.c.l.b16 %v923
    %v1006 = vunpack.c.l.b16 %v924
    %v1007 = vunpack.c.h.b16 %v924
    %v1008 = vunpack.c.l.b16 %v925
    %v1009 = vunpack.c.l.b16 %v926
    %v1010 = vunpack.c.h.b16 %v926
    %v1011 = vunpack.c.l.b16 %v927
    %v1012 = vunpack.c.l.b16 %v928
    %v1013 = vunpack.c.h.b16 %v928
    %v1014 = vunpack.c.l.b16 %v929
    %v1015 = vunpack.c.l.b16 %v930
    %v1016 = vunpack.c.h.b16 %v930
    %v1017 = vunpack.c.l.b16 %v931
    %v1018 = vunpack.c.l.b16 %v932
    %v1019 = vunpack.c.h.b16 %v932
    %v1020 = vunpack.c.l.b16 %v933
    %v1021 = vunpack.c.l.b16 %v934
    %v1022 = vunpack.c.h.b16 %v934
    %v1023 = vunpack.c.l.b16 %v935
    %v1024 = vunpack.c.l.b16 %v936
    %v1025 = vunpack.c.h.b16 %v936
    %v1026 = vunpack.c.l.b16 %v937
    %v1027 = vpack.c.b16 %v982, %v979
    %v1028 = vpack.c.b16 %v983, %v980
    %v1029 = vpack.c.b16 %v984, %v981
    %v1030 = vpack.c.b16 %v988, %v985
    %v1031 = vpack.c.b16 %v989, %v986
    %v1032 = vpack.c.b16 %v990, %v987
    %v1033 = vpack.c.b16 %v994, %v991
    %v1034 = vpack.c.b16 %v995, %v992
    %v1035 = vpack.c.b16 %v996, %v993
    %v1036 = vpack.c.b16 %v1000, %v997
    %v1037 = vpack.c.b16 %v1001, %v998
    %v1038 = vpack.c.b16 %v1002, %v999
    %v1039 = vpack.c.b16 %v1006, %v1003
    %v1040 = vpack.c.b16 %v1007, %v1004
    %v1041 = vpack.c.b16 %v1008, %v1005
    %v1042 = vpack.c.b16 %v1012, %v1009
    %v1043 = vpack.c.b16 %v1013, %v1010
    %v1044 = vpack.c.b16 %v1014, %v1011
    %v1045 = vpack.c.b16 %v1018, %v1015
    %v1046 = vpack.c.b16 %v1019, %v1016
    %v1047 = vpack.c.b16 %v1020, %v1017
    %v1048 = vpack.c.b16 %v1024, %v1021
    %v1049 = vpack.c.b16 %v1025, %v1022
    %v1050 = vpack.c.b16 %v1026, %v1023
    %1075 = vmatpush.bf16.msra.mxu0 %v1048
    %1076 = vmatpush.bf16.msra.mxu0 %v1045
    %1077 = vmatpush.bf16.msra.mxu0 %v1042
    %1078 = vmatpush.bf16.msra.mxu0 %v1039
    %1079 = vmatpush.bf16.msra.mxu0 %v1036
    %1080 = vmatpush.bf16.msra.mxu0 %v1033
    %1081 = vmatpush.bf16.msra.mxu0 %v1030
    %1082 = vmatpush.bf16.msra.mxu0 %v1027
    %1083 = vmatmul.bf16.gmra.mxu0 %v904
    %v1084 = vpop.f32.mrf.mxu0
    %v1085 = vadd.f32 %v941, %v1084
    %v1086 = vpop.f32.mrf.mxu0
    %v1087 = vadd.f32 %v941, %v1086
    %1088 = vdwg.mxu0
    %1089 = vmatpush.bf16.msra.mxu0 %v1049
    %1090 = vmatpush.bf16.msra.mxu0 %v1046
    %1091 = vmatpush.bf16.msra.mxu0 %v1043
    %1092 = vmatpush.bf16.msra.mxu0 %v1040
    %1093 = vmatpush.bf16.msra.mxu0 %v1037
    %1094 = vmatpush.bf16.msra.mxu0 %v1034
    %1095 = vmatpush.bf16.msra.mxu0 %v1031
    %1096 = vmatpush.bf16.msra.mxu0 %v1028
    %1097 = vmatmul.bf16.gmra.mxu0 %v904
    %v1098 = vpop.f32.mrf.mxu0
    %v1099 = vadd.f32 %v942, %v1098
    %v1100 = vpop.f32.mrf.mxu0
    %v1101 = vadd.f32 %v942, %v1100
    %1102 = vdwg.mxu0
    %1103 = vmatpush.bf16.msra.mxu0 %v1050
    %1104 = vmatpush.bf16.msra.mxu0 %v1047
    %1105 = vmatpush.bf16.msra.mxu0 %v1044
    %1106 = vmatpush.bf16.msra.mxu0 %v1041
    %1107 = vmatpush.bf16.msra.mxu0 %v1038
    %1108 = vmatpush.bf16.msra.mxu0 %v1035
    %1109 = vmatpush.bf16.msra.mxu0 %v1032
    %1110 = vmatpush.bf16.msra.mxu0 %v1029
    %1111 = vmatmul.bf16.gmra.mxu0 %v904
    %v1112 = vpop.f32.mrf.mxu0
    %v1113 = vadd.f32 %v943, %v1112
    %v1114 = vpop.f32.mrf.mxu0
    %v1115 = vadd.f32 %v943, %v1114
    %1116 = vdwg.mxu0
    %1117 = vrot.lane.b32.xlu0 %v1099, 64
    %v1118 = vpop.permute.xlu0 %1117
    %1119 = vrot.lane.b32.xlu0 %v1101, 64
    %v1120 = vpop.permute.xlu0 %1119
    %1121 = vrot.lane.b32.xlu0 %v1113, 64
    %v1122 = vpop.permute.xlu0 %1121
    %1123 = vrot.lane.b32.xlu0 %v1115, 64
    %v1124 = vpop.permute.xlu0 %1123
    %v1125 = vsub.f32 %v1099, %v1118
    %v1126 = vsub.f32 %v1101, %v1120
    %v1127 = vmul.f32 %v1085, %v1125
    %v1128 = vmul.f32 %v1087, %v1126
    %v1129 = vpack.c.bf16 %v1128, %v1127
    %1130 = vmatpush.bf16.msra.mxu0 %v430
    %1131 = vmatpush.bf16.msra.mxu0 %v429
    %1132 = vmatpush.bf16.msra.mxu0 %v428
    %1133 = vmatpush.bf16.msra.mxu0 %v427
    %1134 = vmatpush.bf16.msra.mxu0 %v426
    %1135 = vmatpush.bf16.msra.mxu0 %v425
    %1136 = vmatpush.bf16.msra.mxu0 %v424
    %1137 = vmatpush.bf16.msra.mxu0 %v423
    %1138 = vmatmul.bf16.gmra.mxu0 %v1129
    %v1139 = vpop.f32.mrf.mxu0
    %v1140 = vadd.f32 0.0, %v1139
    %v1141 = vpop.f32.mrf.mxu0
    %v1142 = vadd.f32 0.0, %v1141
    %1143 = vdwg.mxu0
    %v1144 = vmul.f32 %v1140, 0.5
    %v1145 = vmul.f32 %v1142, 0.5
    %v1146 = vtanh.pop %v1144
    %v1147 = vtanh.pop %v1145
    %v1148 = vmul.f32 %v1146, 0.5
    %v1149 = vmul.f32 %v1147, 0.5
    %v1150 = vsub.f32 0.5, %v1148
    %v1151 = vsub.f32 0.5, %v1149
    %v1152 = vsub.f32 %v1122, %v1113
    %v1153 = vsub.f32 %v1124, %v1115
    %v1154 = vmul.f32 %v1150, %v1152
    %v1155 = vmul.f32 %v1151, %v1153
    %v1156 = vadd.f32 %v1113, %v1154
    %v1157 = vadd.f32 %v1115, %v1155
    %v1158 = vpack.c.bf16 %v1157, %v1156
    %s1159 = scalar_lea.vmem [#allocation6], 64
    %v1160 = vld [vmem:[%s1159] sm:$0xf]
    %v1161 = vld [vmem:[%s1159 + $0x4] sm:$0xf]
    %v1162 = vld [vmem:[%s1159 + $0x8] sm:$0xf]
    %v1163 = vld [vmem:[%s1159 + $0xc] sm:$0xf]
    %v1164 = vld [vmem:[%s1159 + $0x10] sm:$0xf]
    %v1165 = vld [vmem:[%s1159 + $0x14] sm:$0xf]
    %v1166 = vld [vmem:[%s1159 + $0x18] sm:$0xf]
    %v1167 = vld [vmem:[%s1159 + $0x1c] sm:$0xf]
    %v1168 = vld [vmem:[%s1159 + $0x20] sm:$0xf]
    %v1169 = vld [vmem:[%s1159 + $0x24] sm:$0xf]
    %v1170 = vld [vmem:[%s1159 + $0x28] sm:$0xf]
    %v1171 = vld [vmem:[%s1159 + $0x2c] sm:$0xf]
    %v1172 = vld [vmem:[%s1159 + $0x30] sm:$0xf]
    %v1173 = vld [vmem:[%s1159 + $0x34] sm:$0xf]
    %v1174 = vld [vmem:[%s1159 + $0x38] sm:$0xf]
    %v1175 = vld [vmem:[%s1159 + $0x3c] sm:$0xf]
    %v1176 = vld [vmem:[%s7 + $0x1] sm:$0x1]
    %v1177 = vperm.slane %v1176, 0
    %v1194 = vunpack.c.l.b16 %v1160
    %v1195 = vunpack.c.l.b16 %v1161
    %v1196 = vunpack.c.l.b16 %v1162
    %v1197 = vunpack.c.l.b16 %v1163
    %v1198 = vunpack.c.l.b16 %v1164
    %v1199 = vunpack.c.l.b16 %v1165
    %v1200 = vunpack.c.l.b16 %v1166
    %v1201 = vunpack.c.l.b16 %v1167
    %v1202 = vunpack.c.l.b16 %v1168
    %v1203 = vunpack.c.l.b16 %v1169
    %v1204 = vunpack.c.l.b16 %v1170
    %v1205 = vunpack.c.l.b16 %v1171
    %v1206 = vunpack.c.l.b16 %v1172
    %v1207 = vunpack.c.l.b16 %v1173
    %v1208 = vunpack.c.l.b16 %v1174
    %v1209 = vunpack.c.l.b16 %v1175
    %v1210 = vpack.c.b16 %v1195, %v1194
    %v1211 = vpack.c.b16 %v1197, %v1196
    %v1212 = vpack.c.b16 %v1199, %v1198
    %v1213 = vpack.c.b16 %v1201, %v1200
    %v1214 = vpack.c.b16 %v1203, %v1202
    %v1215 = vpack.c.b16 %v1205, %v1204
    %v1216 = vpack.c.b16 %v1207, %v1206
    %v1217 = vpack.c.b16 %v1209, %v1208
    %1226 = vmatpush.bf16.msra.mxu0 %v1217
    %1227 = vmatpush.bf16.msra.mxu0 %v1216
    %1228 = vmatpush.bf16.msra.mxu0 %v1215
    %1229 = vmatpush.bf16.msra.mxu0 %v1214
    %1230 = vmatpush.bf16.msra.mxu0 %v1213
    %1231 = vmatpush.bf16.msra.mxu0 %v1212
    %1232 = vmatpush.bf16.msra.mxu0 %v1211
    %1233 = vmatpush.bf16.msra.mxu0 %v1210
    %1234 = vmatmul.bf16.gmra.mxu0 %v1158
    %v1235 = vpop.f32.mrf.mxu0
    %v1236 = vadd.f32 %v1177, %v1235
    %v1237 = vpop.f32.mrf.mxu0
    %v1238 = vadd.f32 %v1177, %v1237
    %1239 = vdwg.mxu0
    %v1240 = vadd.f32 %v902, %v1236
    %v1241 = vadd.f32 %v903, %v1238
    %1242 = vmatpush.msra.mxu0 %v565
    %1243 = vmatpush.msra.mxu0 %v564
    %1244 = vmatpush.msra.mxu0 %v563
    %1245 = vmatpush.msra.mxu0 %v562
    %1246 = vmatpush.msra.mxu0 %v561
    %1247 = vmatpush.msra.mxu0 %v560
    %1248 = vmatpush.msra.mxu0 %v559
    %1249 = vmatpush.msra.mxu0 %v558
    %1250 = vmatpush.msra.mxu0 %v557
    %1251 = vmatpush.msra.mxu0 %v556
    %1252 = vmatpush.msra.mxu0 %v555
    %1253 = vmatpush.msra.mxu0 %v554
    %1254 = vmatpush.msra.mxu0 %v553
    %1255 = vmatpush.msra.mxu0 %v552
    %1256 = vmatpush.msra.mxu0 %v551
    %1257 = vmatpush.msra.mxu0 %v550
    %1258 = vmatmul.f32.gmra.mxu0 %v1240
    %v1259 = vpop.f32.mrf.mxu0
    %v1260 = vadd.f32 0.0, %v1259
    %1261 = vmatmul.f32.gmra.mxu0 %v1241
    %v1262 = vpop.f32.mrf.mxu0
    %v1263 = vadd.f32 0.0, %v1262
    %1264 = vdwg.mxu0
    %v1265 = vmul.f32 %v1240, %v1240
    %v1266 = vmul.f32 %v1241, %v1241
    %1267 = vmatpush.msra.mxu0 %v565
    %1268 = vmatpush.msra.mxu0 %v564
    %1269 = vmatpush.msra.mxu0 %v563
    %1270 = vmatpush.msra.mxu0 %v562
    %1271 = vmatpush.msra.mxu0 %v561
    %1272 = vmatpush.msra.mxu0 %v560
    %1273 = vmatpush.msra.mxu0 %v559
    %1274 = vmatpush.msra.mxu0 %v558
    %1275 = vmatpush.msra.mxu0 %v557
    %1276 = vmatpush.msra.mxu0 %v556
    %1277 = vmatpush.msra.mxu0 %v555
    %1278 = vmatpush.msra.mxu0 %v554
    %1279 = vmatpush.msra.mxu0 %v553
    %1280 = vmatpush.msra.mxu0 %v552
    %1281 = vmatpush.msra.mxu0 %v551
    %1282 = vmatpush.msra.mxu0 %v550
    %1283 = vmatmul.f32.gmra.mxu0 %v1265
    %v1284 = vpop.f32.mrf.mxu0
    %v1285 = vadd.f32 0.0, %v1284
    %1286 = vmatmul.f32.gmra.mxu0 %v1266
    %v1287 = vpop.f32.mrf.mxu0
    %v1288 = vadd.f32 0.0, %v1287
    %1289 = vdwg.mxu0
    %v1290 = vmul.f32 %v1260, %v1260
    %v1291 = vmul.f32 %v1263, %v1263
    %v1292 = vsub.f32 %v1285, %v1290
    %v1293 = vsub.f32 %v1288, %v1291
    %v1294 = vsub.f32 %v1240, %v1260
    %v1295 = vsub.f32 %v1241, %v1263
    %v1296 = vadd.f32 %v1292, 1e-05
    %v1297 = vadd.f32 %v1293, 1e-05
    %v1298 = vrsqrt.pop %v1296
    %v1299 = vmul.f32 %v1298, %v1296
    %v1300 = vmul.f32 %v1299, %v1298
    %v1301 = vmul.f32 0.5, %v1300
    %v1302 = vsub.f32 1.5, %v1301
    %v1303 = vmul.f32 %v1298, %v1302
    %vm1304 = vweird.f32 %v1296
    %vm1305 = vweird.f32 %v1298
    %vm1306 = vmor %vm1304, %vm1305
    %v1307 = vsel %vm1306, %v1298, %v1303
    %v1308 = vrsqrt.pop %v1297
    %v1309 = vmul.f32 %v1308, %v1297
    %v1310 = vmul.f32 %v1309, %v1308
    %v1311 = vmul.f32 0.5, %v1310
    %v1312 = vsub.f32 1.5, %v1311
    %v1313 = vmul.f32 %v1308, %v1312
    %vm1314 = vweird.f32 %v1297
    %vm1315 = vweird.f32 %v1308
    %vm1316 = vmor %vm1314, %vm1315
    %v1317 = vsel %vm1316, %v1308, %v1313
    %v1318 = vmul.f32 %v1294, %v1307
    %v1319 = vmul.f32 %v1295, %v1317
    %v1320 = vld [vmem:[%s8 + $0x1] sm:$0x1]
    %v1321 = vperm.slane %v1320, 0
    %v1322 = vmul.f32 %v1318, %v1321
    %v1323 = vmul.f32 %v1319, %v1321
    %v1324 = vld [vmem:[%s9 + $0x1] sm:$0x1]
    %v1325 = vperm.slane %v1324, 0
    %v1326 = vadd.f32 %v1322, %v1325
    %v1327 = vadd.f32 %v1323, %v1325
    %v1328 = vpack.c.bf16 %v1327, %v1326
    %s1329 = scalar_lea.vmem [#allocation7], 64
    %v1330 = vld [vmem:[%s1329] sm:$0xf]
    %v1331 = vld [vmem:[%s1329 + $0x4] sm:$0xf]
    %v1332 = vld [vmem:[%s1329 + $0x8] sm:$0xf]
    %v1333 = vld [vmem:[%s1329 + $0xc] sm:$0xf]
    %v1334 = vld [vmem:[%s1329 + $0x10] sm:$0xf]
    %v1335 = vld [vmem:[%s1329 + $0x14] sm:$0xf]
    %v1336 = vld [vmem:[%s1329 + $0x18] sm:$0xf]
    %v1337 = vld [vmem:[%s1329 + $0x1c] sm:$0xf]
    %v1338 = vld [vmem:[%s1329 + $0x20] sm:$0xf]
    %v1339 = vld [vmem:[%s1329 + $0x24] sm:$0xf]
    %v1340 = vld [vmem:[%s1329 + $0x28] sm:$0xf]
    %v1341 = vld [vmem:[%s1329 + $0x2c] sm:$0xf]
    %v1342 = vld [vmem:[%s1329 + $0x30] sm:$0xf]
    %v1343 = vld [vmem:[%s1329 + $0x34] sm:$0xf]
    %v1344 = vld [vmem:[%s1329 + $0x38] sm:$0xf]
    %v1345 = vld [vmem:[%s1329 + $0x3c] sm:$0xf]
    %v1346 = vld [vmem:[%s11 + $0x1] sm:$0x1]
    %v1347 = vperm.slane %v1346, 0
    %v1364 = vunpack.c.l.b16 %v1330
    %v1365 = vunpack.c.l.b16 %v1331
    %v1366 = vunpack.c.l.b16 %v1332
    %v1367 = vunpack.c.l.b16 %v1333
    %v1368 = vunpack.c.l.b16 %v1334
    %v1369 = vunpack.c.l.b16 %v1335
    %v1370 = vunpack.c.l.b16 %v1336
    %v1371 = vunpack.c.l.b16 %v1337
    %v1372 = vunpack.c.l.b16 %v1338
    %v1373 = vunpack.c.l.b16 %v1339
    %v1374 = vunpack.c.l.b16 %v1340
    %v1375 = vunpack.c.l.b16 %v1341
    %v1376 = vunpack.c.l.b16 %v1342
    %v1377 = vunpack.c.l.b16 %v1343
    %v1378 = vunpack.c.l.b16 %v1344
    %v1379 = vunpack.c.l.b16 %v1345
    %v1380 = vpack.c.b16 %v1365, %v1364
    %v1381 = vpack.c.b16 %v1367, %v1366
    %v1382 = vpack.c.b16 %v1369, %v1368
    %v1383 = vpack.c.b16 %v1371, %v1370
    %v1384 = vpack.c.b16 %v1373, %v1372
    %v1385 = vpack.c.b16 %v1375, %v1374
    %v1386 = vpack.c.b16 %v1377, %v1376
    %v1387 = vpack.c.b16 %v1379, %v1378
    %1396 = vmatpush.bf16.msra.mxu0 %v1387
    %1397 = vmatpush.bf16.msra.mxu0 %v1386
    %1398 = vmatpush.bf16.msra.mxu0 %v1385
    %1399 = vmatpush.bf16.msra.mxu0 %v1384
    %1400 = vmatpush.bf16.msra.mxu0 %v1383
    %1401 = vmatpush.bf16.msra.mxu0 %v1382
    %1402 = vmatpush.bf16.msra.mxu0 %v1381
    %1403 = vmatpush.bf16.msra.mxu0 %v1380
    %1404 = vmatmul.bf16.gmra.mxu0 %v1328
    %v1405 = vpop.f32.mrf.mxu0
    %v1406 = vadd.f32 %v1347, %v1405
    %v1407 = vpop.f32.mrf.mxu0
    %v1408 = vadd.f32 %v1347, %v1407
    %1409 = vdwg.mxu0
    %v1410 = vmax.f32 %v1406, 0.0
    %v1411 = vmax.f32 %v1408, 0.0
    %v1412 = vpack.c.bf16 %v1411, %v1410
    %s1413 = scalar_lea.vmem [#allocation9], 64
    %v1414 = vld [vmem:[%s1413] sm:$0xf]
    %v1415 = vld [vmem:[%s1413 + $0x4] sm:$0xf]
    %v1416 = vld [vmem:[%s1413 + $0x8] sm:$0xf]
    %v1417 = vld [vmem:[%s1413 + $0xc] sm:$0xf]
    %v1418 = vld [vmem:[%s1413 + $0x10] sm:$0xf]
    %v1419 = vld [vmem:[%s1413 + $0x14] sm:$0xf]
    %v1420 = vld [vmem:[%s1413 + $0x18] sm:$0xf]
    %v1421 = vld [vmem:[%s1413 + $0x1c] sm:$0xf]
    %v1422 = vld [vmem:[%s1413 + $0x20] sm:$0xf]
    %v1423 = vld [vmem:[%s1413 + $0x24] sm:$0xf]
    %v1424 = vld [vmem:[%s1413 + $0x28] sm:$0xf]
    %v1425 = vld [vmem:[%s1413 + $0x2c] sm:$0xf]
    %v1426 = vld [vmem:[%s1413 + $0x30] sm:$0xf]
    %v1427 = vld [vmem:[%s1413 + $0x34] sm:$0xf]
    %v1428 = vld [vmem:[%s1413 + $0x38] sm:$0xf]
    %v1429 = vld [vmem:[%s1413 + $0x3c] sm:$0xf]
    %v1430 = vld [vmem:[%s13 + $0x1] sm:$0x1]
    %v1431 = vperm.slane %v1430, 0
    %v1448 = vunpack.c.l.b16 %v1414
    %v1449 = vunpack.c.l.b16 %v1415
    %v1450 = vunpack.c.l.b16 %v1416
    %v1451 = vunpack.c.l.b16 %v1417
    %v1452 = vunpack.c.l.b16 %v1418
    %v1453 = vunpack.c.l.b16 %v1419
    %v1454 = vunpack.c.l.b16 %v1420
    %v1455 = vunpack.c.l.b16 %v1421
    %v1456 = vunpack.c.l.b16 %v1422
    %v1457 = vunpack.c.l.b16 %v1423
    %v1458 = vunpack.c.l.b16 %v1424
    %v1459 = vunpack.c.l.b16 %v1425
    %v1460 = vunpack.c.l.b16 %v1426
    %v1461 = vunpack.c.l.b16 %v1427
    %v1462 = vunpack.c.l.b16 %v1428
    %v1463 = vunpack.c.l.b16 %v1429
    %v1464 = vpack.c.b16 %v1449, %v1448
    %v1465 = vpack.c.b16 %v1451, %v1450
    %v1466 = vpack.c.b16 %v1453, %v1452
    %v1467 = vpack.c.b16 %v1455, %v1454
    %v1468 = vpack.c.b16 %v1457, %v1456
    %v1469 = vpack.c.b16 %v1459, %v1458
    %v1470 = vpack.c.b16 %v1461, %v1460
    %v1471 = vpack.c.b16 %v1463, %v1462
    %1480 = vmatpush.bf16.msra.mxu0 %v1471
    %1481 = vmatpush.bf16.msra.mxu0 %v1470
    %1482 = vmatpush.bf16.msra.mxu0 %v1469
    %1483 = vmatpush.bf16.msra.mxu0 %v1468
    %1484 = vmatpush.bf16.msra.mxu0 %v1467
    %1485 = vmatpush.bf16.msra.mxu0 %v1466
    %1486 = vmatpush.bf16.msra.mxu0 %v1465
    %1487 = vmatpush.bf16.msra.mxu0 %v1464
    %1488 = vmatmul.bf16.gmra.mxu0 %v1412
    %v1489 = vpop.f32.mrf.mxu0
    %v1490 = vadd.f32 %v1431, %v1489
    %v1491 = vpop.f32.mrf.mxu0
    %v1492 = vadd.f32 %v1431, %v1491
    %1493 = vdwg.mxu0
    %v1494 = vadd.f32 %v1326, %v1490
    %v1495 = vadd.f32 %v1327, %v1492
    %1496 = vmatpush.msra.mxu0 %v565
    %1497 = vmatpush.msra.mxu0 %v564
    %1498 = vmatpush.msra.mxu0 %v563
    %1499 = vmatpush.msra.mxu0 %v562
    %1500 = vmatpush.msra.mxu0 %v561
    %1501 = vmatpush.msra.mxu0 %v560
    %1502 = vmatpush.msra.mxu0 %v559
    %1503 = vmatpush.msra.mxu0 %v558
    %1504 = vmatpush.msra.mxu0 %v557
    %1505 = vmatpush.msra.mxu0 %v556
    %1506 = vmatpush.msra.mxu0 %v555
    %1507 = vmatpush.msra.mxu0 %v554
    %1508 = vmatpush.msra.mxu0 %v553
    %1509 = vmatpush.msra.mxu0 %v552
    %1510 = vmatpush.msra.mxu0 %v551
    %1511 = vmatpush.msra.mxu0 %v550
    %1512 = vmatmul.f32.gmra.mxu0 %v1494
    %v1513 = vpop.f32.mrf.mxu0
    %v1514 = vadd.f32 0.0, %v1513
    %1515 = vmatmul.f32.gmra.mxu0 %v1495
    %v1516 = vpop.f32.mrf.mxu0
    %v1517 = vadd.f32 0.0, %v1516
    %1518 = vdwg.mxu0
    %v1519 = vmul.f32 %v1494, %v1494
    %v1520 = vmul.f32 %v1495, %v1495
    %1521 = vmatpush.msra.mxu0 %v565
    %1522 = vmatpush.msra.mxu0 %v564
    %1523 = vmatpush.msra.mxu0 %v563
    %1524 = vmatpush.msra.mxu0 %v562
    %1525 = vmatpush.msra.mxu0 %v561
    %1526 = vmatpush.msra.mxu0 %v560
    %1527 = vmatpush.msra.mxu0 %v559
    %1528 = vmatpush.msra.mxu0 %v558
    %1529 = vmatpush.msra.mxu0 %v557
    %1530 = vmatpush.msra.mxu0 %v556
    %1531 = vmatpush.msra.mxu0 %v555
    %1532 = vmatpush.msra.mxu0 %v554
    %1533 = vmatpush.msra.mxu0 %v553
    %1534 = vmatpush.msra.mxu0 %v552
    %1535 = vmatpush.msra.mxu0 %v551
    %1536 = vmatpush.msra.mxu0 %v550
    %1537 = vmatmul.f32.gmra.mxu0 %v1519
    %v1538 = vpop.f32.mrf.mxu0
    %v1539 = vadd.f32 0.0, %v1538
    %1540 = vmatmul.f32.gmra.mxu0 %v1520
    %v1541 = vpop.f32.mrf.mxu0
    %v1542 = vadd.f32 0.0, %v1541
    %1543 = vdwg.mxu0
    %v1544 = vmul.f32 %v1514, %v1514
    %v1545 = vmul.f32 %v1517, %v1517
    %v1546 = vsub.f32 %v1539, %v1544
    %v1547 = vsub.f32 %v1542, %v1545
    %v1548 = vsub.f32 %v1494, %v1514
    %v1549 = vsub.f32 %v1495, %v1517
    %v1550 = vadd.f32 %v1546, 1e-05
    %v1551 = vadd.f32 %v1547, 1e-05
    %v1552 = vrsqrt.pop %v1550
    %v1553 = vmul.f32 %v1552, %v1550
    %v1554 = vmul.f32 %v1553, %v1552
    %v1555 = vmul.f32 0.5, %v1554
    %v1556 = vsub.f32 1.5, %v1555
    %v1557 = vmul.f32 %v1552, %v1556
    %vm1558 = vweird.f32 %v1550
    %vm1559 = vweird.f32 %v1552
    %vm1560 = vmor %vm1558, %vm1559
    %v1561 = vsel %vm1560, %v1552, %v1557
    %v1562 = vrsqrt.pop %v1551
    %v1563 = vmul.f32 %v1562, %v1551
    %v1564 = vmul.f32 %v1563, %v1562
    %v1565 = vmul.f32 0.5, %v1564
    %v1566 = vsub.f32 1.5, %v1565
    %v1567 = vmul.f32 %v1562, %v1566
    %vm1568 = vweird.f32 %v1551
    %vm1569 = vweird.f32 %v1562
    %vm1570 = vmor %vm1568, %vm1569
    %v1571 = vsel %vm1570, %v1562, %v1567
    %v1572 = vmul.f32 %v1548, %v1561
    %v1573 = vmul.f32 %v1549, %v1571
    %v1574 = vld [vmem:[%s14 + $0x1] sm:$0x1]
    %v1575 = vperm.slane %v1574, 0
    %v1576 = vmul.f32 %v1572, %v1575
    %v1577 = vmul.f32 %v1573, %v1575
    %v1578 = vld [vmem:[#allocation10 + $0x1] sm:$0x1]
    %v1579 = vperm.slane %v1578, 0
    %v1580 = vadd.f32 %v1576, %v1579
    %v1581 = vadd.f32 %v1577, %v1579
    %v1582 = vpack.c.bf16 %v1581, %v1580
    %s1583 = scalar_lea.vmem [#allocation4], 384
    %v1584 = vld [vmem:[%s1583] sm:$0xff]
    %v1585 = vld [vmem:[%s1583 + $0x8] sm:$0xf]
    %v1586 = vld [vmem:[%s1583 + $0xc] sm:$0xff]
    %v1587 = vld [vmem:[%s1583 + $0x14] sm:$0xf]
    %v1588 = vld [vmem:[%s1583 + $0x18] sm:$0xff]
    %v1589 = vld [vmem:[%s1583 + $0x20] sm:$0xf]
    %v1590 = vld [vmem:[%s1583 + $0x24] sm:$0xff]
    %v1591 = vld [vmem:[%s1583 + $0x2c] sm:$0xf]
    %v1592 = vld [vmem:[%s1583 + $0x30] sm:$0xff]
    %v1593 = vld [vmem:[%s1583 + $0x38] sm:$0xf]
    %v1594 = vld [vmem:[%s1583 + $0x3c] sm:$0xff]
    %v1595 = vld [vmem:[%s1583 + $0x44] sm:$0xf]
    %v1596 = vld [vmem:[%s1583 + $0x48] sm:$0xff]
    %v1597 = vld [vmem:[%s1583 + $0x50] sm:$0xf]
    %v1598 = vld [vmem:[%s1583 + $0x54] sm:$0xff]
    %v1599 = vld [vmem:[%s1583 + $0x5c] sm:$0xf]
    %v1600 = vld [vmem:[%s1583 + $0x60] sm:$0xff]
    %v1601 = vld [vmem:[%s1583 + $0x68] sm:$0xf]
    %v1602 = vld [vmem:[%s1583 + $0x6c] sm:$0xff]
    %v1603 = vld [vmem:[%s1583 + $0x74] sm:$0xf]
    %v1604 = vld [vmem:[%s1583 + $0x78] sm:$0xff]
    %v1605 = vld [vmem:[%s1583 + $0x80] sm:$0xf]
    %v1606 = vld [vmem:[%s1583 + $0x84] sm:$0xff]
    %v1607 = vld [vmem:[%s1583 + $0x8c] sm:$0xf]
    %v1608 = vld [vmem:[%s1583 + $0x90] sm:$0xff]
    %v1609 = vld [vmem:[%s1583 + $0x98] sm:$0xf]
    %v1610 = vld [vmem:[%s1583 + $0x9c] sm:$0xff]
    %v1611 = vld [vmem:[%s1583 + $0xa4] sm:$0xf]
    %v1612 = vld [vmem:[%s1583 + $0xa8] sm:$0xff]
    %v1613 = vld [vmem:[%s1583 + $0xb0] sm:$0xf]
    %v1614 = vld [vmem:[%s1583 + $0xb4] sm:$0xff]
    %v1615 = vld [vmem:[%s1583 + $0xbc] sm:$0xf]
    %s1616 = scalar_lea.vmem %s5, 2
    %v1617 = vld [vmem:[%s1616] ss:$4 sm:$0x7]
    %v1619 = vperm.slane %v1617, 0
    %v1620 = vperm.slane %v1617, 1
    %v1621 = vperm.slane %v1617, 2
    %v1657 = vunpack.c.l.b16 %v1584
    %v1658 = vunpack.c.h.b16 %v1584
    %v1659 = vunpack.c.l.b16 %v1585
    %v1660 = vunpack.c.l.b16 %v1586
    %v1661 = vunpack.c.h.b16 %v1586
    %v1662 = vunpack.c.l.b16 %v1587
    %v1663 = vunpack.c.l.b16 %v1588
    %v1664 = vunpack.c.h.b16 %v1588
    %v1665 = vunpack.c.l.b16 %v1589
    %v1666 = vunpack.c.l.b16 %v1590
    %v1667 = vunpack.c.h.b16 %v1590
    %v1668 = vunpack.c.l.b16 %v1591
    %v1669 = vunpack.c.l.b16 %v1592
    %v1670 = vunpack.c.h.b16 %v1592
    %v1671 = vunpack.c.l.b16 %v1593
    %v1672 = vunpack.c.l.b16 %v1594
    %v1673 = vunpack.c.h.b16 %v1594
    %v1674 = vunpack.c.l.b16 %v1595
    %v1675 = vunpack.c.l.b16 %v1596
    %v1676 = vunpack.c.h.b16 %v1596
    %v1677 = vunpack.c.l.b16 %v1597
    %v1678 = vunpack.c.l.b16 %v1598
    %v1679 = vunpack.c.h.b16 %v1598
    %v1680 = vunpack.c.l.b16 %v1599
    %v1681 = vunpack.c.l.b16 %v1600
    %v1682 = vunpack.c.h.b16 %v1600
    %v1683 = vunpack.c.l.b16 %v1601
    %v1684 = vunpack.c.l.b16 %v1602
    %v1685 = vunpack.c.h.b16 %v1602
    %v1686 = vunpack.c.l.b16 %v1603
    %v1687 = vunpack.c.l.b16 %v1604
    %v1688 = vunpack.c.h.b16 %v1604
    %v1689 = vunpack.c.l.b16 %v1605
    %v1690 = vunpack.c.l.b16 %v1606
    %v1691 = vunpack.c.h.b16 %v1606
    %v1692 = vunpack.c.l.b16 %v1607
    %v1693 = vunpack.c.l.b16 %v1608
    %v1694 = vunpack.c.h.b16 %v1608
    %v1695 = vunpack.c.l.b16 %v1609
    %v1696 = vunpack.c.l.b16 %v1610
    %v1697 = vunpack.c.h.b16 %v1610
    %v1698 = vunpack.c.l.b16 %v1611
    %v1699 = vunpack.c.l.b16 %v1612
    %v1700 = vunpack.c.h.b16 %v1612
    %v1701 = vunpack.c.l.b16 %v1613
    %v1702 = vunpack.c.l.b16 %v1614
    %v1703 = vunpack.c.h.b16 %v1614
    %v1704 = vunpack.c.l.b16 %v1615
    %v1705 = vpack.c.b16 %v1660, %v1657
    %v1706 = vpack.c.b16 %v1661, %v1658
    %v1707 = vpack.c.b16 %v1662, %v1659
    %v1708 = vpack.c.b16 %v1666, %v1663
    %v1709 = vpack.c.b16 %v1667, %v1664
    %v1710 = vpack.c.b16 %v1668, %v1665
    %v1711 = vpack.c.b16 %v1672, %v1669
    %v1712 = vpack.c.b16 %v1673, %v1670
    %v1713 = vpack.c.b16 %v1674, %v1671
    %v1714 = vpack.c.b16 %v1678, %v1675
    %v1715 = vpack.c.b16 %v1679, %v1676
    %v1716 = vpack.c.b16 %v1680, %v1677
    %v1717 = vpack.c.b16 %v1684, %v1681
    %v1718 = vpack.c.b16 %v1685, %v1682
    %v1719 = vpack.c.b16 %v1686, %v1683
    %v1720 = vpack.c.b16 %v1690, %v1687
    %v1721 = vpack.c.b16 %v1691, %v1688
    %v1722 = vpack.c.b16 %v1692, %v1689
    %v1723 = vpack.c.b16 %v1696, %v1693
    %v1724 = vpack.c.b16 %v1697, %v1694
    %v1725 = vpack.c.b16 %v1698, %v1695
    %v1726 = vpack.c.b16 %v1702, %v1699
    %v1727 = vpack.c.b16 %v1703, %v1700
    %v1728 = vpack.c.b16 %v1704, %v1701
    %1753 = vmatpush.bf16.msra.mxu0 %v1726
    %1754 = vmatpush.bf16.msra.mxu0 %v1723
    %1755 = vmatpush.bf16.msra.mxu0 %v1720
    %1756 = vmatpush.bf16.msra.mxu0 %v1717
    %1757 = vmatpush.bf16.msra.mxu0 %v1714
    %1758 = vmatpush.bf16.msra.mxu0 %v1711
    %1759 = vmatpush.bf16.msra.mxu0 %v1708
    %1760 = vmatpush.bf16.msra.mxu0 %v1705
    %1761 = vmatmul.bf16.gmra.mxu0 %v1582
    %v1762 = vpop.f32.mrf.mxu0
    %v1763 = vadd.f32 %v1619, %v1762
    %v1764 = vpop.f32.mrf.mxu0
    %v1765 = vadd.f32 %v1619, %v1764
    %1766 = vdwg.mxu0
    %1767 = vmatpush.bf16.msra.mxu0 %v1727
    %1768 = vmatpush.bf16.msra.mxu0 %v1724
    %1769 = vmatpush.bf16.msra.mxu0 %v1721
    %1770 = vmatpush.bf16.msra.mxu0 %v1718
    %1771 = vmatpush.bf16.msra.mxu0 %v1715
    %1772 = vmatpush.bf16.msra.mxu0 %v1712
    %1773 = vmatpush.bf16.msra.mxu0 %v1709
    %1774 = vmatpush.bf16.msra.mxu0 %v1706
    %1775 = vmatmul.bf16.gmra.mxu0 %v1582
    %v1776 = vpop.f32.mrf.mxu0
    %v1777 = vadd.f32 %v1620, %v1776
    %v1778 = vpop.f32.mrf.mxu0
    %v1779 = vadd.f32 %v1620, %v1778
    %1780 = vdwg.mxu0
    %1781 = vmatpush.bf16.msra.mxu0 %v1728
    %1782 = vmatpush.bf16.msra.mxu0 %v1725
    %1783 = vmatpush.bf16.msra.mxu0 %v1722
    %1784 = vmatpush.bf16.msra.mxu0 %v1719
    %1785 = vmatpush.bf16.msra.mxu0 %v1716
    %1786 = vmatpush.bf16.msra.mxu0 %v1713
    %1787 = vmatpush.bf16.msra.mxu0 %v1710
    %1788 = vmatpush.bf16.msra.mxu0 %v1707
    %1789 = vmatmul.bf16.gmra.mxu0 %v1582
    %v1790 = vpop.f32.mrf.mxu0
    %v1791 = vadd.f32 %v1621, %v1790
    %v1792 = vpop.f32.mrf.mxu0
    %v1793 = vadd.f32 %v1621, %v1792
    %1794 = vdwg.mxu0
    %1795 = vrot.lane.b32.xlu0 %v1777, 64
    %v1796 = vpop.permute.xlu0 %1795
    %1797 = vrot.lane.b32.xlu0 %v1779, 64
    %v1798 = vpop.permute.xlu0 %1797
    %1799 = vrot.lane.b32.xlu0 %v1791, 64
    %v1800 = vpop.permute.xlu0 %1799
    %1801 = vrot.lane.b32.xlu0 %v1793, 64
    %v1802 = vpop.permute.xlu0 %1801
    %v1803 = vsub.f32 %v1777, %v1796
    %v1804 = vsub.f32 %v1779, %v1798
    %v1805 = vmul.f32 %v1763, %v1803
    %v1806 = vmul.f32 %v1765, %v1804
    %v1807 = vpack.c.bf16 %v1806, %v1805
    %1808 = vmatpush.bf16.msra.mxu0 %v430
    %1809 = vmatpush.bf16.msra.mxu0 %v429
    %1810 = vmatpush.bf16.msra.mxu0 %v428
    %1811 = vmatpush.bf16.msra.mxu0 %v427
    %1812 = vmatpush.bf16.msra.mxu0 %v426
    %1813 = vmatpush.bf16.msra.mxu0 %v425
    %1814 = vmatpush.bf16.msra.mxu0 %v424
    %1815 = vmatpush.bf16.msra.mxu0 %v423
    %1816 = vmatmul.bf16.gmra.mxu0 %v1807
    %v1817 = vpop.f32.mrf.mxu0
    %v1818 = vadd.f32 0.0, %v1817
    %v1819 = vpop.f32.mrf.mxu0
    %v1820 = vadd.f32 0.0, %v1819
    %1821 = vdwg.mxu0
    %v1822 = vmul.f32 %v1818, 0.5
    %v1823 = vmul.f32 %v1820, 0.5
    %v1824 = vtanh.pop %v1822
    %v1825 = vtanh.pop %v1823
    %v1826 = vmul.f32 %v1824, 0.5
    %v1827 = vmul.f32 %v1825, 0.5
    %v1828 = vsub.f32 0.5, %v1826
    %v1829 = vsub.f32 0.5, %v1827
    %v1830 = vsub.f32 %v1800, %v1791
    %v1831 = vsub.f32 %v1802, %v1793
    %v1832 = vmul.f32 %v1828, %v1830
    %v1833 = vmul.f32 %v1829, %v1831
    %v1834 = vadd.f32 %v1791, %v1832
    %v1835 = vadd.f32 %v1793, %v1833
    %v1836 = vpack.c.bf16 %v1835, %v1834
    %s1837 = scalar_lea.vmem [#allocation6], 128
    %v1838 = vld [vmem:[%s1837] sm:$0xf]
    %v1839 = vld [vmem:[%s1837 + $0x4] sm:$0xf]
    %v1840 = vld [vmem:[%s1837 + $0x8] sm:$0xf]
    %v1841 = vld [vmem:[%s1837 + $0xc] sm:$0xf]
    %v1842 = vld [vmem:[%s1837 + $0x10] sm:$0xf]
    %v1843 = vld [vmem:[%s1837 + $0x14] sm:$0xf]
    %v1844 = vld [vmem:[%s1837 + $0x18] sm:$0xf]
    %v1845 = vld [vmem:[%s1837 + $0x1c] sm:$0xf]
    %v1846 = vld [vmem:[%s1837 + $0x20] sm:$0xf]
    %v1847 = vld [vmem:[%s1837 + $0x24] sm:$0xf]
    %v1848 = vld [vmem:[%s1837 + $0x28] sm:$0xf]
    %v1849 = vld [vmem:[%s1837 + $0x2c] sm:$0xf]
    %v1850 = vld [vmem:[%s1837 + $0x30] sm:$0xf]
    %v1851 = vld [vmem:[%s1837 + $0x34] sm:$0xf]
    %v1852 = vld [vmem:[%s1837 + $0x38] sm:$0xf]
    %v1853 = vld [vmem:[%s1837 + $0x3c] sm:$0xf]
    %v1854 = vld [vmem:[%s7 + $0x2] sm:$0x1]
    %v1855 = vperm.slane %v1854, 0
    %v1872 = vunpack.c.l.b16 %v1838
    %v1873 = vunpack.c.l.b16 %v1839
    %v1874 = vunpack.c.l.b16 %v1840
    %v1875 = vunpack.c.l.b16 %v1841
    %v1876 = vunpack.c.l.b16 %v1842
    %v1877 = vunpack.c.l.b16 %v1843
    %v1878 = vunpack.c.l.b16 %v1844
    %v1879 = vunpack.c.l.b16 %v1845
    %v1880 = vunpack.c.l.b16 %v1846
    %v1881 = vunpack.c.l.b16 %v1847
    %v1882 = vunpack.c.l.b16 %v1848
    %v1883 = vunpack.c.l.b16 %v1849
    %v1884 = vunpack.c.l.b16 %v1850
    %v1885 = vunpack.c.l.b16 %v1851
    %v1886 = vunpack.c.l.b16 %v1852
    %v1887 = vunpack.c.l.b16 %v1853
    %v1888 = vpack.c.b16 %v1873, %v1872
    %v1889 = vpack.c.b16 %v1875, %v1874
    %v1890 = vpack.c.b16 %v1877, %v1876
    %v1891 = vpack.c.b16 %v1879, %v1878
    %v1892 = vpack.c.b16 %v1881, %v1880
    %v1893 = vpack.c.b16 %v1883, %v1882
    %v1894 = vpack.c.b16 %v1885, %v1884
    %v1895 = vpack.c.b16 %v1887, %v1886
    %1904 = vmatpush.bf16.msra.mxu0 %v1895
    %1905 = vmatpush.bf16.msra.mxu0 %v1894
    %1906 = vmatpush.bf16.msra.mxu0 %v1893
    %1907 = vmatpush.bf16.msra.mxu0 %v1892
    %1908 = vmatpush.bf16.msra.mxu0 %v1891
    %1909 = vmatpush.bf16.msra.mxu0 %v1890
    %1910 = vmatpush.bf16.msra.mxu0 %v1889
    %1911 = vmatpush.bf16.msra.mxu0 %v1888
    %1912 = vmatmul.bf16.gmra.mxu0 %v1836
    %v1913 = vpop.f32.mrf.mxu0
    %v1914 = vadd.f32 %v1855, %v1913
    %v1915 = vpop.f32.mrf.mxu0
    %v1916 = vadd.f32 %v1855, %v1915
    %1917 = vdwg.mxu0
    %v1918 = vadd.f32 %v1580, %v1914
    %v1919 = vadd.f32 %v1581, %v1916
    %1920 = vmatpush.msra.mxu0 %v565
    %1921 = vmatpush.msra.mxu0 %v564
    %1922 = vmatpush.msra.mxu0 %v563
    %1923 = vmatpush.msra.mxu0 %v562
    %1924 = vmatpush.msra.mxu0 %v561
    %1925 = vmatpush.msra.mxu0 %v560
    %1926 = vmatpush.msra.mxu0 %v559
    %1927 = vmatpush.msra.mxu0 %v558
    %1928 = vmatpush.msra.mxu0 %v557
    %1929 = vmatpush.msra.mxu0 %v556
    %1930 = vmatpush.msra.mxu0 %v555
    %1931 = vmatpush.msra.mxu0 %v554
    %1932 = vmatpush.msra.mxu0 %v553
    %1933 = vmatpush.msra.mxu0 %v552
    %1934 = vmatpush.msra.mxu0 %v551
    %1935 = vmatpush.msra.mxu0 %v550
    %1936 = vmatmul.f32.gmra.mxu0 %v1918
    %v1937 = vpop.f32.mrf.mxu0
    %v1938 = vadd.f32 0.0, %v1937
    %1939 = vmatmul.f32.gmra.mxu0 %v1919
    %v1940 = vpop.f32.mrf.mxu0
    %v1941 = vadd.f32 0.0, %v1940
    %1942 = vdwg.mxu0
    %v1943 = vmul.f32 %v1918, %v1918
    %v1944 = vmul.f32 %v1919, %v1919
    %1945 = vmatpush.msra.mxu0 %v565
    %1946 = vmatpush.msra.mxu0 %v564
    %1947 = vmatpush.msra.mxu0 %v563
    %1948 = vmatpush.msra.mxu0 %v562
    %1949 = vmatpush.msra.mxu0 %v561
    %1950 = vmatpush.msra.mxu0 %v560
    %1951 = vmatpush.msra.mxu0 %v559
    %1952 = vmatpush.msra.mxu0 %v558
    %1953 = vmatpush.msra.mxu0 %v557
    %1954 = vmatpush.msra.mxu0 %v556
    %1955 = vmatpush.msra.mxu0 %v555
    %1956 = vmatpush.msra.mxu0 %v554
    %1957 = vmatpush.msra.mxu0 %v553
    %1958 = vmatpush.msra.mxu0 %v552
    %1959 = vmatpush.msra.mxu0 %v551
    %1960 = vmatpush.msra.mxu0 %v550
    %1961 = vmatmul.f32.gmra.mxu0 %v1943
    %v1962 = vpop.f32.mrf.mxu0
    %v1963 = vadd.f32 0.0, %v1962
    %1964 = vmatmul.f32.gmra.mxu0 %v1944
    %v1965 = vpop.f32.mrf.mxu0
    %v1966 = vadd.f32 0.0, %v1965
    %1967 = vdwg.mxu0
    %v1968 = vmul.f32 %v1938, %v1938
    %v1969 = vmul.f32 %v1941, %v1941
    %v1970 = vsub.f32 %v1963, %v1968
    %v1971 = vsub.f32 %v1966, %v1969
    %v1972 = vsub.f32 %v1918, %v1938
    %v1973 = vsub.f32 %v1919, %v1941
    %v1974 = vadd.f32 %v1970, 1e-05
    %v1975 = vadd.f32 %v1971, 1e-05
    %v1976 = vrsqrt.pop %v1974
    %v1977 = vmul.f32 %v1976, %v1974
    %v1978 = vmul.f32 %v1977, %v1976
    %v1979 = vmul.f32 0.5, %v1978
    %v1980 = vsub.f32 1.5, %v1979
    %v1981 = vmul.f32 %v1976, %v1980
    %vm1982 = vweird.f32 %v1974
    %vm1983 = vweird.f32 %v1976
    %vm1984 = vmor %vm1982, %vm1983
    %v1985 = vsel %vm1984, %v1976, %v1981
    %v1986 = vrsqrt.pop %v1975
    %v1987 = vmul.f32 %v1986, %v1975
    %v1988 = vmul.f32 %v1987, %v1986
    %v1989 = vmul.f32 0.5, %v1988
    %v1990 = vsub.f32 1.5, %v1989
    %v1991 = vmul.f32 %v1986, %v1990
    %vm1992 = vweird.f32 %v1975
    %vm1993 = vweird.f32 %v1986
    %vm1994 = vmor %vm1992, %vm1993
    %v1995 = vsel %vm1994, %v1986, %v1991
    %v1996 = vmul.f32 %v1972, %v1985
    %v1997 = vmul.f32 %v1973, %v1995
    %v1998 = vld [vmem:[%s8 + $0x2] sm:$0x1]
    %v1999 = vperm.slane %v1998, 0
    %v2000 = vmul.f32 %v1996, %v1999
    %v2001 = vmul.f32 %v1997, %v1999
    %v2002 = vld [vmem:[%s9 + $0x2] sm:$0x1]
    %v2003 = vperm.slane %v2002, 0
    %v2004 = vadd.f32 %v2000, %v2003
    %v2005 = vadd.f32 %v2001, %v2003
    %v2006 = vpack.c.bf16 %v2005, %v2004
    %s2007 = scalar_lea.vmem [#allocation7], 128
    %v2008 = vld [vmem:[%s2007] sm:$0xf]
    %v2009 = vld [vmem:[%s2007 + $0x4] sm:$0xf]
    %v2010 = vld [vmem:[%s2007 + $0x8] sm:$0xf]
    %v2011 = vld [vmem:[%s2007 + $0xc] sm:$0xf]
    %v2012 = vld [vmem:[%s2007 + $0x10] sm:$0xf]
    %v2013 = vld [vmem:[%s2007 + $0x14] sm:$0xf]
    %v2014 = vld [vmem:[%s2007 + $0x18] sm:$0xf]
    %v2015 = vld [vmem:[%s2007 + $0x1c] sm:$0xf]
    %v2016 = vld [vmem:[%s2007 + $0x20] sm:$0xf]
    %v2017 = vld [vmem:[%s2007 + $0x24] sm:$0xf]
    %v2018 = vld [vmem:[%s2007 + $0x28] sm:$0xf]
    %v2019 = vld [vmem:[%s2007 + $0x2c] sm:$0xf]
    %v2020 = vld [vmem:[%s2007 + $0x30] sm:$0xf]
    %v2021 = vld [vmem:[%s2007 + $0x34] sm:$0xf]
    %v2022 = vld [vmem:[%s2007 + $0x38] sm:$0xf]
    %v2023 = vld [vmem:[%s2007 + $0x3c] sm:$0xf]
    %v2024 = vld [vmem:[%s11 + $0x2] sm:$0x1]
    %v2025 = vperm.slane %v2024, 0
    %v2042 = vunpack.c.l.b16 %v2008
    %v2043 = vunpack.c.l.b16 %v2009
    %v2044 = vunpack.c.l.b16 %v2010
    %v2045 = vunpack.c.l.b16 %v2011
    %v2046 = vunpack.c.l.b16 %v2012
    %v2047 = vunpack.c.l.b16 %v2013
    %v2048 = vunpack.c.l.b16 %v2014
    %v2049 = vunpack.c.l.b16 %v2015
    %v2050 = vunpack.c.l.b16 %v2016
    %v2051 = vunpack.c.l.b16 %v2017
    %v2052 = vunpack.c.l.b16 %v2018
    %v2053 = vunpack.c.l.b16 %v2019
    %v2054 = vunpack.c.l.b16 %v2020
    %v2055 = vunpack.c.l.b16 %v2021
    %v2056 = vunpack.c.l.b16 %v2022
    %v2057 = vunpack.c.l.b16 %v2023
    %v2058 = vpack.c.b16 %v2043, %v2042
    %v2059 = vpack.c.b16 %v2045, %v2044
    %v2060 = vpack.c.b16 %v2047, %v2046
    %v2061 = vpack.c.b16 %v2049, %v2048
    %v2062 = vpack.c.b16 %v2051, %v2050
    %v2063 = vpack.c.b16 %v2053, %v2052
    %v2064 = vpack.c.b16 %v2055, %v2054
    %v2065 = vpack.c.b16 %v2057, %v2056
    %2074 = vmatpush.bf16.msra.mxu0 %v2065
    %2075 = vmatpush.bf16.msra.mxu0 %v2064
    %2076 = vmatpush.bf16.msra.mxu0 %v2063
    %2077 = vmatpush.bf16.msra.mxu0 %v2062
    %2078 = vmatpush.bf16.msra.mxu0 %v2061
    %2079 = vmatpush.bf16.msra.mxu0 %v2060
    %2080 = vmatpush.bf16.msra.mxu0 %v2059
    %2081 = vmatpush.bf16.msra.mxu0 %v2058
    %2082 = vmatmul.bf16.gmra.mxu0 %v2006
    %v2083 = vpop.f32.mrf.mxu0
    %v2084 = vadd.f32 %v2025, %v2083
    %v2085 = vpop.f32.mrf.mxu0
    %v2086 = vadd.f32 %v2025, %v2085
    %2087 = vdwg.mxu0
    %v2088 = vmax.f32 %v2084, 0.0
    %v2089 = vmax.f32 %v2086, 0.0
    %v2090 = vpack.c.bf16 %v2089, %v2088
    %s2091 = scalar_lea.vmem [#allocation9], 128
    %v2092 = vld [vmem:[%s2091] sm:$0xf]
    %v2093 = vld [vmem:[%s2091 + $0x4] sm:$0xf]
    %v2094 = vld [vmem:[%s2091 + $0x8] sm:$0xf]
    %v2095 = vld [vmem:[%s2091 + $0xc] sm:$0xf]
    %v2096 = vld [vmem:[%s2091 + $0x10] sm:$0xf]
    %v2097 = vld [vmem:[%s2091 + $0x14] sm:$0xf]
    %v2098 = vld [vmem:[%s2091 + $0x18] sm:$0xf]
    %v2099 = vld [vmem:[%s2091 + $0x1c] sm:$0xf]
    %v2100 = vld [vmem:[%s2091 + $0x20] sm:$0xf]
    %v2101 = vld [vmem:[%s2091 + $0x24] sm:$0xf]
    %v2102 = vld [vmem:[%s2091 + $0x28] sm:$0xf]
    %v2103 = vld [vmem:[%s2091 + $0x2c] sm:$0xf]
    %v2104 = vld [vmem:[%s2091 + $0x30] sm:$0xf]
    %v2105 = vld [vmem:[%s2091 + $0x34] sm:$0xf]
    %v2106 = vld [vmem:[%s2091 + $0x38] sm:$0xf]
    %v2107 = vld [vmem:[%s2091 + $0x3c] sm:$0xf]
    %v2108 = vld [vmem:[%s13 + $0x2] sm:$0x1]
    %v2109 = vperm.slane %v2108, 0
    %v2126 = vunpack.c.l.b16 %v2092
    %v2127 = vunpack.c.l.b16 %v2093
    %v2128 = vunpack.c.l.b16 %v2094
    %v2129 = vunpack.c.l.b16 %v2095
    %v2130 = vunpack.c.l.b16 %v2096
    %v2131 = vunpack.c.l.b16 %v2097
    %v2132 = vunpack.c.l.b16 %v2098
    %v2133 = vunpack.c.l.b16 %v2099
    %v2134 = vunpack.c.l.b16 %v2100
    %v2135 = vunpack.c.l.b16 %v2101
    %v2136 = vunpack.c.l.b16 %v2102
    %v2137 = vunpack.c.l.b16 %v2103
    %v2138 = vunpack.c.l.b16 %v2104
    %v2139 = vunpack.c.l.b16 %v2105
    %v2140 = vunpack.c.l.b16 %v2106
    %v2141 = vunpack.c.l.b16 %v2107
    %v2142 = vpack.c.b16 %v2127, %v2126
    %v2143 = vpack.c.b16 %v2129, %v2128
    %v2144 = vpack.c.b16 %v2131, %v2130
    %v2145 = vpack.c.b16 %v2133, %v2132
    %v2146 = vpack.c.b16 %v2135, %v2134
    %v2147 = vpack.c.b16 %v2137, %v2136
    %v2148 = vpack.c.b16 %v2139, %v2138
    %v2149 = vpack.c.b16 %v2141, %v2140
    %2158 = vmatpush.bf16.msra.mxu0 %v2149
    %2159 = vmatpush.bf16.msra.mxu0 %v2148
    %2160 = vmatpush.bf16.msra.mxu0 %v2147
    %2161 = vmatpush.bf16.msra.mxu0 %v2146
    %2162 = vmatpush.bf16.msra.mxu0 %v2145
    %2163 = vmatpush.bf16.msra.mxu0 %v2144
    %2164 = vmatpush.bf16.msra.mxu0 %v2143
    %2165 = vmatpush.bf16.msra.mxu0 %v2142
    %2166 = vmatmul.bf16.gmra.mxu0 %v2090
    %v2167 = vpop.f32.mrf.mxu0
    %v2168 = vadd.f32 %v2109, %v2167
    %v2169 = vpop.f32.mrf.mxu0
    %v2170 = vadd.f32 %v2109, %v2169
    %2171 = vdwg.mxu0
    %v2172 = vadd.f32 %v2004, %v2168
    %v2173 = vadd.f32 %v2005, %v2170
    %2174 = vmatpush.msra.mxu0 %v565
    %2175 = vmatpush.msra.mxu0 %v564
    %2176 = vmatpush.msra.mxu0 %v563
    %2177 = vmatpush.msra.mxu0 %v562
    %2178 = vmatpush.msra.mxu0 %v561
    %2179 = vmatpush.msra.mxu0 %v560
    %2180 = vmatpush.msra.mxu0 %v559
    %2181 = vmatpush.msra.mxu0 %v558
    %2182 = vmatpush.msra.mxu0 %v557
    %2183 = vmatpush.msra.mxu0 %v556
    %2184 = vmatpush.msra.mxu0 %v555
    %2185 = vmatpush.msra.mxu0 %v554
    %2186 = vmatpush.msra.mxu0 %v553
    %2187 = vmatpush.msra.mxu0 %v552
    %2188 = vmatpush.msra.mxu0 %v551
    %2189 = vmatpush.msra.mxu0 %v550
    %2190 = vmatmul.f32.gmra.mxu0 %v2172
    %v2191 = vpop.f32.mrf.mxu0
    %v2192 = vadd.f32 0.0, %v2191
    %2193 = vmatmul.f32.gmra.mxu0 %v2173
    %v2194 = vpop.f32.mrf.mxu0
    %v2195 = vadd.f32 0.0, %v2194
    %2196 = vdwg.mxu0
    %v2197 = vmul.f32 %v2172, %v2172
    %v2198 = vmul.f32 %v2173, %v2173
    %2199 = vmatpush.msra.mxu0 %v565
    %2200 = vmatpush.msra.mxu0 %v564
    %2201 = vmatpush.msra.mxu0 %v563
    %2202 = vmatpush.msra.mxu0 %v562
    %2203 = vmatpush.msra.mxu0 %v561
    %2204 = vmatpush.msra.mxu0 %v560
    %2205 = vmatpush.msra.mxu0 %v559
    %2206 = vmatpush.msra.mxu0 %v558
    %2207 = vmatpush.msra.mxu0 %v557
    %2208 = vmatpush.msra.mxu0 %v556
    %2209 = vmatpush.msra.mxu0 %v555
    %2210 = vmatpush.msra.mxu0 %v554
    %2211 = vmatpush.msra.mxu0 %v553
    %2212 = vmatpush.msra.mxu0 %v552
    %2213 = vmatpush.msra.mxu0 %v551
    %2214 = vmatpush.msra.mxu0 %v550
    %2215 = vmatmul.f32.gmra.mxu0 %v2197
    %v2216 = vpop.f32.mrf.mxu0
    %v2217 = vadd.f32 0.0, %v2216
    %2218 = vmatmul.f32.gmra.mxu0 %v2198
    %v2219 = vpop.f32.mrf.mxu0
    %v2220 = vadd.f32 0.0, %v2219
    %2221 = vdwg.mxu0
    %v2222 = vmul.f32 %v2192, %v2192
    %v2223 = vmul.f32 %v2195, %v2195
    %v2224 = vsub.f32 %v2217, %v2222
    %v2225 = vsub.f32 %v2220, %v2223
    %v2226 = vsub.f32 %v2172, %v2192
    %v2227 = vsub.f32 %v2173, %v2195
    %v2228 = vadd.f32 %v2224, 1e-05
    %v2229 = vadd.f32 %v2225, 1e-05
    %v2230 = vrsqrt.pop %v2228
    %v2231 = vmul.f32 %v2230, %v2228
    %v2232 = vmul.f32 %v2231, %v2230
    %v2233 = vmul.f32 0.5, %v2232
    %v2234 = vsub.f32 1.5, %v2233
    %v2235 = vmul.f32 %v2230, %v2234
    %vm2236 = vweird.f32 %v2228
    %vm2237 = vweird.f32 %v2230
    %vm2238 = vmor %vm2236, %vm2237
    %v2239 = vsel %vm2238, %v2230, %v2235
    %v2240 = vrsqrt.pop %v2229
    %v2241 = vmul.f32 %v2240, %v2229
    %v2242 = vmul.f32 %v2241, %v2240
    %v2243 = vmul.f32 0.5, %v2242
    %v2244 = vsub.f32 1.5, %v2243
    %v2245 = vmul.f32 %v2240, %v2244
    %vm2246 = vweird.f32 %v2229
    %vm2247 = vweird.f32 %v2240
    %vm2248 = vmor %vm2246, %vm2247
    %v2249 = vsel %vm2248, %v2240, %v2245
    %v2250 = vmul.f32 %v2226, %v2239
    %v2251 = vmul.f32 %v2227, %v2249
    %v2252 = vld [vmem:[%s14 + $0x2] sm:$0x1]
    %v2253 = vperm.slane %v2252, 0
    %v2254 = vmul.f32 %v2250, %v2253
    %v2255 = vmul.f32 %v2251, %v2253
    %v2256 = vld [vmem:[#allocation10 + $0x2] sm:$0x1]
    %v2257 = vperm.slane %v2256, 0
    %v2258 = vadd.f32 %v2254, %v2257
    %v2259 = vadd.f32 %v2255, %v2257
    %v2260 = vpack.c.bf16 %v2259, %v2258
    %s2261 = scalar_lea.vmem [#allocation4], 576
    %v2262 = vld [vmem:[%s2261] sm:$0xff]
    %v2263 = vld [vmem:[%s2261 + $0x8] sm:$0xf]
    %v2264 = vld [vmem:[%s2261 + $0xc] sm:$0xff]
    %v2265 = vld [vmem:[%s2261 + $0x14] sm:$0xf]
    %v2266 = vld [vmem:[%s2261 + $0x18] sm:$0xff]
    %v2267 = vld [vmem:[%s2261 + $0x20] sm:$0xf]
    %v2268 = vld [vmem:[%s2261 + $0x24] sm:$0xff]
    %v2269 = vld [vmem:[%s2261 + $0x2c] sm:$0xf]
    %v2270 = vld [vmem:[%s2261 + $0x30] sm:$0xff]
    %v2271 = vld [vmem:[%s2261 + $0x38] sm:$0xf]
    %v2272 = vld [vmem:[%s2261 + $0x3c] sm:$0xff]
    %v2273 = vld [vmem:[%s2261 + $0x44] sm:$0xf]
    %v2274 = vld [vmem:[%s2261 + $0x48] sm:$0xff]
    %v2275 = vld [vmem:[%s2261 + $0x50] sm:$0xf]
    %v2276 = vld [vmem:[%s2261 + $0x54] sm:$0xff]
    %v2277 = vld [vmem:[%s2261 + $0x5c] sm:$0xf]
    %v2278 = vld [vmem:[%s2261 + $0x60] sm:$0xff]
    %v2279 = vld [vmem:[%s2261 + $0x68] sm:$0xf]
    %v2280 = vld [vmem:[%s2261 + $0x6c] sm:$0xff]
    %v2281 = vld [vmem:[%s2261 + $0x74] sm:$0xf]
    %v2282 = vld [vmem:[%s2261 + $0x78] sm:$0xff]
    %v2283 = vld [vmem:[%s2261 + $0x80] sm:$0xf]
    %v2284 = vld [vmem:[%s2261 + $0x84] sm:$0xff]
    %v2285 = vld [vmem:[%s2261 + $0x8c] sm:$0xf]
    %v2286 = vld [vmem:[%s2261 + $0x90] sm:$0xff]
    %v2287 = vld [vmem:[%s2261 + $0x98] sm:$0xf]
    %v2288 = vld [vmem:[%s2261 + $0x9c] sm:$0xff]
    %v2289 = vld [vmem:[%s2261 + $0xa4] sm:$0xf]
    %v2290 = vld [vmem:[%s2261 + $0xa8] sm:$0xff]
    %v2291 = vld [vmem:[%s2261 + $0xb0] sm:$0xf]
    %v2292 = vld [vmem:[%s2261 + $0xb4] sm:$0xff]
    %v2293 = vld [vmem:[%s2261 + $0xbc] sm:$0xf]
    %s2294 = scalar_lea.vmem %s5, 3
    %v2295 = vld [vmem:[%s2294] ss:$4 sm:$0x7]
    %v2297 = vperm.slane %v2295, 0
    %v2298 = vperm.slane %v2295, 1
    %v2299 = vperm.slane %v2295, 2
    %v2335 = vunpack.c.l.b16 %v2262
    %v2336 = vunpack.c.h.b16 %v2262
    %v2337 = vunpack.c.l.b16 %v2263
    %v2338 = vunpack.c.l.b16 %v2264
    %v2339 = vunpack.c.h.b16 %v2264
    %v2340 = vunpack.c.l.b16 %v2265
    %v2341 = vunpack.c.l.b16 %v2266
    %v2342 = vunpack.c.h.b16 %v2266
    %v2343 = vunpack.c.l.b16 %v2267
    %v2344 = vunpack.c.l.b16 %v2268
    %v2345 = vunpack.c.h.b16 %v2268
    %v2346 = vunpack.c.l.b16 %v2269
    %v2347 = vunpack.c.l.b16 %v2270
    %v2348 = vunpack.c.h.b16 %v2270
    %v2349 = vunpack.c.l.b16 %v2271
    %v2350 = vunpack.c.l.b16 %v2272
    %v2351 = vunpack.c.h.b16 %v2272
    %v2352 = vunpack.c.l.b16 %v2273
    %v2353 = vunpack.c.l.b16 %v2274
    %v2354 = vunpack.c.h.b16 %v2274
    %v2355 = vunpack.c.l.b16 %v2275
    %v2356 = vunpack.c.l.b16 %v2276
    %v2357 = vunpack.c.h.b16 %v2276
    %v2358 = vunpack.c.l.b16 %v2277
    %v2359 = vunpack.c.l.b16 %v2278
    %v2360 = vunpack.c.h.b16 %v2278
    %v2361 = vunpack.c.l.b16 %v2279
    %v2362 = vunpack.c.l.b16 %v2280
    %v2363 = vunpack.c.h.b16 %v2280
    %v2364 = vunpack.c.l.b16 %v2281
    %v2365 = vunpack.c.l.b16 %v2282
    %v2366 = vunpack.c.h.b16 %v2282
    %v2367 = vunpack.c.l.b16 %v2283
    %v2368 = vunpack.c.l.b16 %v2284
    %v2369 = vunpack.c.h.b16 %v2284
    %v2370 = vunpack.c.l.b16 %v2285
    %v2371 = vunpack.c.l.b16 %v2286
    %v2372 = vunpack.c.h.b16 %v2286
    %v2373 = vunpack.c.l.b16 %v2287
    %v2374 = vunpack.c.l.b16 %v2288
    %v2375 = vunpack.c.h.b16 %v2288
    %v2376 = vunpack.c.l.b16 %v2289
    %v2377 = vunpack.c.l.b16 %v2290
    %v2378 = vunpack.c.h.b16 %v2290
    %v2379 = vunpack.c.l.b16 %v2291
    %v2380 = vunpack.c.l.b16 %v2292
    %v2381 = vunpack.c.h.b16 %v2292
    %v2382 = vunpack.c.l.b16 %v2293
    %v2383 = vpack.c.b16 %v2338, %v2335
    %v2384 = vpack.c.b16 %v2339, %v2336
    %v2385 = vpack.c.b16 %v2340, %v2337
    %v2386 = vpack.c.b16 %v2344, %v2341
    %v2387 = vpack.c.b16 %v2345, %v2342
    %v2388 = vpack.c.b16 %v2346, %v2343
    %v2389 = vpack.c.b16 %v2350, %v2347
    %v2390 = vpack.c.b16 %v2351, %v2348
    %v2391 = vpack.c.b16 %v2352, %v2349
    %v2392 = vpack.c.b16 %v2356, %v2353
    %v2393 = vpack.c.b16 %v2357, %v2354
    %v2394 = vpack.c.b16 %v2358, %v2355
    %v2395 = vpack.c.b16 %v2362, %v2359
    %v2396 = vpack.c.b16 %v2363, %v2360
    %v2397 = vpack.c.b16 %v2364, %v2361
    %v2398 = vpack.c.b16 %v2368, %v2365
    %v2399 = vpack.c.b16 %v2369, %v2366
    %v2400 = vpack.c.b16 %v2370, %v2367
    %v2401 = vpack.c.b16 %v2374, %v2371
    %v2402 = vpack.c.b16 %v2375, %v2372
    %v2403 = vpack.c.b16 %v2376, %v2373
    %v2404 = vpack.c.b16 %v2380, %v2377
    %v2405 = vpack.c.b16 %v2381, %v2378
    %v2406 = vpack.c.b16 %v2382, %v2379
    %2431 = vmatpush.bf16.msra.mxu0 %v2404
    %2432 = vmatpush.bf16.msra.mxu0 %v2401
    %2433 = vmatpush.bf16.msra.mxu0 %v2398
    %2434 = vmatpush.bf16.msra.mxu0 %v2395
    %2435 = vmatpush.bf16.msra.mxu0 %v2392
    %2436 = vmatpush.bf16.msra.mxu0 %v2389
    %2437 = vmatpush.bf16.msra.mxu0 %v2386
    %2438 = vmatpush.bf16.msra.mxu0 %v2383
    %2439 = vmatmul.bf16.gmra.mxu0 %v2260
    %v2440 = vpop.f32.mrf.mxu0
    %v2441 = vadd.f32 %v2297, %v2440
    %v2442 = vpop.f32.mrf.mxu0
    %v2443 = vadd.f32 %v2297, %v2442
    %2444 = vdwg.mxu0
    %2445 = vmatpush.bf16.msra.mxu0 %v2405
    %2446 = vmatpush.bf16.msra.mxu0 %v2402
    %2447 = vmatpush.bf16.msra.mxu0 %v2399
    %2448 = vmatpush.bf16.msra.mxu0 %v2396
    %2449 = vmatpush.bf16.msra.mxu0 %v2393
    %2450 = vmatpush.bf16.msra.mxu0 %v2390
    %2451 = vmatpush.bf16.msra.mxu0 %v2387
    %2452 = vmatpush.bf16.msra.mxu0 %v2384
    %2453 = vmatmul.bf16.gmra.mxu0 %v2260
    %v2454 = vpop.f32.mrf.mxu0
    %v2455 = vadd.f32 %v2298, %v2454
    %v2456 = vpop.f32.mrf.mxu0
    %v2457 = vadd.f32 %v2298, %v2456
    %2458 = vdwg.mxu0
    %2459 = vmatpush.bf16.msra.mxu0 %v2406
    %2460 = vmatpush.bf16.msra.mxu0 %v2403
    %2461 = vmatpush.bf16.msra.mxu0 %v2400
    %2462 = vmatpush.bf16.msra.mxu0 %v2397
    %2463 = vmatpush.bf16.msra.mxu0 %v2394
    %2464 = vmatpush.bf16.msra.mxu0 %v2391
    %2465 = vmatpush.bf16.msra.mxu0 %v2388
    %2466 = vmatpush.bf16.msra.mxu0 %v2385
    %2467 = vmatmul.bf16.gmra.mxu0 %v2260
    %v2468 = vpop.f32.mrf.mxu0
    %v2469 = vadd.f32 %v2299, %v2468
    %v2470 = vpop.f32.mrf.mxu0
    %v2471 = vadd.f32 %v2299, %v2470
    %2472 = vdwg.mxu0
    %2473 = vrot.lane.b32.xlu0 %v2455, 64
    %v2474 = vpop.permute.xlu0 %2473
    %2475 = vrot.lane.b32.xlu0 %v2457, 64
    %v2476 = vpop.permute.xlu0 %2475
    %2477 = vrot.lane.b32.xlu0 %v2469, 64
    %v2478 = vpop.permute.xlu0 %2477
    %2479 = vrot.lane.b32.xlu0 %v2471, 64
    %v2480 = vpop.permute.xlu0 %2479
    %v2481 = vsub.f32 %v2455, %v2474
    %v2482 = vsub.f32 %v2457, %v2476
    %v2483 = vmul.f32 %v2441, %v2481
    %v2484 = vmul.f32 %v2443, %v2482
    %v2485 = vpack.c.bf16 %v2484, %v2483
    %2486 = vmatpush.bf16.msra.mxu0 %v430
    %2487 = vmatpush.bf16.msra.mxu0 %v429
    %2488 = vmatpush.bf16.msra.mxu0 %v428
    %2489 = vmatpush.bf16.msra.mxu0 %v427
    %2490 = vmatpush.bf16.msra.mxu0 %v426
    %2491 = vmatpush.bf16.msra.mxu0 %v425
    %2492 = vmatpush.bf16.msra.mxu0 %v424
    %2493 = vmatpush.bf16.msra.mxu0 %v423
    %2494 = vmatmul.bf16.gmra.mxu0 %v2485
    %v2495 = vpop.f32.mrf.mxu0
    %v2496 = vadd.f32 0.0, %v2495
    %v2497 = vpop.f32.mrf.mxu0
    %v2498 = vadd.f32 0.0, %v2497
    %2499 = vdwg.mxu0
    %v2500 = vmul.f32 %v2496, 0.5
    %v2501 = vmul.f32 %v2498, 0.5
    %v2502 = vtanh.pop %v2500
    %v2503 = vtanh.pop %v2501
    %v2504 = vmul.f32 %v2502, 0.5
    %v2505 = vmul.f32 %v2503, 0.5
    %v2506 = vsub.f32 0.5, %v2504
    %v2507 = vsub.f32 0.5, %v2505
    %v2508 = vsub.f32 %v2478, %v2469
    %v2509 = vsub.f32 %v2480, %v2471
    %v2510 = vmul.f32 %v2506, %v2508
    %v2511 = vmul.f32 %v2507, %v2509
    %v2512 = vadd.f32 %v2469, %v2510
    %v2513 = vadd.f32 %v2471, %v2511
    %v2514 = vpack.c.bf16 %v2513, %v2512
    %s2515 = scalar_lea.vmem [#allocation6], 192
    %v2516 = vld [vmem:[%s2515] sm:$0xf]
    %v2517 = vld [vmem:[%s2515 + $0x4] sm:$0xf]
    %v2518 = vld [vmem:[%s2515 + $0x8] sm:$0xf]
    %v2519 = vld [vmem:[%s2515 + $0xc] sm:$0xf]
    %v2520 = vld [vmem:[%s2515 + $0x10] sm:$0xf]
    %v2521 = vld [vmem:[%s2515 + $0x14] sm:$0xf]
    %v2522 = vld [vmem:[%s2515 + $0x18] sm:$0xf]
    %v2523 = vld [vmem:[%s2515 + $0x1c] sm:$0xf]
    %v2524 = vld [vmem:[%s2515 + $0x20] sm:$0xf]
    %v2525 = vld [vmem:[%s2515 + $0x24] sm:$0xf]
    %v2526 = vld [vmem:[%s2515 + $0x28] sm:$0xf]
    %v2527 = vld [vmem:[%s2515 + $0x2c] sm:$0xf]
    %v2528 = vld [vmem:[%s2515 + $0x30] sm:$0xf]
    %v2529 = vld [vmem:[%s2515 + $0x34] sm:$0xf]
    %v2530 = vld [vmem:[%s2515 + $0x38] sm:$0xf]
    %v2531 = vld [vmem:[%s2515 + $0x3c] sm:$0xf]
    %v2532 = vld [vmem:[%s7 + $0x3] sm:$0x1]
    %v2533 = vperm.slane %v2532, 0
    %v2550 = vunpack.c.l.b16 %v2516
    %v2551 = vunpack.c.l.b16 %v2517
    %v2552 = vunpack.c.l.b16 %v2518
    %v2553 = vunpack.c.l.b16 %v2519
    %v2554 = vunpack.c.l.b16 %v2520
    %v2555 = vunpack.c.l.b16 %v2521
    %v2556 = vunpack.c.l.b16 %v2522
    %v2557 = vunpack.c.l.b16 %v2523
    %v2558 = vunpack.c.l.b16 %v2524
    %v2559 = vunpack.c.l.b16 %v2525
    %v2560 = vunpack.c.l.b16 %v2526
    %v2561 = vunpack.c.l.b16 %v2527
    %v2562 = vunpack.c.l.b16 %v2528
    %v2563 = vunpack.c.l.b16 %v2529
    %v2564 = vunpack.c.l.b16 %v2530
    %v2565 = vunpack.c.l.b16 %v2531
    %v2566 = vpack.c.b16 %v2551, %v2550
    %v2567 = vpack.c.b16 %v2553, %v2552
    %v2568 = vpack.c.b16 %v2555, %v2554
    %v2569 = vpack.c.b16 %v2557, %v2556
    %v2570 = vpack.c.b16 %v2559, %v2558
    %v2571 = vpack.c.b16 %v2561, %v2560
    %v2572 = vpack.c.b16 %v2563, %v2562
    %v2573 = vpack.c.b16 %v2565, %v2564
    %2582 = vmatpush.bf16.msra.mxu0 %v2573
    %2583 = vmatpush.bf16.msra.mxu0 %v2572
    %2584 = vmatpush.bf16.msra.mxu0 %v2571
    %2585 = vmatpush.bf16.msra.mxu0 %v2570
    %2586 = vmatpush.bf16.msra.mxu0 %v2569
    %2587 = vmatpush.bf16.msra.mxu0 %v2568
    %2588 = vmatpush.bf16.msra.mxu0 %v2567
    %2589 = vmatpush.bf16.msra.mxu0 %v2566
    %2590 = vmatmul.bf16.gmra.mxu0 %v2514
    %v2591 = vpop.f32.mrf.mxu0
    %v2592 = vadd.f32 %v2533, %v2591
    %v2593 = vpop.f32.mrf.mxu0
    %v2594 = vadd.f32 %v2533, %v2593
    %2595 = vdwg.mxu0
    %v2596 = vadd.f32 %v2258, %v2592
    %v2597 = vadd.f32 %v2259, %v2594
    %2598 = vmatpush.msra.mxu0 %v565
    %2599 = vmatpush.msra.mxu0 %v564
    %2600 = vmatpush.msra.mxu0 %v563
    %2601 = vmatpush.msra.mxu0 %v562
    %2602 = vmatpush.msra.mxu0 %v561
    %2603 = vmatpush.msra.mxu0 %v560
    %2604 = vmatpush.msra.mxu0 %v559
    %2605 = vmatpush.msra.mxu0 %v558
    %2606 = vmatpush.msra.mxu0 %v557
    %2607 = vmatpush.msra.mxu0 %v556
    %2608 = vmatpush.msra.mxu0 %v555
    %2609 = vmatpush.msra.mxu0 %v554
    %2610 = vmatpush.msra.mxu0 %v553
    %2611 = vmatpush.msra.mxu0 %v552
    %2612 = vmatpush.msra.mxu0 %v551
    %2613 = vmatpush.msra.mxu0 %v550
    %2614 = vmatmul.f32.gmra.mxu0 %v2596
    %v2615 = vpop.f32.mrf.mxu0
    %v2616 = vadd.f32 0.0, %v2615
    %2617 = vmatmul.f32.gmra.mxu0 %v2597
    %v2618 = vpop.f32.mrf.mxu0
    %v2619 = vadd.f32 0.0, %v2618
    %2620 = vdwg.mxu0
    %v2621 = vmul.f32 %v2596, %v2596
    %v2622 = vmul.f32 %v2597, %v2597
    %2623 = vmatpush.msra.mxu0 %v565
    %2624 = vmatpush.msra.mxu0 %v564
    %2625 = vmatpush.msra.mxu0 %v563
    %2626 = vmatpush.msra.mxu0 %v562
    %2627 = vmatpush.msra.mxu0 %v561
    %2628 = vmatpush.msra.mxu0 %v560
    %2629 = vmatpush.msra.mxu0 %v559
    %2630 = vmatpush.msra.mxu0 %v558
    %2631 = vmatpush.msra.mxu0 %v557
    %2632 = vmatpush.msra.mxu0 %v556
    %2633 = vmatpush.msra.mxu0 %v555
    %2634 = vmatpush.msra.mxu0 %v554
    %2635 = vmatpush.msra.mxu0 %v553
    %2636 = vmatpush.msra.mxu0 %v552
    %2637 = vmatpush.msra.mxu0 %v551
    %2638 = vmatpush.msra.mxu0 %v550
    %2639 = vmatmul.f32.gmra.mxu0 %v2621
    %v2640 = vpop.f32.mrf.mxu0
    %v2641 = vadd.f32 0.0, %v2640
    %2642 = vmatmul.f32.gmra.mxu0 %v2622
    %v2643 = vpop.f32.mrf.mxu0
    %v2644 = vadd.f32 0.0, %v2643
    %2645 = vdwg.mxu0
    %v2646 = vmul.f32 %v2616, %v2616
    %v2647 = vmul.f32 %v2619, %v2619
    %v2648 = vsub.f32 %v2641, %v2646
    %v2649 = vsub.f32 %v2644, %v2647
    %v2650 = vsub.f32 %v2596, %v2616
    %v2651 = vsub.f32 %v2597, %v2619
    %v2652 = vadd.f32 %v2648, 1e-05
    %v2653 = vadd.f32 %v2649, 1e-05
    %v2654 = vrsqrt.pop %v2652
    %v2655 = vmul.f32 %v2654, %v2652
    %v2656 = vmul.f32 %v2655, %v2654
    %v2657 = vmul.f32 0.5, %v2656
    %v2658 = vsub.f32 1.5, %v2657
    %v2659 = vmul.f32 %v2654, %v2658
    %vm2660 = vweird.f32 %v2652
    %vm2661 = vweird.f32 %v2654
    %vm2662 = vmor %vm2660, %vm2661
    %v2663 = vsel %vm2662, %v2654, %v2659
    %v2664 = vrsqrt.pop %v2653
    %v2665 = vmul.f32 %v2664, %v2653
    %v2666 = vmul.f32 %v2665, %v2664
    %v2667 = vmul.f32 0.5, %v2666
    %v2668 = vsub.f32 1.5, %v2667
    %v2669 = vmul.f32 %v2664, %v2668
    %vm2670 = vweird.f32 %v2653
    %vm2671 = vweird.f32 %v2664
    %vm2672 = vmor %vm2670, %vm2671
    %v2673 = vsel %vm2672, %v2664, %v2669
    %v2674 = vmul.f32 %v2650, %v2663
    %v2675 = vmul.f32 %v2651, %v2673
    %v2676 = vld [vmem:[%s8 + $0x3] sm:$0x1]
    %v2677 = vperm.slane %v2676, 0
    %v2678 = vmul.f32 %v2674, %v2677
    %v2679 = vmul.f32 %v2675, %v2677
    %v2680 = vld [vmem:[%s9 + $0x3] sm:$0x1]
    %v2681 = vperm.slane %v2680, 0
    %v2682 = vadd.f32 %v2678, %v2681
    %v2683 = vadd.f32 %v2679, %v2681
    %v2684 = vpack.c.bf16 %v2683, %v2682
    %s2685 = scalar_lea.vmem [#allocation7], 192
    %v2686 = vld [vmem:[%s2685] sm:$0xf]
    %v2687 = vld [vmem:[%s2685 + $0x4] sm:$0xf]
    %v2688 = vld [vmem:[%s2685 + $0x8] sm:$0xf]
    %v2689 = vld [vmem:[%s2685 + $0xc] sm:$0xf]
    %v2690 = vld [vmem:[%s2685 + $0x10] sm:$0xf]
    %v2691 = vld [vmem:[%s2685 + $0x14] sm:$0xf]
    %v2692 = vld [vmem:[%s2685 + $0x18] sm:$0xf]
    %v2693 = vld [vmem:[%s2685 + $0x1c] sm:$0xf]
    %v2694 = vld [vmem:[%s2685 + $0x20] sm:$0xf]
    %v2695 = vld [vmem:[%s2685 + $0x24] sm:$0xf]
    %v2696 = vld [vmem:[%s2685 + $0x28] sm:$0xf]
    %v2697 = vld [vmem:[%s2685 + $0x2c] sm:$0xf]
    %v2698 = vld [vmem:[%s2685 + $0x30] sm:$0xf]
    %v2699 = vld [vmem:[%s2685 + $0x34] sm:$0xf]
    %v2700 = vld [vmem:[%s2685 + $0x38] sm:$0xf]
    %v2701 = vld [vmem:[%s2685 + $0x3c] sm:$0xf]
    %v2702 = vld [vmem:[%s11 + $0x3] sm:$0x1]
    %v2703 = vperm.slane %v2702, 0
    %v2720 = vunpack.c.l.b16 %v2686
    %v2721 = vunpack.c.l.b16 %v2687
    %v2722 = vunpack.c.l.b16 %v2688
    %v2723 = vunpack.c.l.b16 %v2689
    %v2724 = vunpack.c.l.b16 %v2690
    %v2725 = vunpack.c.l.b16 %v2691
    %v2726 = vunpack.c.l.b16 %v2692
    %v2727 = vunpack.c.l.b16 %v2693
    %v2728 = vunpack.c.l.b16 %v2694
    %v2729 = vunpack.c.l.b16 %v2695
    %v2730 = vunpack.c.l.b16 %v2696
    %v2731 = vunpack.c.l.b16 %v2697
    %v2732 = vunpack.c.l.b16 %v2698
    %v2733 = vunpack.c.l.b16 %v2699
    %v2734 = vunpack.c.l.b16 %v2700
    %v2735 = vunpack.c.l.b16 %v2701
    %v2736 = vpack.c.b16 %v2721, %v2720
    %v2737 = vpack.c.b16 %v2723, %v2722
    %v2738 = vpack.c.b16 %v2725, %v2724
    %v2739 = vpack.c.b16 %v2727, %v2726
    %v2740 = vpack.c.b16 %v2729, %v2728
    %v2741 = vpack.c.b16 %v2731, %v2730
    %v2742 = vpack.c.b16 %v2733, %v2732
    %v2743 = vpack.c.b16 %v2735, %v2734
    %2752 = vmatpush.bf16.msra.mxu0 %v2743
    %2753 = vmatpush.bf16.msra.mxu0 %v2742
    %2754 = vmatpush.bf16.msra.mxu0 %v2741
    %2755 = vmatpush.bf16.msra.mxu0 %v2740
    %2756 = vmatpush.bf16.msra.mxu0 %v2739
    %2757 = vmatpush.bf16.msra.mxu0 %v2738
    %2758 = vmatpush.bf16.msra.mxu0 %v2737
    %2759 = vmatpush.bf16.msra.mxu0 %v2736
    %2760 = vmatmul.bf16.gmra.mxu0 %v2684
    %v2761 = vpop.f32.mrf.mxu0
    %v2762 = vadd.f32 %v2703, %v2761
    %v2763 = vpop.f32.mrf.mxu0
    %v2764 = vadd.f32 %v2703, %v2763
    %2765 = vdwg.mxu0
    %v2766 = vmax.f32 %v2762, 0.0
    %v2767 = vmax.f32 %v2764, 0.0
    %v2768 = vpack.c.bf16 %v2767, %v2766
    %s2769 = scalar_lea.vmem [#allocation9], 192
    %v2770 = vld [vmem:[%s2769] sm:$0xf]
    %v2771 = vld [vmem:[%s2769 + $0x4] sm:$0xf]
    %v2772 = vld [vmem:[%s2769 + $0x8] sm:$0xf]
    %v2773 = vld [vmem:[%s2769 + $0xc] sm:$0xf]
    %v2774 = vld [vmem:[%s2769 + $0x10] sm:$0xf]
    %v2775 = vld [vmem:[%s2769 + $0x14] sm:$0xf]
    %v2776 = vld [vmem:[%s2769 + $0x18] sm:$0xf]
    %v2777 = vld [vmem:[%s2769 + $0x1c] sm:$0xf]
    %v2778 = vld [vmem:[%s2769 + $0x20] sm:$0xf]
    %v2779 = vld [vmem:[%s2769 + $0x24] sm:$0xf]
    %v2780 = vld [vmem:[%s2769 + $0x28] sm:$0xf]
    %v2781 = vld [vmem:[%s2769 + $0x2c] sm:$0xf]
    %v2782 = vld [vmem:[%s2769 + $0x30] sm:$0xf]
    %v2783 = vld [vmem:[%s2769 + $0x34] sm:$0xf]
    %v2784 = vld [vmem:[%s2769 + $0x38] sm:$0xf]
    %v2785 = vld [vmem:[%s2769 + $0x3c] sm:$0xf]
    %v2786 = vld [vmem:[%s13 + $0x3] sm:$0x1]
    %v2787 = vperm.slane %v2786, 0
    %v2804 = vunpack.c.l.b16 %v2770
    %v2805 = vunpack.c.l.b16 %v2771
    %v2806 = vunpack.c.l.b16 %v2772
    %v2807 = vunpack.c.l.b16 %v2773
    %v2808 = vunpack.c.l.b16 %v2774
    %v2809 = vunpack.c.l.b16 %v2775
    %v2810 = vunpack.c.l.b16 %v2776
    %v2811 = vunpack.c.l.b16 %v2777
    %v2812 = vunpack.c.l.b16 %v2778
    %v2813 = vunpack.c.l.b16 %v2779
    %v2814 = vunpack.c.l.b16 %v2780
    %v2815 = vunpack.c.l.b16 %v2781
    %v2816 = vunpack.c.l.b16 %v2782
    %v2817 = vunpack.c.l.b16 %v2783
    %v2818 = vunpack.c.l.b16 %v2784
    %v2819 = vunpack.c.l.b16 %v2785
    %v2820 = vpack.c.b16 %v2805, %v2804
    %v2821 = vpack.c.b16 %v2807, %v2806
    %v2822 = vpack.c.b16 %v2809, %v2808
    %v2823 = vpack.c.b16 %v2811, %v2810
    %v2824 = vpack.c.b16 %v2813, %v2812
    %v2825 = vpack.c.b16 %v2815, %v2814
    %v2826 = vpack.c.b16 %v2817, %v2816
    %v2827 = vpack.c.b16 %v2819, %v2818
    %2836 = vmatpush.bf16.msra.mxu0 %v2827
    %2837 = vmatpush.bf16.msra.mxu0 %v2826
    %2838 = vmatpush.bf16.msra.mxu0 %v2825
    %2839 = vmatpush.bf16.msra.mxu0 %v2824
    %2840 = vmatpush.bf16.msra.mxu0 %v2823
    %2841 = vmatpush.bf16.msra.mxu0 %v2822
    %2842 = vmatpush.bf16.msra.mxu0 %v2821
    %2843 = vmatpush.bf16.msra.mxu0 %v2820
    %2844 = vmatmul.bf16.gmra.mxu0 %v2768
    %v2845 = vpop.f32.mrf.mxu0
    %v2846 = vadd.f32 %v2787, %v2845
    %v2847 = vpop.f32.mrf.mxu0
    %v2848 = vadd.f32 %v2787, %v2847
    %2849 = vdwg.mxu0
    %v2850 = vadd.f32 %v2682, %v2846
    %v2851 = vadd.f32 %v2683, %v2848
    %2852 = vmatpush.msra.mxu0 %v565
    %2853 = vmatpush.msra.mxu0 %v564
    %2854 = vmatpush.msra.mxu0 %v563
    %2855 = vmatpush.msra.mxu0 %v562
    %2856 = vmatpush.msra.mxu0 %v561
    %2857 = vmatpush.msra.mxu0 %v560
    %2858 = vmatpush.msra.mxu0 %v559
    %2859 = vmatpush.msra.mxu0 %v558
    %2860 = vmatpush.msra.mxu0 %v557
    %2861 = vmatpush.msra.mxu0 %v556
    %2862 = vmatpush.msra.mxu0 %v555
    %2863 = vmatpush.msra.mxu0 %v554
    %2864 = vmatpush.msra.mxu0 %v553
    %2865 = vmatpush.msra.mxu0 %v552
    %2866 = vmatpush.msra.mxu0 %v551
    %2867 = vmatpush.msra.mxu0 %v550
    %2868 = vmatmul.f32.gmra.mxu0 %v2850
    %v2869 = vpop.f32.mrf.mxu0
    %v2870 = vadd.f32 0.0, %v2869
    %2871 = vmatmul.f32.gmra.mxu0 %v2851
    %v2872 = vpop.f32.mrf.mxu0
    %v2873 = vadd.f32 0.0, %v2872
    %2874 = vdwg.mxu0
    %v2875 = vmul.f32 %v2850, %v2850
    %v2876 = vmul.f32 %v2851, %v2851
    %2877 = vmatpush.msra.mxu0 %v565
    %2878 = vmatpush.msra.mxu0 %v564
    %2879 = vmatpush.msra.mxu0 %v563
    %2880 = vmatpush.msra.mxu0 %v562
    %2881 = vmatpush.msra.mxu0 %v561
    %2882 = vmatpush.msra.mxu0 %v560
    %2883 = vmatpush.msra.mxu0 %v559
    %2884 = vmatpush.msra.mxu0 %v558
    %2885 = vmatpush.msra.mxu0 %v557
    %2886 = vmatpush.msra.mxu0 %v556
    %2887 = vmatpush.msra.mxu0 %v555
    %2888 = vmatpush.msra.mxu0 %v554
    %2889 = vmatpush.msra.mxu0 %v553
    %2890 = vmatpush.msra.mxu0 %v552
    %2891 = vmatpush.msra.mxu0 %v551
    %2892 = vmatpush.msra.mxu0 %v550
    %2893 = vmatmul.f32.gmra.mxu0 %v2875
    %v2894 = vpop.f32.mrf.mxu0
    %v2895 = vadd.f32 0.0, %v2894
    %2896 = vmatmul.f32.gmra.mxu0 %v2876
    %v2897 = vpop.f32.mrf.mxu0
    %v2898 = vadd.f32 0.0, %v2897
    %2899 = vdwg.mxu0
    %v2900 = vmul.f32 %v2870, %v2870
    %v2901 = vmul.f32 %v2873, %v2873
    %v2902 = vsub.f32 %v2895, %v2900
    %v2903 = vsub.f32 %v2898, %v2901
    %v2904 = vsub.f32 %v2850, %v2870
    %v2905 = vsub.f32 %v2851, %v2873
    %v2906 = vadd.f32 %v2902, 1e-05
    %v2907 = vadd.f32 %v2903, 1e-05
    %v2908 = vrsqrt.pop %v2906
    %v2909 = vmul.f32 %v2908, %v2906
    %v2910 = vmul.f32 %v2909, %v2908
    %v2911 = vmul.f32 0.5, %v2910
    %v2912 = vsub.f32 1.5, %v2911
    %v2913 = vmul.f32 %v2908, %v2912
    %vm2914 = vweird.f32 %v2906
    %vm2915 = vweird.f32 %v2908
    %vm2916 = vmor %vm2914, %vm2915
    %v2917 = vsel %vm2916, %v2908, %v2913
    %v2918 = vrsqrt.pop %v2907
    %v2919 = vmul.f32 %v2918, %v2907
    %v2920 = vmul.f32 %v2919, %v2918
    %v2921 = vmul.f32 0.5, %v2920
    %v2922 = vsub.f32 1.5, %v2921
    %v2923 = vmul.f32 %v2918, %v2922
    %vm2924 = vweird.f32 %v2907
    %vm2925 = vweird.f32 %v2918
    %vm2926 = vmor %vm2924, %vm2925
    %v2927 = vsel %vm2926, %v2918, %v2923
    %v2928 = vmul.f32 %v2904, %v2917
    %v2929 = vmul.f32 %v2905, %v2927
    %v2930 = vld [vmem:[%s14 + $0x3] sm:$0x1]
    %v2931 = vperm.slane %v2930, 0
    %v2932 = vmul.f32 %v2928, %v2931
    %v2933 = vmul.f32 %v2929, %v2931
    %v2934 = vld [vmem:[#allocation10 + $0x3] sm:$0x1]
    %v2935 = vperm.slane %v2934, 0
    %v2936 = vadd.f32 %v2932, %v2935
    %v2937 = vadd.f32 %v2933, %v2935
    %v2938 = vmax.f32 %v2936, 0.0
    %v2939 = vmax.f32 %v2937, 0.0
    %2940 = vst [vmem:[%s16] sm:$0xff] %v2938
    %2941 = vst [vmem:[%s16 + $0x8] sm:$0xff] %v2939
    // Predicated region
    $region90: #{transformer_conv_model_forward.1} parent=1 // pred_check
      _
    $region91: #{transformer_conv_model_forward.1} parent=1 // pred_check_branch
      %2943 = sbr.rel (0) target = $region93
    $region92: #{transformer_conv_model_forward.1} parent=1 // pred_region
      _
    $region93: #{transformer_conv_model_forward.1} parent=1 // pred_fallthru
      _
    // Predicated region
    $region94: #{transformer_conv_model_forward.1} parent=1 // pred_check
      _
    $region95: #{transformer_conv_model_forward.1} parent=1 // pred_check_branch
      %2945 = sbr.rel (0) target = $region97
    $region96: #{transformer_conv_model_forward.1} parent=1 // pred_region
      _
    $region97: #{transformer_conv_model_forward.1} parent=1 // pred_fallthru
      _
    %2946 = vsyncpa [#allocation3], 1
    %2947 = vsyncpa [#allocation5], 1
    %2948 = vsyncpa [#allocation8], 1
    %2949 = vsyncpa [#allocation11], 1

</llo_original>
